<compile_context>
chip_gen: v7x
topology: tpu7x:2x2x1
jax: 0.10.0
libtpu: 0.0.40
codegen_flags: <defaults>
</compile_context>

<pallas_src>
import jax
import jax.numpy as jnp
from jax.experimental import pallas as pl
from jax.experimental.pallas import tpu as pltpu


# Real (in, out) dims of each Linear layer (PyTorch spec).
ENCODER_DIMS = [(784, 500), (500, 500), (500, 200), (200, 10)]
DECODER_DIMS = [(20, 200), (200, 500), (500, 500), (500, 784)]
Z_DIM = 10        # encoder bottleneck width
LABEL_DIM = 10    # label width concatenated before the decoder
IN_DIM = 784
OUT_DIM = 784
Z_PAD = 128       # bottleneck lane-padding (10 -> 128); label lives in lanes 10..19

# Lane-dense (multiple-of-128 or full-dim) padded (K_pad, N_pad) per layer.
ENC_PAD = [(784, 512), (512, 512), (512, 256), (256, 128)]
DEC_PAD = [(128, 256), (256, 512), (512, 512), (512, 784)]


# ---------------------------------------------------------------------------
# Fused kernel: whole AE forward, everything resident in VMEM
# ---------------------------------------------------------------------------

def _ae_fused_kernel(x_ref, zlab_ref, *refs):
    """refs = 8 x (w_q, scale, bias) followed by (recon_ref, z_ref)."""
    recon_ref, z_ref = refs[-2], refs[-1]
    prefs = refs[:-2]
    layers = [prefs[i:i + 3] for i in range(0, len(prefs), 3)]
    bf16 = jnp.bfloat16

    def qdense(h, layer):
        w_ref, s_ref, b_ref = layer
        # Quantized weight tile -> bf16 (exact for int8), MXU matmul with f32
        # accumulate; per-output-channel dequant scale folded into the epilogue.
        acc = jnp.dot(h.astype(bf16), w_ref[...].astype(bf16),
                      preferred_element_type=jnp.float32)
        return acc * s_ref[...] + b_ref[...]

    # ---------------- encoder: (Linear, ReLU) x3 + Linear ----------------
    h = x_ref[...]                                   # (B, 784) bf16
    for layer in layers[:3]:
        h = jnp.maximum(qdense(h, layer), 0.0)
    zp = qdense(h, layers[3])                        # (B, 128) f32; cols >= 10 padded
    z_ref[...] = zp[:, :Z_DIM].astype(z_ref.dtype)

    # ---------------- decoder ----------------
    # cat([z, label], 1): zero lanes >= 10 of zp (defensive mask) and add the
    # label slab that the wrapper pre-placed in lanes 10..19.  Decoder layer 0
    # then runs as a single (128, 256) GEMM — no split GEMM, no f32 matmul.
    col = jax.lax.broadcasted_iota(jnp.int32, zp.shape, 1)
    h = jnp.where(col < Z_DIM, zp, 0.0) + zlab_ref[...]
    for layer in layers[4:7]:
        h = jnp.maximum(qdense(h, layer), 0.0)
    recon_ref[...] = jax.nn.sigmoid(qdense(h, layers[7])).astype(recon_ref.dtype)


# ---------------------------------------------------------------------------
# Wrapper
# ---------------------------------------------------------------------------

def ae_forward(kernel_params, x, label, *, batch_tile=128):
    """recon, z = AE(x, label) — one fused Pallas kernel call."""
    B = x.shape[0]
    x_bf16 = x.astype(jnp.bfloat16)
    # Label pre-placed in lanes [Z_DIM, Z_DIM+LABEL_DIM) of a zero (B, 128) slab.
    zlab = jnp.zeros((B, Z_PAD), jnp.float32)
    zlab = zlab.at[:, Z_DIM:Z_DIM + LABEL_DIM].set(label.astype(jnp.float32))

    # Advisory cost estimate: weight bytes dominate at small batch.
    flops = 2 * B * sum(k * n for k, n in ENC_PAD + DEC_PAD)
    param_bytes = sum(int(p.size) * p.dtype.itemsize for p in kernel_params)
    bytes_accessed = (param_bytes + x_bf16.size * 2 + zlab.size * 4
                      + B * OUT_DIM * 4 + B * Z_DIM * 4)
    cost = pl.CostEstimate(flops=int(flops), transcendentals=int(B * OUT_DIM),
                           bytes_accessed=int(bytes_accessed))

    if B <= batch_tile:
        # Latency path: no grid, every operand is a whole-array VMEM block.
        vmem = pl.BlockSpec(memory_space=pltpu.MemorySpace.VMEM)
        n_in = 2 + len(kernel_params)
        recon, z = pl.pallas_call(
            _ae_fused_kernel,
            out_shape=(jax.ShapeDtypeStruct((B, OUT_DIM), jnp.float32),
                       jax.ShapeDtypeStruct((B, Z_DIM), jnp.float32)),
            in_specs=[vmem] * n_in,
            out_specs=(vmem, vmem),
            cost_estimate=cost,
        )(x_bf16, zlab, *kernel_params)
        return recon, z

    # Throughput path: batch-tiled grid; weights get constant index_maps so
    # Pallas keeps them resident (no re-DMA between batch tiles).
    bt = batch_tile
    n_steps = pl.cdiv(B, bt)
    Bp = n_steps * bt
    if Bp != B:
        x_bf16 = jnp.pad(x_bf16, ((0, Bp - B), (0, 0)))
        zlab = jnp.pad(zlab, ((0, Bp - B), (0, 0)))

    row = lambda i: (i, 0)
    const = lambda i: (0, 0)
    in_specs = [pl.BlockSpec((bt, IN_DIM), row), pl.BlockSpec((bt, Z_PAD), row)]
    in_specs += [pl.BlockSpec(p.shape, const) for p in kernel_params]
    out_specs = (pl.BlockSpec((bt, OUT_DIM), row), pl.BlockSpec((bt, Z_DIM), row))

    recon, z = pl.pallas_call(
        _ae_fused_kernel,
        out_shape=(jax.ShapeDtypeStruct((Bp, OUT_DIM), jnp.float32),
                   jax.ShapeDtypeStruct((Bp, Z_DIM), jnp.float32)),
        grid=(n_steps,),
        in_specs=in_specs,
        out_specs=out_specs,
        cost_estimate=cost,
        # TODO(synk): flip to "parallel" on v7x once per-TC compute > weight DMA
        # (each TC would need its own VMEM copy of the weights).
        compiler_params=pltpu.CompilerParams(dimension_semantics=("arbitrary",)),
    )(x_bf16, zlab, *kernel_params)
    return recon[:B], z[:B]


# ---------------------------------------------------------------------------
# Parameter construction / preparation
# ---------------------------------------------------------------------------

def init_raw_params(key):
    """Deterministic PyTorch-Linear-style uniform init; weights are (in, out) f32."""
    params = {"encoder": [], "decoder": []}
    for name, dims in (("encoder", ENCODER_DIMS), ("decoder", DECODER_DIMS)):
        for fan_in, fan_out in dims:
            key, kw, kb = jax.random.split(key, 3)
            bound = 1.0 / (fan_in ** 0.5)
            w = jax.random.uniform(kw, (fan_in, fan_out), jnp.float32, -bound, bound)
            b = jax.random.uniform(kb, (fan_out,), jnp.float32, -bound, bound)
            params[name].append((w, b))
    return params


def prepare_params(raw, quant_dtype=jnp.int8):
    """Per-output-channel weight quantization + zero-padding to lane-dense shapes.

    quant_dtype: jnp.int8 (v5e/v6e default), jnp.float8_e4m3fn (v7x: fp8 MXU,
    no integer MXU), or jnp.bfloat16 (no quantization, 2x weight DMA).
    Returns the flat tuple (w0,s0,b0, ..., w7,s7,b7) of kernel operands.
    """
    qdt = jnp.dtype(quant_dtype)
    ops = []
    for (w, b), (k_pad, n_pad) in zip(raw["encoder"] + raw["decoder"],
                                      ENC_PAD + DEC_PAD):
        kk, nn = w.shape
        if qdt == jnp.dtype(jnp.bfloat16):
            scale = jnp.ones((nn,), jnp.float32)
            wq = w.astype(qdt)
        else:
            amax = jnp.max(jnp.abs(w), axis=0)
            qmax = 127.0 if jnp.issubdtype(qdt, jnp.integer) else float(jnp.finfo(qdt).max)
            scale = jnp.where(amax > 0.0, amax / qmax, 1.0).astype(jnp.float32)
            wq = w / scale[None, :]
            if jnp.issubdtype(qdt, jnp.integer):
                wq = jnp.clip(jnp.round(wq), -qmax, qmax)
            wq = wq.astype(qdt)
        wq_p = jnp.zeros((k_pad, n_pad), qdt).at[:kk, :nn].set(wq)
        s_p = jnp.ones((1, n_pad), jnp.float32).at[0, :nn].set(scale)
        b_p = jnp.zeros((1, n_pad), jnp.float32).at[0, :nn].set(b)
        ops.extend([wq_p, s_p, b_p])
    return tuple(ops)


# ---------------------------------------------------------------------------
# Pure-JAX reference (original f32 module semantics) for a sanity check
# ---------------------------------------------------------------------------

def reference_forward(raw, x, label):
    h = x
    n_enc = len(raw["encoder"])
    for i, (w, b) in enumerate(raw["encoder"]):
        h = h @ w + b
        if i < n_enc - 1:
            h = jnp.maximum(h, 0.0)
    z = h
    h = jnp.concatenate([z, label], axis=1)
    n_dec = len(raw["decoder"])
    for i, (w, b) in enumerate(raw["decoder"]):
        h = h @ w + b
        h = jnp.maximum(h, 0.0) if i < n_dec - 1 else jax.nn.sigmoid(h)
    return h, z


if __name__ == "__main__":
    key = jax.random.PRNGKey(0)
    kp, kx, kl = jax.random.split(key, 3)

    raw_params = init_raw_params(kp)
    kernel_params = prepare_params(raw_params)      # int8 weights + f32 scales/biases

    batch = 8
    x = jax.random.normal(kx, (batch, IN_DIM), jnp.float32)
    label = jax.random.normal(kl, (batch, LABEL_DIM), jnp.float32)

    recon, z = jax.jit(ae_forward)(kernel_params, x, label)
    jax.block_until_ready((recon, z))

    assert recon.shape == (batch, OUT_DIM), recon.shape
    assert z.shape == (batch, Z_DIM), z.shape
    assert bool(jnp.all(jnp.isfinite(recon))) and bool(jnp.all(jnp.isfinite(z)))
    # sigmoid output must lie in [0, 1]
    assert bool(jnp.all(recon >= 0.0)) and bool(jnp.all(recon <= 1.0))

    # Compare against the pure-f32 reference (int8 weights + bf16 activations
    # => loose tolerance; pass quant_dtype=jnp.bfloat16 for tighter parity).
    recon_r, z_r = reference_forward(raw_params, x, label)
    z_err = float(jnp.max(jnp.abs(z - z_r)))
    r_err = float(jnp.max(jnp.abs(recon - recon_r)))
    assert z_err < 1e-1, z_err
    assert r_err < 5e-2, r_err

    print("KERNEL_OK")
</pallas_src>

<mosaic_0001>
module attributes {stable_mosaic.version = 11 : i64} {
  func.func @_ae_fused_kernel(%arg0: memref<8x784xbf16, #tpu.memory_space<vmem>>, %arg1: memref<8x128xf32, #tpu.memory_space<vmem>>, %arg2: memref<784x512xi8, #tpu.memory_space<vmem>>, %arg3: memref<1x512xf32, #tpu.memory_space<vmem>>, %arg4: memref<1x512xf32, #tpu.memory_space<vmem>>, %arg5: memref<512x512xi8, #tpu.memory_space<vmem>>, %arg6: memref<1x512xf32, #tpu.memory_space<vmem>>, %arg7: memref<1x512xf32, #tpu.memory_space<vmem>>, %arg8: memref<512x256xi8, #tpu.memory_space<vmem>>, %arg9: memref<1x256xf32, #tpu.memory_space<vmem>>, %arg10: memref<1x256xf32, #tpu.memory_space<vmem>>, %arg11: memref<256x128xi8, #tpu.memory_space<vmem>>, %arg12: memref<1x128xf32, #tpu.memory_space<vmem>>, %arg13: memref<1x128xf32, #tpu.memory_space<vmem>>, %arg14: memref<128x256xi8, #tpu.memory_space<vmem>>, %arg15: memref<1x256xf32, #tpu.memory_space<vmem>>, %arg16: memref<1x256xf32, #tpu.memory_space<vmem>>, %arg17: memref<256x512xi8, #tpu.memory_space<vmem>>, %arg18: memref<1x512xf32, #tpu.memory_space<vmem>>, %arg19: memref<1x512xf32, #tpu.memory_space<vmem>>, %arg20: memref<512x512xi8, #tpu.memory_space<vmem>>, %arg21: memref<1x512xf32, #tpu.memory_space<vmem>>, %arg22: memref<1x512xf32, #tpu.memory_space<vmem>>, %arg23: memref<512x784xi8, #tpu.memory_space<vmem>>, %arg24: memref<1x784xf32, #tpu.memory_space<vmem>>, %arg25: memref<1x784xf32, #tpu.memory_space<vmem>>, %arg26: memref<8x784xf32, #tpu.memory_space<vmem>>, %arg27: memref<8x10xf32, #tpu.memory_space<vmem>>) attributes {dimension_semantics = [], scalar_prefetch = 0 : i64, scratch_operands = 0 : i64, tpu.core_type = #tpu.core_type<tc>} {
    %c0 = arith.constant 0 : index
    %c0_0 = arith.constant 0 : index
    %0 = vector.load %arg0[%c0, %c0_0] : memref<8x784xbf16, #tpu.memory_space<vmem>>, vector<8x784xbf16>
    %c0_1 = arith.constant 0 : index
    %c0_2 = arith.constant 0 : index
    %1 = vector.load %arg2[%c0_1, %c0_2] : memref<784x512xi8, #tpu.memory_space<vmem>>, vector<784x512xi8>
    %2 = arith.sitofp %1 : vector<784x512xi8> to vector<784x512xbf16>
    %cst = arith.constant dense<0.000000e+00> : vector<8x512xf32>
    %3 = tpu.matmul %0, %2, %cst {dimension_numbers = #tpu.dot_dimension_numbers<[1], [0], [0], [1], [0, 0, 1, 1], [], []>} : vector<8x784xbf16>, vector<784x512xbf16>, vector<8x512xf32> -> vector<8x512xf32>
    %c0_3 = arith.constant 0 : index
    %c0_4 = arith.constant 0 : index
    %4 = vector.load %arg3[%c0_3, %c0_4] : memref<1x512xf32, #tpu.memory_space<vmem>>, vector<1x512xf32>
    %5 = vector.broadcast %4 : vector<1x512xf32> to vector<8x512xf32>
    %6 = arith.mulf %3, %5 : vector<8x512xf32>
    %c0_5 = arith.constant 0 : index
    %c0_6 = arith.constant 0 : index
    %7 = vector.load %arg4[%c0_5, %c0_6] : memref<1x512xf32, #tpu.memory_space<vmem>>, vector<1x512xf32>
    %8 = vector.broadcast %7 : vector<1x512xf32> to vector<8x512xf32>
    %9 = arith.addf %6, %8 : vector<8x512xf32>
    %cst_7 = arith.constant 0.000000e+00 : f32
    %10 = vector.broadcast %cst_7 : f32 to vector<8x512xf32>
    %11 = arith.maximumf %9, %10 : vector<8x512xf32>
    %12 = arith.truncf %11 : vector<8x512xf32> to vector<8x512xbf16>
    %c0_8 = arith.constant 0 : index
    %c0_9 = arith.constant 0 : index
    %13 = vector.load %arg5[%c0_8, %c0_9] : memref<512x512xi8, #tpu.memory_space<vmem>>, vector<512x512xi8>
    %14 = arith.sitofp %13 : vector<512x512xi8> to vector<512x512xbf16>
    %cst_10 = arith.constant dense<0.000000e+00> : vector<8x512xf32>
    %15 = tpu.matmul %12, %14, %cst_10 {dimension_numbers = #tpu.dot_dimension_numbers<[1], [0], [0], [1], [0, 0, 1, 1], [], []>} : vector<8x512xbf16>, vector<512x512xbf16>, vector<8x512xf32> -> vector<8x512xf32>
    %c0_11 = arith.constant 0 : index
    %c0_12 = arith.constant 0 : index
    %16 = vector.load %arg6[%c0_11, %c0_12] : memref<1x512xf32, #tpu.memory_space<vmem>>, vector<1x512xf32>
    %17 = vector.broadcast %16 : vector<1x512xf32> to vector<8x512xf32>
    %18 = arith.mulf %15, %17 : vector<8x512xf32>
    %c0_13 = arith.constant 0 : index
    %c0_14 = arith.constant 0 : index
    %19 = vector.load %arg7[%c0_13, %c0_14] : memref<1x512xf32, #tpu.memory_space<vmem>>, vector<1x512xf32>
    %20 = vector.broadcast %19 : vector<1x512xf32> to vector<8x512xf32>
    %21 = arith.addf %18, %20 : vector<8x512xf32>
    %cst_15 = arith.constant 0.000000e+00 : f32
    %22 = vector.broadcast %cst_15 : f32 to vector<8x512xf32>
    %23 = arith.maximumf %21, %22 : vector<8x512xf32>
    %24 = arith.truncf %23 : vector<8x512xf32> to vector<8x512xbf16>
    %c0_16 = arith.constant 0 : index
    %c0_17 = arith.constant 0 : index
    %25 = vector.load %arg8[%c0_16, %c0_17] : memref<512x256xi8, #tpu.memory_space<vmem>>, vector<512x256xi8>
    %26 = arith.sitofp %25 : vector<512x256xi8> to vector<512x256xbf16>
    %cst_18 = arith.constant dense<0.000000e+00> : vector<8x256xf32>
    %27 = tpu.matmul %24, %26, %cst_18 {dimension_numbers = #tpu.dot_dimension_numbers<[1], [0], [0], [1], [0, 0, 1, 1], [], []>} : vector<8x512xbf16>, vector<512x256xbf16>, vector<8x256xf32> -> vector<8x256xf32>
    %c0_19 = arith.constant 0 : index
    %c0_20 = arith.constant 0 : index
    %28 = vector.load %arg9[%c0_19, %c0_20] : memref<1x256xf32, #tpu.memory_space<vmem>>, vector<1x256xf32>
    %29 = vector.broadcast %28 : vector<1x256xf32> to vector<8x256xf32>
    %30 = arith.mulf %27, %29 : vector<8x256xf32>
    %c0_21 = arith.constant 0 : index
    %c0_22 = arith.constant 0 : index
    %31 = vector.load %arg10[%c0_21, %c0_22] : memref<1x256xf32, #tpu.memory_space<vmem>>, vector<1x256xf32>
    %32 = vector.broadcast %31 : vector<1x256xf32> to vector<8x256xf32>
    %33 = arith.addf %30, %32 : vector<8x256xf32>
    %cst_23 = arith.constant 0.000000e+00 : f32
    %34 = vector.broadcast %cst_23 : f32 to vector<8x256xf32>
    %35 = arith.maximumf %33, %34 : vector<8x256xf32>
    %36 = arith.truncf %35 : vector<8x256xf32> to vector<8x256xbf16>
    %c0_24 = arith.constant 0 : index
    %c0_25 = arith.constant 0 : index
    %37 = vector.load %arg11[%c0_24, %c0_25] : memref<256x128xi8, #tpu.memory_space<vmem>>, vector<256x128xi8>
    %38 = arith.sitofp %37 : vector<256x128xi8> to vector<256x128xbf16>
    %cst_26 = arith.constant dense<0.000000e+00> : vector<8x128xf32>
    %39 = tpu.matmul %36, %38, %cst_26 {dimension_numbers = #tpu.dot_dimension_numbers<[1], [0], [0], [1], [0, 0, 1, 1], [], []>} : vector<8x256xbf16>, vector<256x128xbf16>, vector<8x128xf32> -> vector<8x128xf32>
    %c0_27 = arith.constant 0 : index
    %c0_28 = arith.constant 0 : index
    %40 = vector.load %arg12[%c0_27, %c0_28] : memref<1x128xf32, #tpu.memory_space<vmem>>, vector<1x128xf32>
    %41 = vector.broadcast %40 : vector<1x128xf32> to vector<8x128xf32>
    %42 = arith.mulf %39, %41 : vector<8x128xf32>
    %c0_29 = arith.constant 0 : index
    %c0_30 = arith.constant 0 : index
    %43 = vector.load %arg13[%c0_29, %c0_30] : memref<1x128xf32, #tpu.memory_space<vmem>>, vector<1x128xf32>
    %44 = vector.broadcast %43 : vector<1x128xf32> to vector<8x128xf32>
    %45 = arith.addf %42, %44 : vector<8x128xf32>
    %46 = vector.extract_strided_slice %45 {offsets = [0, 0], sizes = [8, 10], strides = [1, 1]} : vector<8x128xf32> to vector<8x10xf32>
    %c0_31 = arith.constant 0 : index
    %c0_32 = arith.constant 0 : index
    %47 = vector.load %arg27[%c0_31, %c0_32] : memref<8x10xf32, #tpu.memory_space<vmem>>, vector<8x10xf32>
    tpu.vector_store %arg27[%c0_31, %c0_32], %46 {strides = array<i32>} : memref<8x10xf32, #tpu.memory_space<vmem>>, vector<8x10xf32>,
    %48 = tpu.iota {dimensions = array<i32: 1>} : vector<8x128xi32>
    %c10_i32 = arith.constant 10 : i32
    %49 = vector.broadcast %c10_i32 : i32 to vector<8x128xi32>
    %50 = arith.cmpi slt, %48, %49 : vector<8x128xi32>
    %cst_33 = arith.constant 0.000000e+00 : f32
    %51 = vector.broadcast %cst_33 : f32 to vector<8x128xf32>
    %52 = arith.select %50, %45, %51 : vector<8x128xi1>, vector<8x128xf32>
    %c0_34 = arith.constant 0 : index
    %c0_35 = arith.constant 0 : index
    %53 = vector.load %arg1[%c0_34, %c0_35] : memref<8x128xf32, #tpu.memory_space<vmem>>, vector<8x128xf32>
    %54 = arith.addf %52, %53 : vector<8x128xf32>
    %55 = arith.truncf %54 : vector<8x128xf32> to vector<8x128xbf16>
    %c0_36 = arith.constant 0 : index
    %c0_37 = arith.constant 0 : index
    %56 = vector.load %arg14[%c0_36, %c0_37] : memref<128x256xi8, #tpu.memory_space<vmem>>, vector<128x256xi8>
    %57 = arith.sitofp %56 : vector<128x256xi8> to vector<128x256xbf16>
    %cst_38 = arith.constant dense<0.000000e+00> : vector<8x256xf32>
    %58 = tpu.matmul %55, %57, %cst_38 {dimension_numbers = #tpu.dot_dimension_numbers<[1], [0], [0], [1], [0, 0, 1, 1], [], []>} : vector<8x128xbf16>, vector<128x256xbf16>, vector<8x256xf32> -> vector<8x256xf32>
    %c0_39 = arith.constant 0 : index
    %c0_40 = arith.constant 0 : index
    %59 = vector.load %arg15[%c0_39, %c0_40] : memref<1x256xf32, #tpu.memory_space<vmem>>, vector<1x256xf32>
    %60 = vector.broadcast %59 : vector<1x256xf32> to vector<8x256xf32>
    %61 = arith.mulf %58, %60 : vector<8x256xf32>
    %c0_41 = arith.constant 0 : index
    %c0_42 = arith.constant 0 : index
    %62 = vector.load %arg16[%c0_41, %c0_42] : memref<1x256xf32, #tpu.memory_space<vmem>>, vector<1x256xf32>
    %63 = vector.broadcast %62 : vector<1x256xf32> to vector<8x256xf32>
    %64 = arith.addf %61, %63 : vector<8x256xf32>
    %cst_43 = arith.constant 0.000000e+00 : f32
    %65 = vector.broadcast %cst_43 : f32 to vector<8x256xf32>
    %66 = arith.maximumf %64, %65 : vector<8x256xf32>
    %67 = arith.truncf %66 : vector<8x256xf32> to vector<8x256xbf16>
    %c0_44 = arith.constant 0 : index
    %c0_45 = arith.constant 0 : index
    %68 = vector.load %arg17[%c0_44, %c0_45] : memref<256x512xi8, #tpu.memory_space<vmem>>, vector<256x512xi8>
    %69 = arith.sitofp %68 : vector<256x512xi8> to vector<256x512xbf16>
    %cst_46 = arith.constant dense<0.000000e+00> : vector<8x512xf32>
    %70 = tpu.matmul %67, %69, %cst_46 {dimension_numbers = #tpu.dot_dimension_numbers<[1], [0], [0], [1], [0, 0, 1, 1], [], []>} : vector<8x256xbf16>, vector<256x512xbf16>, vector<8x512xf32> -> vector<8x512xf32>
    %c0_47 = arith.constant 0 : index
    %c0_48 = arith.constant 0 : index
    %71 = vector.load %arg18[%c0_47, %c0_48] : memref<1x512xf32, #tpu.memory_space<vmem>>, vector<1x512xf32>
    %72 = vector.broadcast %71 : vector<1x512xf32> to vector<8x512xf32>
    %73 = arith.mulf %70, %72 : vector<8x512xf32>
    %c0_49 = arith.constant 0 : index
    %c0_50 = arith.constant 0 : index
    %74 = vector.load %arg19[%c0_49, %c0_50] : memref<1x512xf32, #tpu.memory_space<vmem>>, vector<1x512xf32>
    %75 = vector.broadcast %74 : vector<1x512xf32> to vector<8x512xf32>
    %76 = arith.addf %73, %75 : vector<8x512xf32>
    %cst_51 = arith.constant 0.000000e+00 : f32
    %77 = vector.broadcast %cst_51 : f32 to vector<8x512xf32>
    %78 = arith.maximumf %76, %77 : vector<8x512xf32>
    %79 = arith.truncf %78 : vector<8x512xf32> to vector<8x512xbf16>
    %c0_52 = arith.constant 0 : index
    %c0_53 = arith.constant 0 : index
    %80 = vector.load %arg20[%c0_52, %c0_53] : memref<512x512xi8, #tpu.memory_space<vmem>>, vector<512x512xi8>
    %81 = arith.sitofp %80 : vector<512x512xi8> to vector<512x512xbf16>
    %cst_54 = arith.constant dense<0.000000e+00> : vector<8x512xf32>
    %82 = tpu.matmul %79, %81, %cst_54 {dimension_numbers = #tpu.dot_dimension_numbers<[1], [0], [0], [1], [0, 0, 1, 1], [], []>} : vector<8x512xbf16>, vector<512x512xbf16>, vector<8x512xf32> -> vector<8x512xf32>
    %c0_55 = arith.constant 0 : index
    %c0_56 = arith.constant 0 : index
    %83 = vector.load %arg21[%c0_55, %c0_56] : memref<1x512xf32, #tpu.memory_space<vmem>>, vector<1x512xf32>
    %84 = vector.broadcast %83 : vector<1x512xf32> to vector<8x512xf32>
    %85 = arith.mulf %82, %84 : vector<8x512xf32>
    %c0_57 = arith.constant 0 : index
    %c0_58 = arith.constant 0 : index
    %86 = vector.load %arg22[%c0_57, %c0_58] : memref<1x512xf32, #tpu.memory_space<vmem>>, vector<1x512xf32>
    %87 = vector.broadcast %86 : vector<1x512xf32> to vector<8x512xf32>
    %88 = arith.addf %85, %87 : vector<8x512xf32>
    %cst_59 = arith.constant 0.000000e+00 : f32
    %89 = vector.broadcast %cst_59 : f32 to vector<8x512xf32>
    %90 = arith.maximumf %88, %89 : vector<8x512xf32>
    %91 = arith.truncf %90 : vector<8x512xf32> to vector<8x512xbf16>
    %c0_60 = arith.constant 0 : index
    %c0_61 = arith.constant 0 : index
    %92 = vector.load %arg23[%c0_60, %c0_61] : memref<512x784xi8, #tpu.memory_space<vmem>>, vector<512x784xi8>
    %93 = arith.sitofp %92 : vector<512x784xi8> to vector<512x784xbf16>
    %cst_62 = arith.constant dense<0.000000e+00> : vector<8x784xf32>
    %94 = tpu.matmul %91, %93, %cst_62 {dimension_numbers = #tpu.dot_dimension_numbers<[1], [0], [0], [1], [0, 0, 1, 1], [], []>} : vector<8x512xbf16>, vector<512x784xbf16>, vector<8x784xf32> -> vector<8x784xf32>
    %c0_63 = arith.constant 0 : index
    %c0_64 = arith.constant 0 : index
    %95 = vector.load %arg24[%c0_63, %c0_64] : memref<1x784xf32, #tpu.memory_space<vmem>>, vector<1x784xf32>
    %96 = vector.broadcast %95 : vector<1x784xf32> to vector<8x784xf32>
    %97 = arith.mulf %94, %96 : vector<8x784xf32>
    %c0_65 = arith.constant 0 : index
    %c0_66 = arith.constant 0 : index
    %98 = vector.load %arg25[%c0_65, %c0_66] : memref<1x784xf32, #tpu.memory_space<vmem>>, vector<1x784xf32>
    %99 = vector.broadcast %98 : vector<1x784xf32> to vector<8x784xf32>
    %100 = arith.addf %97, %99 : vector<8x784xf32>
    %101 = arith.negf %100 : vector<8x784xf32>
    %102 = math.exp %101 : vector<8x784xf32>
    %cst_67 = arith.constant 1.000000e+00 : f32
    %103 = vector.broadcast %cst_67 : f32 to vector<8x784xf32>
    %104 = arith.addf %103, %102 : vector<8x784xf32>
    %105 = arith.divf %103, %104 : vector<8x784xf32>
    %c0_68 = arith.constant 0 : index
    %c0_69 = arith.constant 0 : index
    %106 = vector.load %arg26[%c0_68, %c0_69] : memref<8x784xf32, #tpu.memory_space<vmem>>, vector<8x784xf32>
    tpu.vector_store %arg26[%c0_68, %c0_69], %105 {strides = array<i32>} : memref<8x784xf32, #tpu.memory_space<vmem>>, vector<8x784xf32>,
    return
  }
}

</mosaic_0001>

<llo_original>
// kernel: ae_forward.1
$region0: #{ae_forward.1}
  #allocation0 [shape = 'u32[]', space=smem, size = 0x4, offset = 0x4, fixed_abs, tag = 'smem constant byte address 0x4 - core index']
  #allocation1 [shape = 'u32[144,128]{1,0:T(1,128)}', space=vmem, size = 0x12000, scoped, tag = 'internal scratch']
  %s0 = inlined_call_operand.vmem [shape: bf16[8,784], index: 0, kind: input, shape index: {}]
  %s1 = inlined_call_operand.vmem [shape: f32[8,128], index: 1, kind: input, shape index: {}]
  %s2 = inlined_call_operand.vmem [shape: s8[784,512], index: 2, kind: input, shape index: {}]
  %s3 = inlined_call_operand.vmem [shape: f32[1,512], index: 3, kind: input, shape index: {}]
  %s4 = inlined_call_operand.hbm [shape: f32[1,512], index: 4, kind: input, shape index: {}]
  %s5 = inlined_call_operand.vmem [shape: s8[512,512], index: 5, kind: input, shape index: {}]
  %s6 = inlined_call_operand.hbm [shape: f32[1,512], index: 6, kind: input, shape index: {}]
  %s7 = inlined_call_operand.hbm [shape: f32[1,512], index: 7, kind: input, shape index: {}]
  %s8 = inlined_call_operand.hbm [shape: s8[512,256], index: 8, kind: input, shape index: {}]
  %s9 = inlined_call_operand.hbm [shape: f32[1,256], index: 9, kind: input, shape index: {}]
  %s10 = inlined_call_operand.hbm [shape: f32[1,256], index: 10, kind: input, shape index: {}]
  %s11 = inlined_call_operand.hbm [shape: s8[256,128], index: 11, kind: input, shape index: {}]
  %s12 = inlined_call_operand.vmem [shape: f32[1,128], index: 12, kind: input, shape index: {}]
  %s13 = inlined_call_operand.hbm [shape: f32[1,128], index: 13, kind: input, shape index: {}]
  %s14 = inlined_call_operand.hbm [shape: s8[128,256], index: 14, kind: input, shape index: {}]
  %s15 = inlined_call_operand.hbm [shape: f32[1,256], index: 15, kind: input, shape index: {}]
  %s16 = inlined_call_operand.hbm [shape: f32[1,256], index: 16, kind: input, shape index: {}]
  %s17 = inlined_call_operand.hbm [shape: s8[256,512], index: 17, kind: input, shape index: {}]
  %s18 = inlined_call_operand.hbm [shape: f32[1,512], index: 18, kind: input, shape index: {}]
  %s19 = inlined_call_operand.hbm [shape: f32[1,512], index: 19, kind: input, shape index: {}]
  %s20 = inlined_call_operand.vmem [shape: s8[512,512], index: 20, kind: input, shape index: {}]
  %s21 = inlined_call_operand.hbm [shape: f32[1,512], index: 21, kind: input, shape index: {}]
  %s22 = inlined_call_operand.hbm [shape: f32[1,512], index: 22, kind: input, shape index: {}]
  %s23 = inlined_call_operand.vmem [shape: s8[512,784], index: 23, kind: input, shape index: {}]
  %s24 = inlined_call_operand.hbm [shape: f32[1,784], index: 24, kind: input, shape index: {}]
  %s25 = inlined_call_operand.hbm [shape: f32[1,784], index: 25, kind: input, shape index: {}]
  %s26 = inlined_call_operand.hbm [shape: f32[8,784], index: 26, kind: output, shape index: {0}]
  %s27 = inlined_call_operand.hbm [shape: f32[8,10], index: 27, kind: output, shape index: {1}]
  %28 = xla_tuple %s26, %s27
  %s29 = sld [smem:[#allocation0]]
  $region194: #{ae_forward.1} parent=0
    _
  %s31 = ssub.s32 1, %s29
  %s32 = scalar_select 0, %s31, %s29
  $region1: #{ae_forward.1} parent=0
    #allocation2 [shape = 'u8[2048]{0}', space=vmem, size = 0x800, scoped, tag = 'input window, operand 4, single buffered']
    #allocation3 [shape = 's32[1]{0}', space=sflag, size = 0x4, scoped, tag = 'scoped memory for ae_forward.1']
    #allocation4 [shape = 's32[1]{0}', space=sflag, size = 0x4, scoped, tag = 'scoped memory for ae_forward.1']
    #allocation5 [shape = 'u8[2048]{0}', space=vmem, size = 0x800, scoped, tag = 'input window, operand 6, single buffered']
    #allocation6 [shape = 's32[1]{0}', space=sflag, size = 0x4, scoped, tag = 'scoped memory for ae_forward.1']
    #allocation7 [shape = 'u8[2048]{0}', space=vmem, size = 0x800, scoped, tag = 'input window, operand 7, single buffered']
    #allocation8 [shape = 'u8[131072]{0}', space=vmem, size = 0x20000, scoped, tag = 'input window, operand 8, single buffered']
    #allocation9 [shape = 's32[1]{0}', space=sflag, size = 0x4, scoped, tag = 'scoped memory for ae_forward.1']
    #allocation10 [shape = 'u8[1024]{0}', space=vmem, size = 0x400, scoped, tag = 'input window, operand 9, single buffered']
    #allocation11 [shape = 'u8[1024]{0}', space=vmem, size = 0x400, scoped, tag = 'input window, operand 10, single buffered']
    #allocation12 [shape = 's32[1]{0}', space=sflag, size = 0x4, scoped, tag = 'scoped memory for ae_forward.1']
    #allocation13 [shape = 'u8[32768]{0}', space=vmem, size = 0x8000, scoped, tag = 'input window, operand 11, single buffered']
    #allocation14 [shape = 'u8[512]{0}', space=vmem, size = 0x400, scoped, tag = 'input window, operand 13, single buffered']
    #allocation15 [shape = 's32[1]{0}', space=sflag, size = 0x4, scoped, tag = 'scoped memory for ae_forward.1']
    #allocation16 [shape = 'u8[32768]{0}', space=vmem, size = 0x8000, scoped, tag = 'input window, operand 14, single buffered']
    #allocation17 [shape = 'u8[1024]{0}', space=vmem, size = 0x400, scoped, tag = 'input window, operand 15, single buffered']
    #allocation18 [shape = 's32[1]{0}', space=sflag, size = 0x4, scoped, tag = 'scoped memory for ae_forward.1']
    #allocation19 [shape = 'u8[1024]{0}', space=vmem, size = 0x400, scoped, tag = 'input window, operand 16, single buffered']
    #allocation20 [shape = 'u8[131072]{0}', space=vmem, size = 0x20000, scoped, tag = 'input window, operand 17, single buffered']
    #allocation21 [shape = 's32[1]{0}', space=sflag, size = 0x4, scoped, tag = 'scoped memory for ae_forward.1']
    #allocation22 [shape = 'u8[2048]{0}', space=vmem, size = 0x800, scoped, tag = 'input window, operand 18, single buffered']
    #allocation23 [shape = 'u8[2048]{0}', space=vmem, size = 0x800, scoped, tag = 'input window, operand 19, single buffered']
    #allocation24 [shape = 's32[1]{0}', space=sflag, size = 0x4, scoped, tag = 'scoped memory for ae_forward.1']
    #allocation25 [shape = 'u8[2048]{0}', space=vmem, size = 0x800, scoped, tag = 'input window, operand 21, single buffered']
    #allocation26 [shape = 'u8[2048]{0}', space=vmem, size = 0x800, scoped, tag = 'input window, operand 22, single buffered']
    #allocation27 [shape = 's32[1]{0}', space=sflag, size = 0x4, scoped, tag = 'scoped memory for ae_forward.1']
    #allocation28 [shape = 'u8[3584]{0}', space=vmem, size = 0x1000, scoped, tag = 'input window, operand 24, single buffered']
    #allocation29 [shape = 'u8[3584]{0}', space=vmem, size = 0x1000, scoped, tag = 'input window, operand 25, single buffered']
    #allocation30 [shape = 's32[1]{0}', space=sflag, size = 0x4, scoped, tag = 'scoped memory for ae_forward.1']
    #allocation31 [shape = 'u8[28672]{0}', space=vmem, size = 0x7000, scoped, tag = 'output window, operand 0, single buffered']
    #allocation32 [shape = 'u8[4096]{0}', space=vmem, size = 0x1000, scoped, tag = 'output window, operand 1, single buffered']
    #allocation33 [shape = 's32[1]{0}', space=sflag, size = 0x4, scoped, tag = 'scoped memory for ae_forward.1']
    %33 = vsyncpa [#allocation3], 0
    %34 = vsyncpa [#allocation6], 0
    %35 = vsyncpa [#allocation9], 0
    %36 = vsyncpa [#allocation12], 0
    %37 = vsyncpa [#allocation15], 0
    %38 = vsyncpa [#allocation18], 0
    %39 = vsyncpa [#allocation21], 0
    %40 = vsyncpa [#allocation24], 0
    %41 = vsyncpa [#allocation27], 0
    %42 = vsyncpa [#allocation30], 0
    %43 = vsyncpa [#allocation4], 0
    %44 = vsyncpa [#allocation33], 0
    // Predicated region
    $region2: #{ae_forward.1} parent=1 // pred_check
      _
    $region3: #{ae_forward.1} parent=1 // pred_check_branch
      %46 = sbr.rel (0) target = $region5
    $region4: #{ae_forward.1} parent=1 // pred_region
      _
    $region5: #{ae_forward.1} parent=1 // pred_fallthru
      _
    // Predicated region
    $region6: #{ae_forward.1} parent=1 // pred_check
      _
    $region7: #{ae_forward.1} parent=1 // pred_check_branch
      %48 = sbr.rel (0) target = $region9
    $region8: #{ae_forward.1} parent=1 // pred_region
      _
    $region9: #{ae_forward.1} parent=1 // pred_fallthru
      _
    // Predicated region
    $region10: #{ae_forward.1} parent=1 // pred_check
      _
    $region11: #{ae_forward.1} parent=1 // pred_check_branch
      %50 = sbr.rel (0) target = $region13
    $region12: #{ae_forward.1} parent=1 // pred_region
      _
    $region13: #{ae_forward.1} parent=1 // pred_fallthru
      _
    // Predicated region
    $region14: #{ae_forward.1} parent=1 // pred_check
      _
    $region15: #{ae_forward.1} parent=1 // pred_check_branch
      %52 = sbr.rel (0) target = $region17
    $region16: #{ae_forward.1} parent=1 // pred_region
      _
    $region17: #{ae_forward.1} parent=1 // pred_fallthru
      _
    // Predicated region
    $region18: #{ae_forward.1} parent=1 // pred_check
      _
    $region19: #{ae_forward.1} parent=1 // pred_check_branch
      %54 = sbr.rel (0) target = $region21
    $region20: #{ae_forward.1} parent=1 // pred_region
      %s56 = ssub.s32 64, 64
      %57 = vsyncadd [#allocation3], %s56
      %s59 = sshll.u32 [#allocation2], 4
      %s60 = int_to_ptr.vmem [resolvable:$true] %s59
      %62 = dma.hbm_to_vmem [thread:$0]  %s4, 64, %s60, [#allocation3]
    $region21: #{ae_forward.1} parent=1 // pred_fallthru
      _
    // Predicated region
    $region22: #{ae_forward.1} parent=1 // pred_check
      _
    $region23: #{ae_forward.1} parent=1 // pred_check_branch
      %64 = sbr.rel (0) target = $region25
    $region24: #{ae_forward.1} parent=1 // pred_region
      _
    $region25: #{ae_forward.1} parent=1 // pred_fallthru
      _
    // Predicated region
    $region26: #{ae_forward.1} parent=1 // pred_check
      _
    $region27: #{ae_forward.1} parent=1 // pred_check_branch
      %66 = sbr.rel (0) target = $region29
    $region28: #{ae_forward.1} parent=1 // pred_region
      %s68 = ssub.s32 64, 64
      %69 = vsyncadd [#allocation6], %s68
      %s71 = sshll.u32 [#allocation5], 4
      %s72 = int_to_ptr.vmem [resolvable:$true] %s71
      %74 = dma.hbm_to_vmem [thread:$0]  %s6, 64, %s72, [#allocation6]
    $region29: #{ae_forward.1} parent=1 // pred_fallthru
      _
    // Predicated region
    $region30: #{ae_forward.1} parent=1 // pred_check
      _
    $region31: #{ae_forward.1} parent=1 // pred_check_branch
      %76 = sbr.rel (0) target = $region33
    $region32: #{ae_forward.1} parent=1 // pred_region
      %s78 = ssub.s32 64, 64
      %79 = vsyncadd [#allocation6], %s78
      %s81 = sshll.u32 [#allocation7], 4
      %s82 = int_to_ptr.vmem [resolvable:$true] %s81
      %84 = dma.hbm_to_vmem [thread:$0]  %s7, 64, %s82, [#allocation6]
    $region33: #{ae_forward.1} parent=1 // pred_fallthru
      _
    // Predicated region
    $region34: #{ae_forward.1} parent=1 // pred_check
      _
    $region35: #{ae_forward.1} parent=1 // pred_check_branch
      %86 = sbr.rel (0) target = $region37
    $region36: #{ae_forward.1} parent=1 // pred_region
      %s88 = ssub.s32 4096, 4096
      %89 = vsyncadd [#allocation9], %s88
      %s90 = sshll.u32 [#allocation8], 4
      %s91 = int_to_ptr.vmem [resolvable:$true] %s90
      %96 = dma.hbm_to_vmem [thread:$0]  %s8, 4096, %s91, [#allocation9], 256, 256, 16
    $region37: #{ae_forward.1} parent=1 // pred_fallthru
      _
    // Predicated region
    $region38: #{ae_forward.1} parent=1 // pred_check
      _
    $region39: #{ae_forward.1} parent=1 // pred_check_branch
      %98 = sbr.rel (0) target = $region41
    $region40: #{ae_forward.1} parent=1 // pred_region
      %s100 = ssub.s32 32, 32
      %101 = vsyncadd [#allocation9], %s100
      %s103 = sshll.u32 [#allocation10], 4
      %s104 = int_to_ptr.vmem [resolvable:$true] %s103
      %106 = dma.hbm_to_vmem [thread:$0]  %s9, 32, %s104, [#allocation9]
    $region41: #{ae_forward.1} parent=1 // pred_fallthru
      _
    // Predicated region
    $region42: #{ae_forward.1} parent=1 // pred_check
      _
    $region43: #{ae_forward.1} parent=1 // pred_check_branch
      %108 = sbr.rel (0) target = $region45
    $region44: #{ae_forward.1} parent=1 // pred_region
      %s110 = ssub.s32 32, 32
      %111 = vsyncadd [#allocation12], %s110
      %s113 = sshll.u32 [#allocation11], 4
      %s114 = int_to_ptr.vmem [resolvable:$true] %s113
      %116 = dma.hbm_to_vmem [thread:$0]  %s10, 32, %s114, [#allocation12]
    $region45: #{ae_forward.1} parent=1 // pred_fallthru
      _
    // Predicated region
    $region46: #{ae_forward.1} parent=1 // pred_check
      _
    $region47: #{ae_forward.1} parent=1 // pred_check_branch
      %118 = sbr.rel (0) target = $region49
    $region48: #{ae_forward.1} parent=1 // pred_region
      %s120 = ssub.s32 1024, 1024
      %121 = vsyncadd [#allocation12], %s120
      %s122 = sshll.u32 [#allocation13], 4
      %s123 = int_to_ptr.vmem [resolvable:$true] %s122
      %128 = dma.hbm_to_vmem [thread:$0]  %s11, 1024, %s123, [#allocation12], 128, 128, 8
    $region49: #{ae_forward.1} parent=1 // pred_fallthru
      _
    // Predicated region
    $region50: #{ae_forward.1} parent=1 // pred_check
      _
    $region51: #{ae_forward.1} parent=1 // pred_check_branch
      %130 = sbr.rel (0) target = $region53
    $region52: #{ae_forward.1} parent=1 // pred_region
      _
    $region53: #{ae_forward.1} parent=1 // pred_fallthru
      _
    // Predicated region
    $region54: #{ae_forward.1} parent=1 // pred_check
      _
    $region55: #{ae_forward.1} parent=1 // pred_check_branch
      %132 = sbr.rel (0) target = $region57
    $region56: #{ae_forward.1} parent=1 // pred_region
      %s134 = ssub.s32 16, 16
      %135 = vsyncadd [#allocation15], %s134
      %s137 = sshll.u32 [#allocation14], 4
      %s138 = int_to_ptr.vmem [resolvable:$true] %s137
      %140 = dma.hbm_to_vmem [thread:$0]  %s13, 16, %s138, [#allocation15]
    $region57: #{ae_forward.1} parent=1 // pred_fallthru
      _
    // Predicated region
    $region58: #{ae_forward.1} parent=1 // pred_check
      _
    $region59: #{ae_forward.1} parent=1 // pred_check_branch
      %142 = sbr.rel (0) target = $region61
    $region60: #{ae_forward.1} parent=1 // pred_region
      %s144 = ssub.s32 1024, 1024
      %145 = vsyncadd [#allocation15], %s144
      %s146 = sshll.u32 [#allocation16], 4
      %s147 = int_to_ptr.vmem [resolvable:$true] %s146
      %152 = dma.hbm_to_vmem [thread:$0]  %s14, 1024, %s147, [#allocation15], 256, 256, 16
    $region61: #{ae_forward.1} parent=1 // pred_fallthru
      _
    // Predicated region
    $region62: #{ae_forward.1} parent=1 // pred_check
      _
    $region63: #{ae_forward.1} parent=1 // pred_check_branch
      %154 = sbr.rel (0) target = $region65
    $region64: #{ae_forward.1} parent=1 // pred_region
      %s156 = ssub.s32 32, 32
      %157 = vsyncadd [#allocation18], %s156
      %s159 = sshll.u32 [#allocation17], 4
      %s160 = int_to_ptr.vmem [resolvable:$true] %s159
      %162 = dma.hbm_to_vmem [thread:$0]  %s15, 32, %s160, [#allocation18]
    $region65: #{ae_forward.1} parent=1 // pred_fallthru
      _
    // Predicated region
    $region66: #{ae_forward.1} parent=1 // pred_check
      _
    $region67: #{ae_forward.1} parent=1 // pred_check_branch
      %164 = sbr.rel (0) target = $region69
    $region68: #{ae_forward.1} parent=1 // pred_region
      %s166 = ssub.s32 32, 32
      %167 = vsyncadd [#allocation18], %s166
      %s169 = sshll.u32 [#allocation19], 4
      %s170 = int_to_ptr.vmem [resolvable:$true] %s169
      %172 = dma.hbm_to_vmem [thread:$0]  %s16, 32, %s170, [#allocation18]
    $region69: #{ae_forward.1} parent=1 // pred_fallthru
      _
    // Predicated region
    $region70: #{ae_forward.1} parent=1 // pred_check
      _
    $region71: #{ae_forward.1} parent=1 // pred_check_branch
      %174 = sbr.rel (0) target = $region73
    $region72: #{ae_forward.1} parent=1 // pred_region
      %s176 = ssub.s32 4096, 4096
      %177 = vsyncadd [#allocation21], %s176
      %s178 = sshll.u32 [#allocation20], 4
      %s179 = int_to_ptr.vmem [resolvable:$true] %s178
      %184 = dma.hbm_to_vmem [thread:$0]  %s17, 4096, %s179, [#allocation21], 512, 512, 32
    $region73: #{ae_forward.1} parent=1 // pred_fallthru
      _
    // Predicated region
    $region74: #{ae_forward.1} parent=1 // pred_check
      _
    $region75: #{ae_forward.1} parent=1 // pred_check_branch
      %186 = sbr.rel (0) target = $region77
    $region76: #{ae_forward.1} parent=1 // pred_region
      %s188 = ssub.s32 64, 64
      %189 = vsyncadd [#allocation21], %s188
      %s191 = sshll.u32 [#allocation22], 4
      %s192 = int_to_ptr.vmem [resolvable:$true] %s191
      %194 = dma.hbm_to_vmem [thread:$0]  %s18, 64, %s192, [#allocation21]
    $region77: #{ae_forward.1} parent=1 // pred_fallthru
      _
    // Predicated region
    $region78: #{ae_forward.1} parent=1 // pred_check
      _
    $region79: #{ae_forward.1} parent=1 // pred_check_branch
      %196 = sbr.rel (0) target = $region81
    $region80: #{ae_forward.1} parent=1 // pred_region
      %s198 = ssub.s32 64, 64
      %199 = vsyncadd [#allocation24], %s198
      %s201 = sshll.u32 [#allocation23], 4
      %s202 = int_to_ptr.vmem [resolvable:$true] %s201
      %204 = dma.hbm_to_vmem [thread:$0]  %s19, 64, %s202, [#allocation24]
    $region81: #{ae_forward.1} parent=1 // pred_fallthru
      _
    // Predicated region
    $region82: #{ae_forward.1} parent=1 // pred_check
      _
    $region83: #{ae_forward.1} parent=1 // pred_check_branch
      %206 = sbr.rel (0) target = $region85
    $region84: #{ae_forward.1} parent=1 // pred_region
      _
    $region85: #{ae_forward.1} parent=1 // pred_fallthru
      _
    // Predicated region
    $region86: #{ae_forward.1} parent=1 // pred_check
      _
    $region87: #{ae_forward.1} parent=1 // pred_check_branch
      %208 = sbr.rel (0) target = $region89
    $region88: #{ae_forward.1} parent=1 // pred_region
      %s210 = ssub.s32 64, 64
      %211 = vsyncadd [#allocation24], %s210
      %s213 = sshll.u32 [#allocation25], 4
      %s214 = int_to_ptr.vmem [resolvable:$true] %s213
      %216 = dma.hbm_to_vmem [thread:$0]  %s21, 64, %s214, [#allocation24]
    $region89: #{ae_forward.1} parent=1 // pred_fallthru
      _
    // Predicated region
    $region90: #{ae_forward.1} parent=1 // pred_check
      _
    $region91: #{ae_forward.1} parent=1 // pred_check_branch
      %218 = sbr.rel (0) target = $region93
    $region92: #{ae_forward.1} parent=1 // pred_region
      %s220 = ssub.s32 64, 64
      %221 = vsyncadd [#allocation27], %s220
      %s223 = sshll.u32 [#allocation26], 4
      %s224 = int_to_ptr.vmem [resolvable:$true] %s223
      %226 = dma.hbm_to_vmem [thread:$0]  %s22, 64, %s224, [#allocation27]
    $region93: #{ae_forward.1} parent=1 // pred_fallthru
      _
    // Predicated region
    $region94: #{ae_forward.1} parent=1 // pred_check
      _
    $region95: #{ae_forward.1} parent=1 // pred_check_branch
      %228 = sbr.rel (0) target = $region97
    $region96: #{ae_forward.1} parent=1 // pred_region
      _
    $region97: #{ae_forward.1} parent=1 // pred_fallthru
      _
    // Predicated region
    $region98: #{ae_forward.1} parent=1 // pred_check
      _
    $region99: #{ae_forward.1} parent=1 // pred_check_branch
      %230 = sbr.rel (0) target = $region101
    $region100: #{ae_forward.1} parent=1 // pred_region
      %s232 = ssub.s32 112, 112
      %233 = vsyncadd [#allocation27], %s232
      %s235 = sshll.u32 [#allocation28], 4
      %s236 = int_to_ptr.vmem [resolvable:$true] %s235
      %238 = dma.hbm_to_vmem [thread:$0]  %s24, 112, %s236, [#allocation27]
    $region101: #{ae_forward.1} parent=1 // pred_fallthru
      _
    // Predicated region
    $region102: #{ae_forward.1} parent=1 // pred_check
      _
    $region103: #{ae_forward.1} parent=1 // pred_check_branch
      %240 = sbr.rel (0) target = $region105
    $region104: #{ae_forward.1} parent=1 // pred_region
      %s242 = ssub.s32 112, 112
      %243 = vsyncadd [#allocation30], %s242
      %s245 = sshll.u32 [#allocation29], 4
      %s246 = int_to_ptr.vmem [resolvable:$true] %s245
      %248 = dma.hbm_to_vmem [thread:$0]  %s25, 112, %s246, [#allocation30]
    $region105: #{ae_forward.1} parent=1 // pred_fallthru
      _
    // Predicated region
    $region106: #{ae_forward.1} parent=1 // pred_check
      _
    $region107: #{ae_forward.1} parent=1 // pred_check_branch
      %250 = sbr.rel (0) target = $region109
    $region108: #{ae_forward.1} parent=1 // pred_region
      %251 = dma.done [#allocation3], 64
    $region109: #{ae_forward.1} parent=1 // pred_fallthru
      _
    // Predicated region
    $region110: #{ae_forward.1} parent=1 // pred_check
      _
    $region111: #{ae_forward.1} parent=1 // pred_check_branch
      %253 = sbr.rel (0) target = $region113
    $region112: #{ae_forward.1} parent=1 // pred_region
      %254 = dma.done [#allocation6], 64
    $region113: #{ae_forward.1} parent=1 // pred_fallthru
      _
    // Predicated region
    $region114: #{ae_forward.1} parent=1 // pred_check
      _
    $region115: #{ae_forward.1} parent=1 // pred_check_branch
      %256 = sbr.rel (0) target = $region117
    $region116: #{ae_forward.1} parent=1 // pred_region
      %257 = dma.done [#allocation6], 64
    $region117: #{ae_forward.1} parent=1 // pred_fallthru
      _
    // Predicated region
    $region118: #{ae_forward.1} parent=1 // pred_check
      _
    $region119: #{ae_forward.1} parent=1 // pred_check_branch
      %259 = sbr.rel (0) target = $region121
    $region120: #{ae_forward.1} parent=1 // pred_region
      %260 = dma.done [#allocation9], 4096
    $region121: #{ae_forward.1} parent=1 // pred_fallthru
      _
    // Predicated region
    $region122: #{ae_forward.1} parent=1 // pred_check
      _
    $region123: #{ae_forward.1} parent=1 // pred_check_branch
      %262 = sbr.rel (0) target = $region125
    $region124: #{ae_forward.1} parent=1 // pred_region
      %263 = dma.done [#allocation9], 32
    $region125: #{ae_forward.1} parent=1 // pred_fallthru
      _
    // Predicated region
    $region126: #{ae_forward.1} parent=1 // pred_check
      _
    $region127: #{ae_forward.1} parent=1 // pred_check_branch
      %265 = sbr.rel (0) target = $region129
    $region128: #{ae_forward.1} parent=1 // pred_region
      %266 = dma.done [#allocation12], 32
    $region129: #{ae_forward.1} parent=1 // pred_fallthru
      _
    // Predicated region
    $region130: #{ae_forward.1} parent=1 // pred_check
      _
    $region131: #{ae_forward.1} parent=1 // pred_check_branch
      %268 = sbr.rel (0) target = $region133
    $region132: #{ae_forward.1} parent=1 // pred_region
      %269 = dma.done [#allocation12], 1024
    $region133: #{ae_forward.1} parent=1 // pred_fallthru
      _
    // Predicated region
    $region134: #{ae_forward.1} parent=1 // pred_check
      _
    $region135: #{ae_forward.1} parent=1 // pred_check_branch
      %271 = sbr.rel (0) target = $region137
    $region136: #{ae_forward.1} parent=1 // pred_region
      %272 = dma.done [#allocation15], 16
    $region137: #{ae_forward.1} parent=1 // pred_fallthru
      _
    // Predicated region
    $region138: #{ae_forward.1} parent=1 // pred_check
      _
    $region139: #{ae_forward.1} parent=1 // pred_check_branch
      %274 = sbr.rel (0) target = $region141
    $region140: #{ae_forward.1} parent=1 // pred_region
      %275 = dma.done [#allocation15], 1024
    $region141: #{ae_forward.1} parent=1 // pred_fallthru
      _
    // Predicated region
    $region142: #{ae_forward.1} parent=1 // pred_check
      _
    $region143: #{ae_forward.1} parent=1 // pred_check_branch
      %277 = sbr.rel (0) target = $region145
    $region144: #{ae_forward.1} parent=1 // pred_region
      %278 = dma.done [#allocation18], 32
    $region145: #{ae_forward.1} parent=1 // pred_fallthru
      _
    // Predicated region
    $region146: #{ae_forward.1} parent=1 // pred_check
      _
    $region147: #{ae_forward.1} parent=1 // pred_check_branch
      %280 = sbr.rel (0) target = $region149
    $region148: #{ae_forward.1} parent=1 // pred_region
      %281 = dma.done [#allocation18], 32
    $region149: #{ae_forward.1} parent=1 // pred_fallthru
      _
    // Predicated region
    $region150: #{ae_forward.1} parent=1 // pred_check
      _
    $region151: #{ae_forward.1} parent=1 // pred_check_branch
      %283 = sbr.rel (0) target = $region153
    $region152: #{ae_forward.1} parent=1 // pred_region
      %284 = dma.done [#allocation21], 4096
    $region153: #{ae_forward.1} parent=1 // pred_fallthru
      _
    // Predicated region
    $region154: #{ae_forward.1} parent=1 // pred_check
      _
    $region155: #{ae_forward.1} parent=1 // pred_check_branch
      %286 = sbr.rel (0) target = $region157
    $region156: #{ae_forward.1} parent=1 // pred_region
      %287 = dma.done [#allocation21], 64
    $region157: #{ae_forward.1} parent=1 // pred_fallthru
      _
    // Predicated region
    $region158: #{ae_forward.1} parent=1 // pred_check
      _
    $region159: #{ae_forward.1} parent=1 // pred_check_branch
      %289 = sbr.rel (0) target = $region161
    $region160: #{ae_forward.1} parent=1 // pred_region
      %290 = dma.done [#allocation24], 64
    $region161: #{ae_forward.1} parent=1 // pred_fallthru
      _
    // Predicated region
    $region162: #{ae_forward.1} parent=1 // pred_check
      _
    $region163: #{ae_forward.1} parent=1 // pred_check_branch
      %292 = sbr.rel (0) target = $region165
    $region164: #{ae_forward.1} parent=1 // pred_region
      %293 = dma.done [#allocation24], 64
    $region165: #{ae_forward.1} parent=1 // pred_fallthru
      _
    // Predicated region
    $region166: #{ae_forward.1} parent=1 // pred_check
      _
    $region167: #{ae_forward.1} parent=1 // pred_check_branch
      %295 = sbr.rel (0) target = $region169
    $region168: #{ae_forward.1} parent=1 // pred_region
      %296 = dma.done [#allocation27], 64
    $region169: #{ae_forward.1} parent=1 // pred_fallthru
      _
    // Predicated region
    $region170: #{ae_forward.1} parent=1 // pred_check
      _
    $region171: #{ae_forward.1} parent=1 // pred_check_branch
      %298 = sbr.rel (0) target = $region173
    $region172: #{ae_forward.1} parent=1 // pred_region
      %299 = dma.done [#allocation27], 112
    $region173: #{ae_forward.1} parent=1 // pred_fallthru
      _
    // Predicated region
    $region174: #{ae_forward.1} parent=1 // pred_check
      _
    $region175: #{ae_forward.1} parent=1 // pred_check_branch
      %301 = sbr.rel (0) target = $region177
    $region176: #{ae_forward.1} parent=1 // pred_region
      %302 = dma.done [#allocation30], 112
    $region177: #{ae_forward.1} parent=1 // pred_fallthru
      _
    %v304 = vld [vmem:[%s0] sm:$0xff]
    %v305 = vld [vmem:[%s0 + $0x8] sm:$0xff]
    %v306 = vld [vmem:[%s0 + $0x10] sm:$0xff]
    %v307 = vld [vmem:[%s0 + $0x18] sm:$0xf]
    %v308 = vld [vmem:[%s2] sm:$0xff]
    %v309 = vld [vmem:[%s2 + $0x8] sm:$0xff]
    %v310 = vld [vmem:[%s2 + $0x10] sm:$0xff]
    %v311 = vld [vmem:[%s2 + $0x18] sm:$0xff]
    %v312 = vld [vmem:[%s2 + $0x20] sm:$0xff]
    %v313 = vld [vmem:[%s2 + $0x28] sm:$0xff]
    %v314 = vld [vmem:[%s2 + $0x30] sm:$0xff]
    %v315 = vld [vmem:[%s2 + $0x38] sm:$0xff]
    %v316 = vld [vmem:[%s2 + $0x40] sm:$0xff]
    %v317 = vld [vmem:[%s2 + $0x48] sm:$0xff]
    %v318 = vld [vmem:[%s2 + $0x50] sm:$0xff]
    %v319 = vld [vmem:[%s2 + $0x58] sm:$0xff]
    %v320 = vld [vmem:[%s2 + $0x60] sm:$0xff]
    %v321 = vld [vmem:[%s2 + $0x68] sm:$0xff]
    %v322 = vld [vmem:[%s2 + $0x70] sm:$0xff]
    %v323 = vld [vmem:[%s2 + $0x78] sm:$0xff]
    %v324 = vld [vmem:[%s2 + $0x80] sm:$0xff]
    %v325 = vld [vmem:[%s2 + $0x88] sm:$0xff]
    %v326 = vld [vmem:[%s2 + $0x90] sm:$0xff]
    %v327 = vld [vmem:[%s2 + $0x98] sm:$0xff]
    %v328 = vld [vmem:[%s2 + $0xa0] sm:$0xff]
    %v329 = vld [vmem:[%s2 + $0xa8] sm:$0xff]
    %v330 = vld [vmem:[%s2 + $0xb0] sm:$0xff]
    %v331 = vld [vmem:[%s2 + $0xb8] sm:$0xff]
    %v332 = vld [vmem:[%s2 + $0xc0] sm:$0xff]
    %v333 = vld [vmem:[%s2 + $0xc8] sm:$0xff]
    %v334 = vld [vmem:[%s2 + $0xd0] sm:$0xff]
    %v335 = vld [vmem:[%s2 + $0xd8] sm:$0xff]
    %v336 = vld [vmem:[%s2 + $0xe0] sm:$0xff]
    %v337 = vld [vmem:[%s2 + $0xe8] sm:$0xff]
    %v338 = vld [vmem:[%s2 + $0xf0] sm:$0xff]
    %v339 = vld [vmem:[%s2 + $0xf8] sm:$0xff]
    %v340 = vld [vmem:[%s2 + $0x100] sm:$0xff]
    %v341 = vld [vmem:[%s2 + $0x108] sm:$0xff]
    %v342 = vld [vmem:[%s2 + $0x110] sm:$0xff]
    %v343 = vld [vmem:[%s2 + $0x118] sm:$0xff]
    %v344 = vld [vmem:[%s2 + $0x120] sm:$0xff]
    %v345 = vld [vmem:[%s2 + $0x128] sm:$0xff]
    %v346 = vld [vmem:[%s2 + $0x130] sm:$0xff]
    %v347 = vld [vmem:[%s2 + $0x138] sm:$0xff]
    %v348 = vld [vmem:[%s2 + $0x140] sm:$0xff]
    %v349 = vld [vmem:[%s2 + $0x148] sm:$0xff]
    %v350 = vld [vmem:[%s2 + $0x150] sm:$0xff]
    %v351 = vld [vmem:[%s2 + $0x158] sm:$0xff]
    %v352 = vld [vmem:[%s2 + $0x160] sm:$0xff]
    %v353 = vld [vmem:[%s2 + $0x168] sm:$0xff]
    %v354 = vld [vmem:[%s2 + $0x170] sm:$0xff]
    %v355 = vld [vmem:[%s2 + $0x178] sm:$0xff]
    %v356 = vld [vmem:[%s2 + $0x180] sm:$0xff]
    %v357 = vld [vmem:[%s2 + $0x188] sm:$0xff]
    %v358 = vld [vmem:[%s2 + $0x190] sm:$0xff]
    %v359 = vld [vmem:[%s2 + $0x198] sm:$0xff]
    %v360 = vld [vmem:[%s2 + $0x1a0] sm:$0xff]
    %v361 = vld [vmem:[%s2 + $0x1a8] sm:$0xff]
    %v362 = vld [vmem:[%s2 + $0x1b0] sm:$0xff]
    %v363 = vld [vmem:[%s2 + $0x1b8] sm:$0xff]
    %v364 = vld [vmem:[%s2 + $0x1c0] sm:$0xff]
    %v365 = vld [vmem:[%s2 + $0x1c8] sm:$0xff]
    %v366 = vld [vmem:[%s2 + $0x1d0] sm:$0xff]
    %v367 = vld [vmem:[%s2 + $0x1d8] sm:$0xff]
    %v368 = vld [vmem:[%s2 + $0x1e0] sm:$0xff]
    %v369 = vld [vmem:[%s2 + $0x1e8] sm:$0xff]
    %v370 = vld [vmem:[%s2 + $0x1f0] sm:$0xff]
    %v371 = vld [vmem:[%s2 + $0x1f8] sm:$0xff]
    %v372 = vld [vmem:[%s2 + $0x200] sm:$0xff]
    %v373 = vld [vmem:[%s2 + $0x208] sm:$0xff]
    %v374 = vld [vmem:[%s2 + $0x210] sm:$0xff]
    %v375 = vld [vmem:[%s2 + $0x218] sm:$0xff]
    %v376 = vld [vmem:[%s2 + $0x220] sm:$0xff]
    %v377 = vld [vmem:[%s2 + $0x228] sm:$0xff]
    %v378 = vld [vmem:[%s2 + $0x230] sm:$0xff]
    %v379 = vld [vmem:[%s2 + $0x238] sm:$0xff]
    %v380 = vld [vmem:[%s2 + $0x240] sm:$0xff]
    %v381 = vld [vmem:[%s2 + $0x248] sm:$0xff]
    %v382 = vld [vmem:[%s2 + $0x250] sm:$0xff]
    %v383 = vld [vmem:[%s2 + $0x258] sm:$0xff]
    %v384 = vld [vmem:[%s2 + $0x260] sm:$0xff]
    %v385 = vld [vmem:[%s2 + $0x268] sm:$0xff]
    %v386 = vld [vmem:[%s2 + $0x270] sm:$0xff]
    %v387 = vld [vmem:[%s2 + $0x278] sm:$0xff]
    %v388 = vld [vmem:[%s2 + $0x280] sm:$0xff]
    %v389 = vld [vmem:[%s2 + $0x288] sm:$0xff]
    %v390 = vld [vmem:[%s2 + $0x290] sm:$0xff]
    %v391 = vld [vmem:[%s2 + $0x298] sm:$0xff]
    %v392 = vld [vmem:[%s2 + $0x2a0] sm:$0xff]
    %v393 = vld [vmem:[%s2 + $0x2a8] sm:$0xff]
    %v394 = vld [vmem:[%s2 + $0x2b0] sm:$0xff]
    %v395 = vld [vmem:[%s2 + $0x2b8] sm:$0xff]
    %v396 = vld [vmem:[%s2 + $0x2c0] sm:$0xff]
    %v397 = vld [vmem:[%s2 + $0x2c8] sm:$0xff]
    %v398 = vld [vmem:[%s2 + $0x2d0] sm:$0xff]
    %v399 = vld [vmem:[%s2 + $0x2d8] sm:$0xff]
    %v400 = vld [vmem:[%s2 + $0x2e0] sm:$0xff]
    %v401 = vld [vmem:[%s2 + $0x2e8] sm:$0xff]
    %v402 = vld [vmem:[%s2 + $0x2f0] sm:$0xff]
    %v403 = vld [vmem:[%s2 + $0x2f8] sm:$0xff]
    %v404 = vld [vmem:[%s2 + $0x300] sm:$0xff]
    %v405 = vld [vmem:[%s2 + $0x308] sm:$0xff]
    %v406 = vunpack.c.l.s8.bf16 %v308
    %v407 = vunpack.c.h.s8.bf16 %v308
    %v408 = vunpack.c.l.s8.bf16 %v309
    %v409 = vunpack.c.h.s8.bf16 %v309
    %v410 = vunpack.c.l.s8.bf16 %v310
    %v411 = vunpack.c.h.s8.bf16 %v310
    %v412 = vunpack.c.l.s8.bf16 %v311
    %v413 = vunpack.c.h.s8.bf16 %v311
    %v414 = vunpack.c.l.s8.bf16 %v312
    %v415 = vunpack.c.h.s8.bf16 %v312
    %v416 = vunpack.c.l.s8.bf16 %v313
    %v417 = vunpack.c.h.s8.bf16 %v313
    %v418 = vunpack.c.l.s8.bf16 %v314
    %v419 = vunpack.c.h.s8.bf16 %v314
    %v420 = vunpack.c.l.s8.bf16 %v315
    %v421 = vunpack.c.h.s8.bf16 %v315
    %v422 = vunpack.c.l.s8.bf16 %v316
    %v423 = vunpack.c.h.s8.bf16 %v316
    %v424 = vunpack.c.l.s8.bf16 %v317
    %v425 = vunpack.c.h.s8.bf16 %v317
    %v426 = vunpack.c.l.s8.bf16 %v318
    %v427 = vunpack.c.h.s8.bf16 %v318
    %v428 = vunpack.c.l.s8.bf16 %v319
    %v429 = vunpack.c.h.s8.bf16 %v319
    %v430 = vunpack.c.l.s8.bf16 %v320
    %v431 = vunpack.c.h.s8.bf16 %v320
    %v432 = vunpack.c.l.s8.bf16 %v321
    %v433 = vunpack.c.h.s8.bf16 %v321
    %v434 = vunpack.c.l.s8.bf16 %v322
    %v435 = vunpack.c.h.s8.bf16 %v322
    %v436 = vunpack.c.l.s8.bf16 %v323
    %v437 = vunpack.c.h.s8.bf16 %v323
    %v438 = vunpack.c.l.s8.bf16 %v324
    %v439 = vunpack.c.h.s8.bf16 %v324
    %v440 = vunpack.c.l.s8.bf16 %v325
    %v441 = vunpack.c.h.s8.bf16 %v325
    %v442 = vunpack.c.l.s8.bf16 %v326
    %v443 = vunpack.c.h.s8.bf16 %v326
    %v444 = vunpack.c.l.s8.bf16 %v327
    %v445 = vunpack.c.h.s8.bf16 %v327
    %v446 = vunpack.c.l.s8.bf16 %v328
    %v447 = vunpack.c.h.s8.bf16 %v328
    %v448 = vunpack.c.l.s8.bf16 %v329
    %v449 = vunpack.c.h.s8.bf16 %v329
    %v450 = vunpack.c.l.s8.bf16 %v330
    %v451 = vunpack.c.h.s8.bf16 %v330
    %v452 = vunpack.c.l.s8.bf16 %v331
    %v453 = vunpack.c.h.s8.bf16 %v331
    %v454 = vunpack.c.l.s8.bf16 %v332
    %v455 = vunpack.c.h.s8.bf16 %v332
    %v456 = vunpack.c.l.s8.bf16 %v333
    %v457 = vunpack.c.h.s8.bf16 %v333
    %v458 = vunpack.c.l.s8.bf16 %v334
    %v459 = vunpack.c.h.s8.bf16 %v334
    %v460 = vunpack.c.l.s8.bf16 %v335
    %v461 = vunpack.c.h.s8.bf16 %v335
    %v462 = vunpack.c.l.s8.bf16 %v336
    %v463 = vunpack.c.h.s8.bf16 %v336
    %v464 = vunpack.c.l.s8.bf16 %v337
    %v465 = vunpack.c.h.s8.bf16 %v337
    %v466 = vunpack.c.l.s8.bf16 %v338
    %v467 = vunpack.c.h.s8.bf16 %v338
    %v468 = vunpack.c.l.s8.bf16 %v339
    %v469 = vunpack.c.h.s8.bf16 %v339
    %v470 = vunpack.c.l.s8.bf16 %v340
    %v471 = vunpack.c.h.s8.bf16 %v340
    %v472 = vunpack.c.l.s8.bf16 %v341
    %v473 = vunpack.c.h.s8.bf16 %v341
    %v474 = vunpack.c.l.s8.bf16 %v342
    %v475 = vunpack.c.h.s8.bf16 %v342
    %v476 = vunpack.c.l.s8.bf16 %v343
    %v477 = vunpack.c.h.s8.bf16 %v343
    %v478 = vunpack.c.l.s8.bf16 %v344
    %v479 = vunpack.c.h.s8.bf16 %v344
    %v480 = vunpack.c.l.s8.bf16 %v345
    %v481 = vunpack.c.h.s8.bf16 %v345
    %v482 = vunpack.c.l.s8.bf16 %v346
    %v483 = vunpack.c.h.s8.bf16 %v346
    %v484 = vunpack.c.l.s8.bf16 %v347
    %v485 = vunpack.c.h.s8.bf16 %v347
    %v486 = vunpack.c.l.s8.bf16 %v348
    %v487 = vunpack.c.h.s8.bf16 %v348
    %v488 = vunpack.c.l.s8.bf16 %v349
    %v489 = vunpack.c.h.s8.bf16 %v349
    %v490 = vunpack.c.l.s8.bf16 %v350
    %v491 = vunpack.c.h.s8.bf16 %v350
    %v492 = vunpack.c.l.s8.bf16 %v351
    %v493 = vunpack.c.h.s8.bf16 %v351
    %v494 = vunpack.c.l.s8.bf16 %v352
    %v495 = vunpack.c.h.s8.bf16 %v352
    %v496 = vunpack.c.l.s8.bf16 %v353
    %v497 = vunpack.c.h.s8.bf16 %v353
    %v498 = vunpack.c.l.s8.bf16 %v354
    %v499 = vunpack.c.h.s8.bf16 %v354
    %v500 = vunpack.c.l.s8.bf16 %v355
    %v501 = vunpack.c.h.s8.bf16 %v355
    %v502 = vunpack.c.l.s8.bf16 %v356
    %v503 = vunpack.c.h.s8.bf16 %v356
    %v504 = vunpack.c.l.s8.bf16 %v357
    %v505 = vunpack.c.h.s8.bf16 %v357
    %v506 = vunpack.c.l.s8.bf16 %v358
    %v507 = vunpack.c.h.s8.bf16 %v358
    %v508 = vunpack.c.l.s8.bf16 %v359
    %v509 = vunpack.c.h.s8.bf16 %v359
    %v510 = vunpack.c.l.s8.bf16 %v360
    %v511 = vunpack.c.h.s8.bf16 %v360
    %v512 = vunpack.c.l.s8.bf16 %v361
    %v513 = vunpack.c.h.s8.bf16 %v361
    %v514 = vunpack.c.l.s8.bf16 %v362
    %v515 = vunpack.c.h.s8.bf16 %v362
    %v516 = vunpack.c.l.s8.bf16 %v363
    %v517 = vunpack.c.h.s8.bf16 %v363
    %v518 = vunpack.c.l.s8.bf16 %v364
    %v519 = vunpack.c.h.s8.bf16 %v364
    %v520 = vunpack.c.l.s8.bf16 %v365
    %v521 = vunpack.c.h.s8.bf16 %v365
    %v522 = vunpack.c.l.s8.bf16 %v366
    %v523 = vunpack.c.h.s8.bf16 %v366
    %v524 = vunpack.c.l.s8.bf16 %v367
    %v525 = vunpack.c.h.s8.bf16 %v367
    %v526 = vunpack.c.l.s8.bf16 %v368
    %v527 = vunpack.c.h.s8.bf16 %v368
    %v528 = vunpack.c.l.s8.bf16 %v369
    %v529 = vunpack.c.h.s8.bf16 %v369
    %v530 = vunpack.c.l.s8.bf16 %v370
    %v531 = vunpack.c.h.s8.bf16 %v370
    %v532 = vunpack.c.l.s8.bf16 %v371
    %v533 = vunpack.c.h.s8.bf16 %v371
    %v534 = vunpack.c.l.s8.bf16 %v372
    %v535 = vunpack.c.h.s8.bf16 %v372
    %v536 = vunpack.c.l.s8.bf16 %v373
    %v537 = vunpack.c.h.s8.bf16 %v373
    %v538 = vunpack.c.l.s8.bf16 %v374
    %v539 = vunpack.c.h.s8.bf16 %v374
    %v540 = vunpack.c.l.s8.bf16 %v375
    %v541 = vunpack.c.h.s8.bf16 %v375
    %v542 = vunpack.c.l.s8.bf16 %v376
    %v543 = vunpack.c.h.s8.bf16 %v376
    %v544 = vunpack.c.l.s8.bf16 %v377
    %v545 = vunpack.c.h.s8.bf16 %v377
    %v546 = vunpack.c.l.s8.bf16 %v378
    %v547 = vunpack.c.h.s8.bf16 %v378
    %v548 = vunpack.c.l.s8.bf16 %v379
    %v549 = vunpack.c.h.s8.bf16 %v379
    %v550 = vunpack.c.l.s8.bf16 %v380
    %v551 = vunpack.c.h.s8.bf16 %v380
    %v552 = vunpack.c.l.s8.bf16 %v381
    %v553 = vunpack.c.h.s8.bf16 %v381
    %v554 = vunpack.c.l.s8.bf16 %v382
    %v555 = vunpack.c.h.s8.bf16 %v382
    %v556 = vunpack.c.l.s8.bf16 %v383
    %v557 = vunpack.c.h.s8.bf16 %v383
    %v558 = vunpack.c.l.s8.bf16 %v384
    %v559 = vunpack.c.h.s8.bf16 %v384
    %v560 = vunpack.c.l.s8.bf16 %v385
    %v561 = vunpack.c.h.s8.bf16 %v385
    %v562 = vunpack.c.l.s8.bf16 %v386
    %v563 = vunpack.c.h.s8.bf16 %v386
    %v564 = vunpack.c.l.s8.bf16 %v387
    %v565 = vunpack.c.h.s8.bf16 %v387
    %v566 = vunpack.c.l.s8.bf16 %v388
    %v567 = vunpack.c.h.s8.bf16 %v388
    %v568 = vunpack.c.l.s8.bf16 %v389
    %v569 = vunpack.c.h.s8.bf16 %v389
    %v570 = vunpack.c.l.s8.bf16 %v390
    %v571 = vunpack.c.h.s8.bf16 %v390
    %v572 = vunpack.c.l.s8.bf16 %v391
    %v573 = vunpack.c.h.s8.bf16 %v391
    %v574 = vunpack.c.l.s8.bf16 %v392
    %v575 = vunpack.c.h.s8.bf16 %v392
    %v576 = vunpack.c.l.s8.bf16 %v393
    %v577 = vunpack.c.h.s8.bf16 %v393
    %v578 = vunpack.c.l.s8.bf16 %v394
    %v579 = vunpack.c.h.s8.bf16 %v394
    %v580 = vunpack.c.l.s8.bf16 %v395
    %v581 = vunpack.c.h.s8.bf16 %v395
    %v582 = vunpack.c.l.s8.bf16 %v396
    %v583 = vunpack.c.h.s8.bf16 %v396
    %v584 = vunpack.c.l.s8.bf16 %v397
    %v585 = vunpack.c.h.s8.bf16 %v397
    %v586 = vunpack.c.l.s8.bf16 %v398
    %v587 = vunpack.c.h.s8.bf16 %v398
    %v588 = vunpack.c.l.s8.bf16 %v399
    %v589 = vunpack.c.h.s8.bf16 %v399
    %v590 = vunpack.c.l.s8.bf16 %v400
    %v591 = vunpack.c.h.s8.bf16 %v400
    %v592 = vunpack.c.l.s8.bf16 %v401
    %v593 = vunpack.c.h.s8.bf16 %v401
    %v594 = vunpack.c.l.s8.bf16 %v402
    %v595 = vunpack.c.h.s8.bf16 %v402
    %v596 = vunpack.c.l.s8.bf16 %v403
    %v597 = vunpack.c.h.s8.bf16 %v403
    %v598 = vunpack.c.l.s8.bf16 %v404
    %v599 = vunpack.c.h.s8.bf16 %v404
    %v600 = vunpack.c.l.s8.bf16 %v405
    %v601 = vunpack.c.h.s8.bf16 %v405
    %v606 = vunpack.c.l.b16 %v304
    %v607 = vunpack.c.h.b16 %v304
    %v608 = vunpack.c.l.b16 %v305
    %v609 = vunpack.c.h.b16 %v305
    %v610 = vunpack.c.l.b16 %v306
    %v611 = vunpack.c.h.b16 %v306
    %v612 = vunpack.c.l.b16 %v307
    %v613 = vpack.c.b16 %v606, %v606
    %v614 = vpack.c.b16 %v607, %v607
    %v615 = vpack.c.b16 %v608, %v608
    %v616 = vpack.c.b16 %v609, %v609
    %v617 = vpack.c.b16 %v610, %v610
    %v618 = vpack.c.b16 %v611, %v611
    %v619 = vpack.c.b16 %v612, %v612
    %v822 = vunpack.c.l.b16 %v406
    %v823 = vunpack.c.h.b16 %v406
    %v824 = vunpack.c.l.b16 %v407
    %v825 = vunpack.c.h.b16 %v407
    %v826 = vunpack.c.l.b16 %v408
    %v827 = vunpack.c.h.b16 %v408
    %v828 = vunpack.c.l.b16 %v409
    %v829 = vunpack.c.h.b16 %v409
    %v830 = vunpack.c.l.b16 %v410
    %v831 = vunpack.c.h.b16 %v410
    %v832 = vunpack.c.l.b16 %v411
    %v833 = vunpack.c.h.b16 %v411
    %v834 = vunpack.c.l.b16 %v412
    %v835 = vunpack.c.h.b16 %v412
    %v836 = vunpack.c.l.b16 %v413
    %v837 = vunpack.c.h.b16 %v413
    %v838 = vunpack.c.l.b16 %v414
    %v839 = vunpack.c.h.b16 %v414
    %v840 = vunpack.c.l.b16 %v415
    %v841 = vunpack.c.h.b16 %v415
    %v842 = vunpack.c.l.b16 %v416
    %v843 = vunpack.c.h.b16 %v416
    %v844 = vunpack.c.l.b16 %v417
    %v845 = vunpack.c.h.b16 %v417
    %v846 = vunpack.c.l.b16 %v418
    %v847 = vunpack.c.h.b16 %v418
    %v848 = vunpack.c.l.b16 %v419
    %v849 = vunpack.c.h.b16 %v419
    %v850 = vunpack.c.l.b16 %v420
    %v851 = vunpack.c.h.b16 %v420
    %v852 = vunpack.c.l.b16 %v421
    %v853 = vunpack.c.h.b16 %v421
    %v854 = vunpack.c.l.b16 %v422
    %v855 = vunpack.c.h.b16 %v422
    %v856 = vunpack.c.l.b16 %v423
    %v857 = vunpack.c.h.b16 %v423
    %v858 = vunpack.c.l.b16 %v424
    %v859 = vunpack.c.h.b16 %v424
    %v860 = vunpack.c.l.b16 %v425
    %v861 = vunpack.c.h.b16 %v425
    %v862 = vunpack.c.l.b16 %v426
    %v863 = vunpack.c.h.b16 %v426
    %v864 = vunpack.c.l.b16 %v427
    %v865 = vunpack.c.h.b16 %v427
    %v866 = vunpack.c.l.b16 %v428
    %v867 = vunpack.c.h.b16 %v428
    %v868 = vunpack.c.l.b16 %v429
    %v869 = vunpack.c.h.b16 %v429
    %v870 = vunpack.c.l.b16 %v430
    %v871 = vunpack.c.h.b16 %v430
    %v872 = vunpack.c.l.b16 %v431
    %v873 = vunpack.c.h.b16 %v431
    %v874 = vunpack.c.l.b16 %v432
    %v875 = vunpack.c.h.b16 %v432
    %v876 = vunpack.c.l.b16 %v433
    %v877 = vunpack.c.h.b16 %v433
    %v878 = vunpack.c.l.b16 %v434
    %v879 = vunpack.c.h.b16 %v434
    %v880 = vunpack.c.l.b16 %v435
    %v881 = vunpack.c.h.b16 %v435
    %v882 = vunpack.c.l.b16 %v436
    %v883 = vunpack.c.h.b16 %v436
    %v884 = vunpack.c.l.b16 %v437
    %v885 = vunpack.c.h.b16 %v437
    %v886 = vunpack.c.l.b16 %v438
    %v887 = vunpack.c.h.b16 %v438
    %v888 = vunpack.c.l.b16 %v439
    %v889 = vunpack.c.h.b16 %v439
    %v890 = vunpack.c.l.b16 %v440
    %v891 = vunpack.c.h.b16 %v440
    %v892 = vunpack.c.l.b16 %v441
    %v893 = vunpack.c.h.b16 %v441
    %v894 = vunpack.c.l.b16 %v442
    %v895 = vunpack.c.h.b16 %v442
    %v896 = vunpack.c.l.b16 %v443
    %v897 = vunpack.c.h.b16 %v443
    %v898 = vunpack.c.l.b16 %v444
    %v899 = vunpack.c.h.b16 %v444
    %v900 = vunpack.c.l.b16 %v445
    %v901 = vunpack.c.h.b16 %v445
    %v902 = vunpack.c.l.b16 %v446
    %v903 = vunpack.c.h.b16 %v446
    %v904 = vunpack.c.l.b16 %v447
    %v905 = vunpack.c.h.b16 %v447
    %v906 = vunpack.c.l.b16 %v448
    %v907 = vunpack.c.h.b16 %v448
    %v908 = vunpack.c.l.b16 %v449
    %v909 = vunpack.c.h.b16 %v449
    %v910 = vunpack.c.l.b16 %v450
    %v911 = vunpack.c.h.b16 %v450
    %v912 = vunpack.c.l.b16 %v451
    %v913 = vunpack.c.h.b16 %v451
    %v914 = vunpack.c.l.b16 %v452
    %v915 = vunpack.c.h.b16 %v452
    %v916 = vunpack.c.l.b16 %v453
    %v917 = vunpack.c.h.b16 %v453
    %v918 = vunpack.c.l.b16 %v454
    %v919 = vunpack.c.h.b16 %v454
    %v920 = vunpack.c.l.b16 %v455
    %v921 = vunpack.c.h.b16 %v455
    %v922 = vunpack.c.l.b16 %v456
    %v923 = vunpack.c.h.b16 %v456
    %v924 = vunpack.c.l.b16 %v457
    %v925 = vunpack.c.h.b16 %v457
    %v926 = vunpack.c.l.b16 %v458
    %v927 = vunpack.c.h.b16 %v458
    %v928 = vunpack.c.l.b16 %v459
    %v929 = vunpack.c.h.b16 %v459
    %v930 = vunpack.c.l.b16 %v460
    %v931 = vunpack.c.h.b16 %v460
    %v932 = vunpack.c.l.b16 %v461
    %v933 = vunpack.c.h.b16 %v461
    %v934 = vunpack.c.l.b16 %v462
    %v935 = vunpack.c.h.b16 %v462
    %v936 = vunpack.c.l.b16 %v463
    %v937 = vunpack.c.h.b16 %v463
    %v938 = vunpack.c.l.b16 %v464
    %v939 = vunpack.c.h.b16 %v464
    %v940 = vunpack.c.l.b16 %v465
    %v941 = vunpack.c.h.b16 %v465
    %v942 = vunpack.c.l.b16 %v466
    %v943 = vunpack.c.h.b16 %v466
    %v944 = vunpack.c.l.b16 %v467
    %v945 = vunpack.c.h.b16 %v467
    %v946 = vunpack.c.l.b16 %v468
    %v947 = vunpack.c.h.b16 %v468
    %v948 = vunpack.c.l.b16 %v469
    %v949 = vunpack.c.h.b16 %v469
    %v950 = vunpack.c.l.b16 %v470
    %v951 = vunpack.c.h.b16 %v470
    %v952 = vunpack.c.l.b16 %v471
    %v953 = vunpack.c.h.b16 %v471
    %v954 = vunpack.c.l.b16 %v472
    %v955 = vunpack.c.h.b16 %v472
    %v956 = vunpack.c.l.b16 %v473
    %v957 = vunpack.c.h.b16 %v473
    %v958 = vunpack.c.l.b16 %v474
    %v959 = vunpack.c.h.b16 %v474
    %v960 = vunpack.c.l.b16 %v475
    %v961 = vunpack.c.h.b16 %v475
    %v962 = vunpack.c.l.b16 %v476
    %v963 = vunpack.c.h.b16 %v476
    %v964 = vunpack.c.l.b16 %v477
    %v965 = vunpack.c.h.b16 %v477
    %v966 = vunpack.c.l.b16 %v478
    %v967 = vunpack.c.h.b16 %v478
    %v968 = vunpack.c.l.b16 %v479
    %v969 = vunpack.c.h.b16 %v479
    %v970 = vunpack.c.l.b16 %v480
    %v971 = vunpack.c.h.b16 %v480
    %v972 = vunpack.c.l.b16 %v481
    %v973 = vunpack.c.h.b16 %v481
    %v974 = vunpack.c.l.b16 %v482
    %v975 = vunpack.c.h.b16 %v482
    %v976 = vunpack.c.l.b16 %v483
    %v977 = vunpack.c.h.b16 %v483
    %v978 = vunpack.c.l.b16 %v484
    %v979 = vunpack.c.h.b16 %v484
    %v980 = vunpack.c.l.b16 %v485
    %v981 = vunpack.c.h.b16 %v485
    %v982 = vunpack.c.l.b16 %v486
    %v983 = vunpack.c.h.b16 %v486
    %v984 = vunpack.c.l.b16 %v487
    %v985 = vunpack.c.h.b16 %v487
    %v986 = vunpack.c.l.b16 %v488
    %v987 = vunpack.c.h.b16 %v488
    %v988 = vunpack.c.l.b16 %v489
    %v989 = vunpack.c.h.b16 %v489
    %v990 = vunpack.c.l.b16 %v490
    %v991 = vunpack.c.h.b16 %v490
    %v992 = vunpack.c.l.b16 %v491
    %v993 = vunpack.c.h.b16 %v491
    %v994 = vunpack.c.l.b16 %v492
    %v995 = vunpack.c.h.b16 %v492
    %v996 = vunpack.c.l.b16 %v493
    %v997 = vunpack.c.h.b16 %v493
    %v998 = vunpack.c.l.b16 %v494
    %v999 = vunpack.c.h.b16 %v494
    %v1000 = vunpack.c.l.b16 %v495
    %v1001 = vunpack.c.h.b16 %v495
    %v1002 = vunpack.c.l.b16 %v496
    %v1003 = vunpack.c.h.b16 %v496
    %v1004 = vunpack.c.l.b16 %v497
    %v1005 = vunpack.c.h.b16 %v497
    %v1006 = vunpack.c.l.b16 %v498
    %v1007 = vunpack.c.h.b16 %v498
    %v1008 = vunpack.c.l.b16 %v499
    %v1009 = vunpack.c.h.b16 %v499
    %v1010 = vunpack.c.l.b16 %v500
    %v1011 = vunpack.c.h.b16 %v500
    %v1012 = vunpack.c.l.b16 %v501
    %v1013 = vunpack.c.h.b16 %v501
    %v1014 = vunpack.c.l.b16 %v502
    %v1015 = vunpack.c.h.b16 %v502
    %v1016 = vunpack.c.l.b16 %v503
    %v1017 = vunpack.c.h.b16 %v503
    %v1018 = vunpack.c.l.b16 %v504
    %v1019 = vunpack.c.h.b16 %v504
    %v1020 = vunpack.c.l.b16 %v505
    %v1021 = vunpack.c.h.b16 %v505
    %v1022 = vunpack.c.l.b16 %v506
    %v1023 = vunpack.c.h.b16 %v506
    %v1024 = vunpack.c.l.b16 %v507
    %v1025 = vunpack.c.h.b16 %v507
    %v1026 = vunpack.c.l.b16 %v508
    %v1027 = vunpack.c.h.b16 %v508
    %v1028 = vunpack.c.l.b16 %v509
    %v1029 = vunpack.c.h.b16 %v509
    %v1030 = vunpack.c.l.b16 %v510
    %v1031 = vunpack.c.h.b16 %v510
    %v1032 = vunpack.c.l.b16 %v511
    %v1033 = vunpack.c.h.b16 %v511
    %v1034 = vunpack.c.l.b16 %v512
    %v1035 = vunpack.c.h.b16 %v512
    %v1036 = vunpack.c.l.b16 %v513
    %v1037 = vunpack.c.h.b16 %v513
    %v1038 = vunpack.c.l.b16 %v514
    %v1039 = vunpack.c.h.b16 %v514
    %v1040 = vunpack.c.l.b16 %v515
    %v1041 = vunpack.c.h.b16 %v515
    %v1042 = vunpack.c.l.b16 %v516
    %v1043 = vunpack.c.h.b16 %v516
    %v1044 = vunpack.c.l.b16 %v517
    %v1045 = vunpack.c.h.b16 %v517
    %v1046 = vunpack.c.l.b16 %v518
    %v1047 = vunpack.c.h.b16 %v518
    %v1048 = vunpack.c.l.b16 %v519
    %v1049 = vunpack.c.h.b16 %v519
    %v1050 = vunpack.c.l.b16 %v520
    %v1051 = vunpack.c.h.b16 %v520
    %v1052 = vunpack.c.l.b16 %v521
    %v1053 = vunpack.c.h.b16 %v521
    %v1054 = vunpack.c.l.b16 %v522
    %v1055 = vunpack.c.h.b16 %v522
    %v1056 = vunpack.c.l.b16 %v523
    %v1057 = vunpack.c.h.b16 %v523
    %v1058 = vunpack.c.l.b16 %v524
    %v1059 = vunpack.c.h.b16 %v524
    %v1060 = vunpack.c.l.b16 %v525
    %v1061 = vunpack.c.h.b16 %v525
    %v1062 = vunpack.c.l.b16 %v526
    %v1063 = vunpack.c.h.b16 %v526
    %v1064 = vunpack.c.l.b16 %v527
    %v1065 = vunpack.c.h.b16 %v527
    %v1066 = vunpack.c.l.b16 %v528
    %v1067 = vunpack.c.h.b16 %v528
    %v1068 = vunpack.c.l.b16 %v529
    %v1069 = vunpack.c.h.b16 %v529
    %v1070 = vunpack.c.l.b16 %v530
    %v1071 = vunpack.c.h.b16 %v530
    %v1072 = vunpack.c.l.b16 %v531
    %v1073 = vunpack.c.h.b16 %v531
    %v1074 = vunpack.c.l.b16 %v532
    %v1075 = vunpack.c.h.b16 %v532
    %v1076 = vunpack.c.l.b16 %v533
    %v1077 = vunpack.c.h.b16 %v533
    %v1078 = vunpack.c.l.b16 %v534
    %v1079 = vunpack.c.h.b16 %v534
    %v1080 = vunpack.c.l.b16 %v535
    %v1081 = vunpack.c.h.b16 %v535
    %v1082 = vunpack.c.l.b16 %v536
    %v1083 = vunpack.c.h.b16 %v536
    %v1084 = vunpack.c.l.b16 %v537
    %v1085 = vunpack.c.h.b16 %v537
    %v1086 = vunpack.c.l.b16 %v538
    %v1087 = vunpack.c.h.b16 %v538
    %v1088 = vunpack.c.l.b16 %v539
    %v1089 = vunpack.c.h.b16 %v539
    %v1090 = vunpack.c.l.b16 %v540
    %v1091 = vunpack.c.h.b16 %v540
    %v1092 = vunpack.c.l.b16 %v541
    %v1093 = vunpack.c.h.b16 %v541
    %v1094 = vunpack.c.l.b16 %v542
    %v1095 = vunpack.c.h.b16 %v542
    %v1096 = vunpack.c.l.b16 %v543
    %v1097 = vunpack.c.h.b16 %v543
    %v1098 = vunpack.c.l.b16 %v544
    %v1099 = vunpack.c.h.b16 %v544
    %v1100 = vunpack.c.l.b16 %v545
    %v1101 = vunpack.c.h.b16 %v545
    %v1102 = vunpack.c.l.b16 %v546
    %v1103 = vunpack.c.h.b16 %v546
    %v1104 = vunpack.c.l.b16 %v547
    %v1105 = vunpack.c.h.b16 %v547
    %v1106 = vunpack.c.l.b16 %v548
    %v1107 = vunpack.c.h.b16 %v548
    %v1108 = vunpack.c.l.b16 %v549
    %v1109 = vunpack.c.h.b16 %v549
    %v1110 = vunpack.c.l.b16 %v550
    %v1111 = vunpack.c.h.b16 %v550
    %v1112 = vunpack.c.l.b16 %v551
    %v1113 = vunpack.c.h.b16 %v551
    %v1114 = vunpack.c.l.b16 %v552
    %v1115 = vunpack.c.h.b16 %v552
    %v1116 = vunpack.c.l.b16 %v553
    %v1117 = vunpack.c.h.b16 %v553
    %v1118 = vunpack.c.l.b16 %v554
    %v1119 = vunpack.c.h.b16 %v554
    %v1120 = vunpack.c.l.b16 %v555
    %v1121 = vunpack.c.h.b16 %v555
    %v1122 = vunpack.c.l.b16 %v556
    %v1123 = vunpack.c.h.b16 %v556
    %v1124 = vunpack.c.l.b16 %v557
    %v1125 = vunpack.c.h.b16 %v557
    %v1126 = vunpack.c.l.b16 %v558
    %v1127 = vunpack.c.h.b16 %v558
    %v1128 = vunpack.c.l.b16 %v559
    %v1129 = vunpack.c.h.b16 %v559
    %v1130 = vunpack.c.l.b16 %v560
    %v1131 = vunpack.c.h.b16 %v560
    %v1132 = vunpack.c.l.b16 %v561
    %v1133 = vunpack.c.h.b16 %v561
    %v1134 = vunpack.c.l.b16 %v562
    %v1135 = vunpack.c.h.b16 %v562
    %v1136 = vunpack.c.l.b16 %v563
    %v1137 = vunpack.c.h.b16 %v563
    %v1138 = vunpack.c.l.b16 %v564
    %v1139 = vunpack.c.h.b16 %v564
    %v1140 = vunpack.c.l.b16 %v565
    %v1141 = vunpack.c.h.b16 %v565
    %v1142 = vunpack.c.l.b16 %v566
    %v1143 = vunpack.c.h.b16 %v566
    %v1144 = vunpack.c.l.b16 %v567
    %v1145 = vunpack.c.h.b16 %v567
    %v1146 = vunpack.c.l.b16 %v568
    %v1147 = vunpack.c.h.b16 %v568
    %v1148 = vunpack.c.l.b16 %v569
    %v1149 = vunpack.c.h.b16 %v569
    %v1150 = vunpack.c.l.b16 %v570
    %v1151 = vunpack.c.h.b16 %v570
    %v1152 = vunpack.c.l.b16 %v571
    %v1153 = vunpack.c.h.b16 %v571
    %v1154 = vunpack.c.l.b16 %v572
    %v1155 = vunpack.c.h.b16 %v572
    %v1156 = vunpack.c.l.b16 %v573
    %v1157 = vunpack.c.h.b16 %v573
    %v1158 = vunpack.c.l.b16 %v574
    %v1159 = vunpack.c.h.b16 %v574
    %v1160 = vunpack.c.l.b16 %v575
    %v1161 = vunpack.c.h.b16 %v575
    %v1162 = vunpack.c.l.b16 %v576
    %v1163 = vunpack.c.h.b16 %v576
    %v1164 = vunpack.c.l.b16 %v577
    %v1165 = vunpack.c.h.b16 %v577
    %v1166 = vunpack.c.l.b16 %v578
    %v1167 = vunpack.c.h.b16 %v578
    %v1168 = vunpack.c.l.b16 %v579
    %v1169 = vunpack.c.h.b16 %v579
    %v1170 = vunpack.c.l.b16 %v580
    %v1171 = vunpack.c.h.b16 %v580
    %v1172 = vunpack.c.l.b16 %v581
    %v1173 = vunpack.c.h.b16 %v581
    %v1174 = vunpack.c.l.b16 %v582
    %v1175 = vunpack.c.h.b16 %v582
    %v1176 = vunpack.c.l.b16 %v583
    %v1177 = vunpack.c.h.b16 %v583
    %v1178 = vunpack.c.l.b16 %v584
    %v1179 = vunpack.c.h.b16 %v584
    %v1180 = vunpack.c.l.b16 %v585
    %v1181 = vunpack.c.h.b16 %v585
    %v1182 = vunpack.c.l.b16 %v586
    %v1183 = vunpack.c.h.b16 %v586
    %v1184 = vunpack.c.l.b16 %v587
    %v1185 = vunpack.c.h.b16 %v587
    %v1186 = vunpack.c.l.b16 %v588
    %v1187 = vunpack.c.h.b16 %v588
    %v1188 = vunpack.c.l.b16 %v589
    %v1189 = vunpack.c.h.b16 %v589
    %v1190 = vunpack.c.l.b16 %v590
    %v1191 = vunpack.c.h.b16 %v590
    %v1192 = vunpack.c.l.b16 %v591
    %v1193 = vunpack.c.h.b16 %v591
    %v1194 = vunpack.c.l.b16 %v592
    %v1195 = vunpack.c.h.b16 %v592
    %v1196 = vunpack.c.l.b16 %v593
    %v1197 = vunpack.c.h.b16 %v593
    %v1198 = vunpack.c.l.b16 %v594
    %v1199 = vunpack.c.h.b16 %v594
    %v1200 = vunpack.c.l.b16 %v595
    %v1201 = vunpack.c.h.b16 %v595
    %v1202 = vunpack.c.l.b16 %v596
    %v1203 = vunpack.c.h.b16 %v596
    %v1204 = vunpack.c.l.b16 %v597
    %v1205 = vunpack.c.h.b16 %v597
    %v1206 = vunpack.c.l.b16 %v598
    %v1207 = vunpack.c.h.b16 %v598
    %v1208 = vunpack.c.l.b16 %v599
    %v1209 = vunpack.c.h.b16 %v599
    %v1210 = vunpack.c.l.b16 %v600
    %v1211 = vunpack.c.h.b16 %v600
    %v1212 = vunpack.c.l.b16 %v601
    %v1213 = vunpack.c.h.b16 %v601
    %v1214 = vpack.c.b16 %v826, %v822
    %v1215 = vpack.c.b16 %v827, %v823
    %v1216 = vpack.c.b16 %v828, %v824
    %v1217 = vpack.c.b16 %v829, %v825
    %v1218 = vpack.c.b16 %v834, %v830
    %v1219 = vpack.c.b16 %v835, %v831
    %v1220 = vpack.c.b16 %v836, %v832
    %v1221 = vpack.c.b16 %v837, %v833
    %v1222 = vpack.c.b16 %v842, %v838
    %v1223 = vpack.c.b16 %v843, %v839
    %v1224 = vpack.c.b16 %v844, %v840
    %v1225 = vpack.c.b16 %v845, %v841
    %v1226 = vpack.c.b16 %v850, %v846
    %v1227 = vpack.c.b16 %v851, %v847
    %v1228 = vpack.c.b16 %v852, %v848
    %v1229 = vpack.c.b16 %v853, %v849
    %v1230 = vpack.c.b16 %v858, %v854
    %v1231 = vpack.c.b16 %v859, %v855
    %v1232 = vpack.c.b16 %v860, %v856
    %v1233 = vpack.c.b16 %v861, %v857
    %v1234 = vpack.c.b16 %v866, %v862
    %v1235 = vpack.c.b16 %v867, %v863
    %v1236 = vpack.c.b16 %v868, %v864
    %v1237 = vpack.c.b16 %v869, %v865
    %v1238 = vpack.c.b16 %v874, %v870
    %v1239 = vpack.c.b16 %v875, %v871
    %v1240 = vpack.c.b16 %v876, %v872
    %v1241 = vpack.c.b16 %v877, %v873
    %v1242 = vpack.c.b16 %v882, %v878
    %v1243 = vpack.c.b16 %v883, %v879
    %v1244 = vpack.c.b16 %v884, %v880
    %v1245 = vpack.c.b16 %v885, %v881
    %v1246 = vpack.c.b16 %v890, %v886
    %v1247 = vpack.c.b16 %v891, %v887
    %v1248 = vpack.c.b16 %v892, %v888
    %v1249 = vpack.c.b16 %v893, %v889
    %v1250 = vpack.c.b16 %v898, %v894
    %v1251 = vpack.c.b16 %v899, %v895
    %v1252 = vpack.c.b16 %v900, %v896
    %v1253 = vpack.c.b16 %v901, %v897
    %v1254 = vpack.c.b16 %v906, %v902
    %v1255 = vpack.c.b16 %v907, %v903
    %v1256 = vpack.c.b16 %v908, %v904
    %v1257 = vpack.c.b16 %v909, %v905
    %v1258 = vpack.c.b16 %v914, %v910
    %v1259 = vpack.c.b16 %v915, %v911
    %v1260 = vpack.c.b16 %v916, %v912
    %v1261 = vpack.c.b16 %v917, %v913
    %v1262 = vpack.c.b16 %v922, %v918
    %v1263 = vpack.c.b16 %v923, %v919
    %v1264 = vpack.c.b16 %v924, %v920
    %v1265 = vpack.c.b16 %v925, %v921
    %v1266 = vpack.c.b16 %v930, %v926
    %v1267 = vpack.c.b16 %v931, %v927
    %v1268 = vpack.c.b16 %v932, %v928
    %v1269 = vpack.c.b16 %v933, %v929
    %v1270 = vpack.c.b16 %v938, %v934
    %v1271 = vpack.c.b16 %v939, %v935
    %v1272 = vpack.c.b16 %v940, %v936
    %v1273 = vpack.c.b16 %v941, %v937
    %v1274 = vpack.c.b16 %v946, %v942
    %v1275 = vpack.c.b16 %v947, %v943
    %v1276 = vpack.c.b16 %v948, %v944
    %v1277 = vpack.c.b16 %v949, %v945
    %v1278 = vpack.c.b16 %v954, %v950
    %v1279 = vpack.c.b16 %v955, %v951
    %v1280 = vpack.c.b16 %v956, %v952
    %v1281 = vpack.c.b16 %v957, %v953
    %v1282 = vpack.c.b16 %v962, %v958
    %v1283 = vpack.c.b16 %v963, %v959
    %v1284 = vpack.c.b16 %v964, %v960
    %v1285 = vpack.c.b16 %v965, %v961
    %v1286 = vpack.c.b16 %v970, %v966
    %v1287 = vpack.c.b16 %v971, %v967
    %v1288 = vpack.c.b16 %v972, %v968
    %v1289 = vpack.c.b16 %v973, %v969
    %v1290 = vpack.c.b16 %v978, %v974
    %v1291 = vpack.c.b16 %v979, %v975
    %v1292 = vpack.c.b16 %v980, %v976
    %v1293 = vpack.c.b16 %v981, %v977
    %v1294 = vpack.c.b16 %v986, %v982
    %v1295 = vpack.c.b16 %v987, %v983
    %v1296 = vpack.c.b16 %v988, %v984
    %v1297 = vpack.c.b16 %v989, %v985
    %v1298 = vpack.c.b16 %v994, %v990
    %v1299 = vpack.c.b16 %v995, %v991
    %v1300 = vpack.c.b16 %v996, %v992
    %v1301 = vpack.c.b16 %v997, %v993
    %v1302 = vpack.c.b16 %v1002, %v998
    %v1303 = vpack.c.b16 %v1003, %v999
    %v1304 = vpack.c.b16 %v1004, %v1000
    %v1305 = vpack.c.b16 %v1005, %v1001
    %v1306 = vpack.c.b16 %v1010, %v1006
    %v1307 = vpack.c.b16 %v1011, %v1007
    %v1308 = vpack.c.b16 %v1012, %v1008
    %v1309 = vpack.c.b16 %v1013, %v1009
    %v1310 = vpack.c.b16 %v1018, %v1014
    %v1311 = vpack.c.b16 %v1019, %v1015
    %v1312 = vpack.c.b16 %v1020, %v1016
    %v1313 = vpack.c.b16 %v1021, %v1017
    %v1314 = vpack.c.b16 %v1026, %v1022
    %v1315 = vpack.c.b16 %v1027, %v1023
    %v1316 = vpack.c.b16 %v1028, %v1024
    %v1317 = vpack.c.b16 %v1029, %v1025
    %v1318 = vpack.c.b16 %v1034, %v1030
    %v1319 = vpack.c.b16 %v1035, %v1031
    %v1320 = vpack.c.b16 %v1036, %v1032
    %v1321 = vpack.c.b16 %v1037, %v1033
    %v1322 = vpack.c.b16 %v1042, %v1038
    %v1323 = vpack.c.b16 %v1043, %v1039
    %v1324 = vpack.c.b16 %v1044, %v1040
    %v1325 = vpack.c.b16 %v1045, %v1041
    %v1326 = vpack.c.b16 %v1050, %v1046
    %v1327 = vpack.c.b16 %v1051, %v1047
    %v1328 = vpack.c.b16 %v1052, %v1048
    %v1329 = vpack.c.b16 %v1053, %v1049
    %v1330 = vpack.c.b16 %v1058, %v1054
    %v1331 = vpack.c.b16 %v1059, %v1055
    %v1332 = vpack.c.b16 %v1060, %v1056
    %v1333 = vpack.c.b16 %v1061, %v1057
    %v1334 = vpack.c.b16 %v1066, %v1062
    %v1335 = vpack.c.b16 %v1067, %v1063
    %v1336 = vpack.c.b16 %v1068, %v1064
    %v1337 = vpack.c.b16 %v1069, %v1065
    %v1338 = vpack.c.b16 %v1074, %v1070
    %v1339 = vpack.c.b16 %v1075, %v1071
    %v1340 = vpack.c.b16 %v1076, %v1072
    %v1341 = vpack.c.b16 %v1077, %v1073
    %v1342 = vpack.c.b16 %v1082, %v1078
    %v1343 = vpack.c.b16 %v1083, %v1079
    %v1344 = vpack.c.b16 %v1084, %v1080
    %v1345 = vpack.c.b16 %v1085, %v1081
    %v1346 = vpack.c.b16 %v1090, %v1086
    %v1347 = vpack.c.b16 %v1091, %v1087
    %v1348 = vpack.c.b16 %v1092, %v1088
    %v1349 = vpack.c.b16 %v1093, %v1089
    %v1350 = vpack.c.b16 %v1098, %v1094
    %v1351 = vpack.c.b16 %v1099, %v1095
    %v1352 = vpack.c.b16 %v1100, %v1096
    %v1353 = vpack.c.b16 %v1101, %v1097
    %v1354 = vpack.c.b16 %v1106, %v1102
    %v1355 = vpack.c.b16 %v1107, %v1103
    %v1356 = vpack.c.b16 %v1108, %v1104
    %v1357 = vpack.c.b16 %v1109, %v1105
    %v1358 = vpack.c.b16 %v1114, %v1110
    %v1359 = vpack.c.b16 %v1115, %v1111
    %v1360 = vpack.c.b16 %v1116, %v1112
    %v1361 = vpack.c.b16 %v1117, %v1113
    %v1362 = vpack.c.b16 %v1122, %v1118
    %v1363 = vpack.c.b16 %v1123, %v1119
    %v1364 = vpack.c.b16 %v1124, %v1120
    %v1365 = vpack.c.b16 %v1125, %v1121
    %v1366 = vpack.c.b16 %v1130, %v1126
    %v1367 = vpack.c.b16 %v1131, %v1127
    %v1368 = vpack.c.b16 %v1132, %v1128
    %v1369 = vpack.c.b16 %v1133, %v1129
    %v1370 = vpack.c.b16 %v1138, %v1134
    %v1371 = vpack.c.b16 %v1139, %v1135
    %v1372 = vpack.c.b16 %v1140, %v1136
    %v1373 = vpack.c.b16 %v1141, %v1137
    %v1374 = vpack.c.b16 %v1146, %v1142
    %v1375 = vpack.c.b16 %v1147, %v1143
    %v1376 = vpack.c.b16 %v1148, %v1144
    %v1377 = vpack.c.b16 %v1149, %v1145
    %v1378 = vpack.c.b16 %v1154, %v1150
    %v1379 = vpack.c.b16 %v1155, %v1151
    %v1380 = vpack.c.b16 %v1156, %v1152
    %v1381 = vpack.c.b16 %v1157, %v1153
    %v1382 = vpack.c.b16 %v1162, %v1158
    %v1383 = vpack.c.b16 %v1163, %v1159
    %v1384 = vpack.c.b16 %v1164, %v1160
    %v1385 = vpack.c.b16 %v1165, %v1161
    %v1386 = vpack.c.b16 %v1170, %v1166
    %v1387 = vpack.c.b16 %v1171, %v1167
    %v1388 = vpack.c.b16 %v1172, %v1168
    %v1389 = vpack.c.b16 %v1173, %v1169
    %v1390 = vpack.c.b16 %v1178, %v1174
    %v1391 = vpack.c.b16 %v1179, %v1175
    %v1392 = vpack.c.b16 %v1180, %v1176
    %v1393 = vpack.c.b16 %v1181, %v1177
    %v1394 = vpack.c.b16 %v1186, %v1182
    %v1395 = vpack.c.b16 %v1187, %v1183
    %v1396 = vpack.c.b16 %v1188, %v1184
    %v1397 = vpack.c.b16 %v1189, %v1185
    %v1398 = vpack.c.b16 %v1194, %v1190
    %v1399 = vpack.c.b16 %v1195, %v1191
    %v1400 = vpack.c.b16 %v1196, %v1192
    %v1401 = vpack.c.b16 %v1197, %v1193
    %v1402 = vpack.c.b16 %v1202, %v1198
    %v1403 = vpack.c.b16 %v1203, %v1199
    %v1404 = vpack.c.b16 %v1204, %v1200
    %v1405 = vpack.c.b16 %v1205, %v1201
    %v1406 = vpack.c.b16 %v1210, %v1206
    %v1407 = vpack.c.b16 %v1211, %v1207
    %v1408 = vpack.c.b16 %v1212, %v1208
    %v1409 = vpack.c.b16 %v1213, %v1209
    %vm1606 = vcmask 130048
    %v1608 = vsel %vm1606, %v619, 0
    %1610 = vmatprep.subr.bf16.mxu0 %v1215
    %1611 = vmatpush1.bf16.msra.mxu0 %v1214
    %1612 = vmatprep.subr.bf16.mxu0 %v1219
    %1613 = vmatpush1.bf16.msra.mxu0 %v1218
    %1614 = vmatprep.subr.bf16.mxu0 %v1223
    %1615 = vmatpush1.bf16.msra.mxu0 %v1222
    %1616 = vmatprep.subr.bf16.mxu0 %v1227
    %1617 = vmatpush1.bf16.msra.mxu0 %v1226
    %1618 = vmatprep.subr.bf16.mxu0 %v1231
    %1619 = vmatpush1.bf16.msra.mxu0 %v1230
    %1620 = vmatprep.subr.bf16.mxu0 %v1235
    %1621 = vmatpush1.bf16.msra.mxu0 %v1234
    %1622 = vmatprep.subr.bf16.mxu0 %v1239
    %1623 = vmatpush1.bf16.msra.mxu0 %v1238
    %1624 = vmatprep.subr.bf16.mxu0 %v1243
    %1625 = vmatpush1.bf16.msra.mxu0 %v1242
    %1626 = vmatprep.subr.bf16.mxu0 %v1247
    %1627 = vmatpush1.bf16.msra.mxu0 %v1246
    %1628 = vmatprep.subr.bf16.mxu0 %v1251
    %1629 = vmatpush1.bf16.msra.mxu0 %v1250
    %1630 = vmatprep.subr.bf16.mxu0 %v1255
    %1631 = vmatpush1.bf16.msra.mxu0 %v1254
    %1632 = vmatprep.subr.bf16.mxu0 %v1259
    %1633 = vmatpush1.bf16.msra.mxu0 %v1258
    %1634 = vmatprep.subr.bf16.mxu0 %v1263
    %1635 = vmatpush1.bf16.msra.mxu0 %v1262
    %1636 = vmatprep.subr.bf16.mxu0 %v1267
    %1637 = vmatpush1.bf16.msra.mxu0 %v1266
    %1638 = vmatprep.subr.bf16.mxu0 %v1271
    %1639 = vmatpush1.bf16.msra.mxu0 %v1270
    %1640 = vmatprep.subr.bf16.mxu0 %v1275
    %1641 = vmatpush1.bf16.msra.mxu0 %v1274
    %1642 = vmatprep.mubr.bf16.mxu0 %v614
    %1643 = vmatmul.mubr.bf16.gmra.mrb[0].mxu0 %v613
    %v1644 = vpop.f32.mrb[0].mxu0
    %v1645 = vadd.f32 0.0, %v1644
    %v1646 = vpop.f32.mrb[0].mxu0
    %v1647 = vadd.f32 0.0, %v1646
    %v1648 = vpop.f32.mrb[0].mxu0
    %v1649 = vpop.f32.mrb[0].mxu0
    %1650 = vdwg.mxu0
    %1651 = vmatprep.subr.bf16.mxu0 %v1279
    %1652 = vmatpush1.bf16.msra.mxu0 %v1278
    %1653 = vmatprep.subr.bf16.mxu0 %v1283
    %1654 = vmatpush1.bf16.msra.mxu0 %v1282
    %1655 = vmatprep.subr.bf16.mxu0 %v1287
    %1656 = vmatpush1.bf16.msra.mxu0 %v1286
    %1657 = vmatprep.subr.bf16.mxu0 %v1291
    %1658 = vmatpush1.bf16.msra.mxu0 %v1290
    %1659 = vmatprep.subr.bf16.mxu0 %v1295
    %1660 = vmatpush1.bf16.msra.mxu0 %v1294
    %1661 = vmatprep.subr.bf16.mxu0 %v1299
    %1662 = vmatpush1.bf16.msra.mxu0 %v1298
    %1663 = vmatprep.subr.bf16.mxu0 %v1303
    %1664 = vmatpush1.bf16.msra.mxu0 %v1302
    %1665 = vmatprep.subr.bf16.mxu0 %v1307
    %1666 = vmatpush1.bf16.msra.mxu0 %v1306
    %1667 = vmatprep.subr.bf16.mxu0 %v1311
    %1668 = vmatpush1.bf16.msra.mxu0 %v1310
    %1669 = vmatprep.subr.bf16.mxu0 %v1315
    %1670 = vmatpush1.bf16.msra.mxu0 %v1314
    %1671 = vmatprep.subr.bf16.mxu0 %v1319
    %1672 = vmatpush1.bf16.msra.mxu0 %v1318
    %1673 = vmatprep.subr.bf16.mxu0 %v1323
    %1674 = vmatpush1.bf16.msra.mxu0 %v1322
    %1675 = vmatprep.subr.bf16.mxu0 %v1327
    %1676 = vmatpush1.bf16.msra.mxu0 %v1326
    %1677 = vmatprep.subr.bf16.mxu0 %v1331
    %1678 = vmatpush1.bf16.msra.mxu0 %v1330
    %1679 = vmatprep.subr.bf16.mxu0 %v1335
    %1680 = vmatpush1.bf16.msra.mxu0 %v1334
    %1681 = vmatprep.subr.bf16.mxu0 %v1339
    %1682 = vmatpush1.bf16.msra.mxu0 %v1338
    %1683 = vmatprep.mubr.bf16.mxu0 %v616
    %1684 = vmatmul.mubr.bf16.gmra.mrb[0].mxu0 %v615
    %v1685 = vpop.f32.mrb[0].mxu0
    %v1686 = vadd.f32 %v1645, %v1685
    %v1687 = vpop.f32.mrb[0].mxu0
    %v1688 = vadd.f32 %v1647, %v1687
    %v1689 = vpop.f32.mrb[0].mxu0
    %v1690 = vpop.f32.mrb[0].mxu0
    %1691 = vdwg.mxu0
    %1692 = vmatprep.subr.bf16.mxu0 %v1343
    %1693 = vmatpush1.bf16.msra.mxu0 %v1342
    %1694 = vmatprep.subr.bf16.mxu0 %v1347
    %1695 = vmatpush1.bf16.msra.mxu0 %v1346
    %1696 = vmatprep.subr.bf16.mxu0 %v1351
    %1697 = vmatpush1.bf16.msra.mxu0 %v1350
    %1698 = vmatprep.subr.bf16.mxu0 %v1355
    %1699 = vmatpush1.bf16.msra.mxu0 %v1354
    %1700 = vmatprep.subr.bf16.mxu0 %v1359
    %1701 = vmatpush1.bf16.msra.mxu0 %v1358
    %1702 = vmatprep.subr.bf16.mxu0 %v1363
    %1703 = vmatpush1.bf16.msra.mxu0 %v1362
    %1704 = vmatprep.subr.bf16.mxu0 %v1367
    %1705 = vmatpush1.bf16.msra.mxu0 %v1366
    %1706 = vmatprep.subr.bf16.mxu0 %v1371
    %1707 = vmatpush1.bf16.msra.mxu0 %v1370
    %1708 = vmatprep.subr.bf16.mxu0 %v1375
    %1709 = vmatpush1.bf16.msra.mxu0 %v1374
    %1710 = vmatprep.subr.bf16.mxu0 %v1379
    %1711 = vmatpush1.bf16.msra.mxu0 %v1378
    %1712 = vmatprep.subr.bf16.mxu0 %v1383
    %1713 = vmatpush1.bf16.msra.mxu0 %v1382
    %1714 = vmatprep.subr.bf16.mxu0 %v1387
    %1715 = vmatpush1.bf16.msra.mxu0 %v1386
    %1716 = vmatprep.subr.bf16.mxu0 %v1391
    %1717 = vmatpush1.bf16.msra.mxu0 %v1390
    %1718 = vmatprep.subr.bf16.mxu0 %v1395
    %1719 = vmatpush1.bf16.msra.mxu0 %v1394
    %1720 = vmatprep.subr.bf16.mxu0 %v1399
    %1721 = vmatpush1.bf16.msra.mxu0 %v1398
    %1722 = vmatprep.subr.bf16.mxu0 %v1403
    %1723 = vmatpush1.bf16.msra.mxu0 %v1402
    %1724 = vmatprep.mubr.bf16.mxu0 %v618
    %1725 = vmatmul.mubr.bf16.gmra.mrb[0].mxu0 %v617
    %v1726 = vpop.f32.mrb[0].mxu0
    %v1727 = vadd.f32 %v1686, %v1726
    %v1728 = vpop.f32.mrb[0].mxu0
    %v1729 = vadd.f32 %v1688, %v1728
    %v1730 = vpop.f32.mrb[0].mxu0
    %v1731 = vpop.f32.mrb[0].mxu0
    %1732 = vdwg.mxu0
    %1733 = vmatprep.subr.bf16.mxu0 %v1407
    %1734 = vmatpush1.bf16.msra.mxu0 %v1406
    %1735 = vmatprep.subr.bf16.mxu0 0
    %1736 = vmatpush1.bf16.msra.mxu0 0
    %1737 = vmatprep.subr.bf16.mxu0 0
    %1738 = vmatpush1.bf16.msra.mxu0 0
    %1739 = vmatprep.subr.bf16.mxu0 0
    %1740 = vmatpush1.bf16.msra.mxu0 0
    %1741 = vmatprep.subr.bf16.mxu0 0
    %1742 = vmatpush1.bf16.msra.mxu0 0
    %1743 = vmatprep.subr.bf16.mxu0 0
    %1744 = vmatpush1.bf16.msra.mxu0 0
    %1745 = vmatprep.subr.bf16.mxu0 0
    %1746 = vmatpush1.bf16.msra.mxu0 0
    %1747 = vmatprep.subr.bf16.mxu0 0
    %1748 = vmatpush1.bf16.msra.mxu0 0
    %1749 = vmatprep.subr.bf16.mxu0 0
    %1750 = vmatpush1.bf16.msra.mxu0 0
    %1751 = vmatprep.subr.bf16.mxu0 0
    %1752 = vmatpush1.bf16.msra.mxu0 0
    %1753 = vmatprep.subr.bf16.mxu0 0
    %1754 = vmatpush1.bf16.msra.mxu0 0
    %1755 = vmatprep.subr.bf16.mxu0 0
    %1756 = vmatpush1.bf16.msra.mxu0 0
    %1757 = vmatprep.subr.bf16.mxu0 0
    %1758 = vmatpush1.bf16.msra.mxu0 0
    %1759 = vmatprep.subr.bf16.mxu0 0
    %1760 = vmatpush1.bf16.msra.mxu0 0
    %1761 = vmatprep.subr.bf16.mxu0 0
    %1762 = vmatpush1.bf16.msra.mxu0 0
    %1763 = vmatprep.subr.bf16.mxu0 0
    %1764 = vmatpush1.bf16.msra.mxu0 0
    %1765 = vmatprep.mubr.bf16.mxu0 0
    %1766 = vmatmul.mubr.bf16.gmra.mrb[0].mxu0 %v1608
    %v1767 = vpop.f32.mrb[0].mxu0
    %v1768 = vadd.f32 %v1727, %v1767
    %v1769 = vpop.f32.mrb[0].mxu0
    %v1770 = vadd.f32 %v1729, %v1769
    %v1771 = vpop.f32.mrb[0].mxu0
    %v1772 = vpop.f32.mrb[0].mxu0
    %1773 = vdwg.mxu0
    %1774 = vmatprep.subr.bf16.mxu0 %v1217
    %1775 = vmatpush1.bf16.msra.mxu0 %v1216
    %1776 = vmatprep.subr.bf16.mxu0 %v1221
    %1777 = vmatpush1.bf16.msra.mxu0 %v1220
    %1778 = vmatprep.subr.bf16.mxu0 %v1225
    %1779 = vmatpush1.bf16.msra.mxu0 %v1224
    %1780 = vmatprep.subr.bf16.mxu0 %v1229
    %1781 = vmatpush1.bf16.msra.mxu0 %v1228
    %1782 = vmatprep.subr.bf16.mxu0 %v1233
    %1783 = vmatpush1.bf16.msra.mxu0 %v1232
    %1784 = vmatprep.subr.bf16.mxu0 %v1237
    %1785 = vmatpush1.bf16.msra.mxu0 %v1236
    %1786 = vmatprep.subr.bf16.mxu0 %v1241
    %1787 = vmatpush1.bf16.msra.mxu0 %v1240
    %1788 = vmatprep.subr.bf16.mxu0 %v1245
    %1789 = vmatpush1.bf16.msra.mxu0 %v1244
    %1790 = vmatprep.subr.bf16.mxu0 %v1249
    %1791 = vmatpush1.bf16.msra.mxu0 %v1248
    %1792 = vmatprep.subr.bf16.mxu0 %v1253
    %1793 = vmatpush1.bf16.msra.mxu0 %v1252
    %1794 = vmatprep.subr.bf16.mxu0 %v1257
    %1795 = vmatpush1.bf16.msra.mxu0 %v1256
    %1796 = vmatprep.subr.bf16.mxu0 %v1261
    %1797 = vmatpush1.bf16.msra.mxu0 %v1260
    %1798 = vmatprep.subr.bf16.mxu0 %v1265
    %1799 = vmatpush1.bf16.msra.mxu0 %v1264
    %1800 = vmatprep.subr.bf16.mxu0 %v1269
    %1801 = vmatpush1.bf16.msra.mxu0 %v1268
    %1802 = vmatprep.subr.bf16.mxu0 %v1273
    %1803 = vmatpush1.bf16.msra.mxu0 %v1272
    %1804 = vmatprep.subr.bf16.mxu0 %v1277
    %1805 = vmatpush1.bf16.msra.mxu0 %v1276
    %1806 = vmatprep.mubr.bf16.mxu0 %v614
    %1807 = vmatmul.mubr.bf16.gmra.mrb[0].mxu0 %v613
    %v1808 = vpop.f32.mrb[0].mxu0
    %v1809 = vadd.f32 0.0, %v1808
    %v1810 = vpop.f32.mrb[0].mxu0
    %v1811 = vadd.f32 0.0, %v1810
    %v1812 = vpop.f32.mrb[0].mxu0
    %v1813 = vpop.f32.mrb[0].mxu0
    %1814 = vdwg.mxu0
    %1815 = vmatprep.subr.bf16.mxu0 %v1281
    %1816 = vmatpush1.bf16.msra.mxu0 %v1280
    %1817 = vmatprep.subr.bf16.mxu0 %v1285
    %1818 = vmatpush1.bf16.msra.mxu0 %v1284
    %1819 = vmatprep.subr.bf16.mxu0 %v1289
    %1820 = vmatpush1.bf16.msra.mxu0 %v1288
    %1821 = vmatprep.subr.bf16.mxu0 %v1293
    %1822 = vmatpush1.bf16.msra.mxu0 %v1292
    %1823 = vmatprep.subr.bf16.mxu0 %v1297
    %1824 = vmatpush1.bf16.msra.mxu0 %v1296
    %1825 = vmatprep.subr.bf16.mxu0 %v1301
    %1826 = vmatpush1.bf16.msra.mxu0 %v1300
    %1827 = vmatprep.subr.bf16.mxu0 %v1305
    %1828 = vmatpush1.bf16.msra.mxu0 %v1304
    %1829 = vmatprep.subr.bf16.mxu0 %v1309
    %1830 = vmatpush1.bf16.msra.mxu0 %v1308
    %1831 = vmatprep.subr.bf16.mxu0 %v1313
    %1832 = vmatpush1.bf16.msra.mxu0 %v1312
    %1833 = vmatprep.subr.bf16.mxu0 %v1317
    %1834 = vmatpush1.bf16.msra.mxu0 %v1316
    %1835 = vmatprep.subr.bf16.mxu0 %v1321
    %1836 = vmatpush1.bf16.msra.mxu0 %v1320
    %1837 = vmatprep.subr.bf16.mxu0 %v1325
    %1838 = vmatpush1.bf16.msra.mxu0 %v1324
    %1839 = vmatprep.subr.bf16.mxu0 %v1329
    %1840 = vmatpush1.bf16.msra.mxu0 %v1328
    %1841 = vmatprep.subr.bf16.mxu0 %v1333
    %1842 = vmatpush1.bf16.msra.mxu0 %v1332
    %1843 = vmatprep.subr.bf16.mxu0 %v1337
    %1844 = vmatpush1.bf16.msra.mxu0 %v1336
    %1845 = vmatprep.subr.bf16.mxu0 %v1341
    %1846 = vmatpush1.bf16.msra.mxu0 %v1340
    %1847 = vmatprep.mubr.bf16.mxu0 %v616
    %1848 = vmatmul.mubr.bf16.gmra.mrb[0].mxu0 %v615
    %v1849 = vpop.f32.mrb[0].mxu0
    %v1850 = vadd.f32 %v1809, %v1849
    %v1851 = vpop.f32.mrb[0].mxu0
    %v1852 = vadd.f32 %v1811, %v1851
    %v1853 = vpop.f32.mrb[0].mxu0
    %v1854 = vpop.f32.mrb[0].mxu0
    %1855 = vdwg.mxu0
    %1856 = vmatprep.subr.bf16.mxu0 %v1345
    %1857 = vmatpush1.bf16.msra.mxu0 %v1344
    %1858 = vmatprep.subr.bf16.mxu0 %v1349
    %1859 = vmatpush1.bf16.msra.mxu0 %v1348
    %1860 = vmatprep.subr.bf16.mxu0 %v1353
    %1861 = vmatpush1.bf16.msra.mxu0 %v1352
    %1862 = vmatprep.subr.bf16.mxu0 %v1357
    %1863 = vmatpush1.bf16.msra.mxu0 %v1356
    %1864 = vmatprep.subr.bf16.mxu0 %v1361
    %1865 = vmatpush1.bf16.msra.mxu0 %v1360
    %1866 = vmatprep.subr.bf16.mxu0 %v1365
    %1867 = vmatpush1.bf16.msra.mxu0 %v1364
    %1868 = vmatprep.subr.bf16.mxu0 %v1369
    %1869 = vmatpush1.bf16.msra.mxu0 %v1368
    %1870 = vmatprep.subr.bf16.mxu0 %v1373
    %1871 = vmatpush1.bf16.msra.mxu0 %v1372
    %1872 = vmatprep.subr.bf16.mxu0 %v1377
    %1873 = vmatpush1.bf16.msra.mxu0 %v1376
    %1874 = vmatprep.subr.bf16.mxu0 %v1381
    %1875 = vmatpush1.bf16.msra.mxu0 %v1380
    %1876 = vmatprep.subr.bf16.mxu0 %v1385
    %1877 = vmatpush1.bf16.msra.mxu0 %v1384
    %1878 = vmatprep.subr.bf16.mxu0 %v1389
    %1879 = vmatpush1.bf16.msra.mxu0 %v1388
    %1880 = vmatprep.subr.bf16.mxu0 %v1393
    %1881 = vmatpush1.bf16.msra.mxu0 %v1392
    %1882 = vmatprep.subr.bf16.mxu0 %v1397
    %1883 = vmatpush1.bf16.msra.mxu0 %v1396
    %1884 = vmatprep.subr.bf16.mxu0 %v1401
    %1885 = vmatpush1.bf16.msra.mxu0 %v1400
    %1886 = vmatprep.subr.bf16.mxu0 %v1405
    %1887 = vmatpush1.bf16.msra.mxu0 %v1404
    %1888 = vmatprep.mubr.bf16.mxu0 %v618
    %1889 = vmatmul.mubr.bf16.gmra.mrb[0].mxu0 %v617
    %v1890 = vpop.f32.mrb[0].mxu0
    %v1891 = vadd.f32 %v1850, %v1890
    %v1892 = vpop.f32.mrb[0].mxu0
    %v1893 = vadd.f32 %v1852, %v1892
    %v1894 = vpop.f32.mrb[0].mxu0
    %v1895 = vpop.f32.mrb[0].mxu0
    %1896 = vdwg.mxu0
    %1897 = vmatprep.subr.bf16.mxu0 %v1409
    %1898 = vmatpush1.bf16.msra.mxu0 %v1408
    %1899 = vmatprep.subr.bf16.mxu0 0
    %1900 = vmatpush1.bf16.msra.mxu0 0
    %1901 = vmatprep.subr.bf16.mxu0 0
    %1902 = vmatpush1.bf16.msra.mxu0 0
    %1903 = vmatprep.subr.bf16.mxu0 0
    %1904 = vmatpush1.bf16.msra.mxu0 0
    %1905 = vmatprep.subr.bf16.mxu0 0
    %1906 = vmatpush1.bf16.msra.mxu0 0
    %1907 = vmatprep.subr.bf16.mxu0 0
    %1908 = vmatpush1.bf16.msra.mxu0 0
    %1909 = vmatprep.subr.bf16.mxu0 0
    %1910 = vmatpush1.bf16.msra.mxu0 0
    %1911 = vmatprep.subr.bf16.mxu0 0
    %1912 = vmatpush1.bf16.msra.mxu0 0
    %1913 = vmatprep.subr.bf16.mxu0 0
    %1914 = vmatpush1.bf16.msra.mxu0 0
    %1915 = vmatprep.subr.bf16.mxu0 0
    %1916 = vmatpush1.bf16.msra.mxu0 0
    %1917 = vmatprep.subr.bf16.mxu0 0
    %1918 = vmatpush1.bf16.msra.mxu0 0
    %1919 = vmatprep.subr.bf16.mxu0 0
    %1920 = vmatpush1.bf16.msra.mxu0 0
    %1921 = vmatprep.subr.bf16.mxu0 0
    %1922 = vmatpush1.bf16.msra.mxu0 0
    %1923 = vmatprep.subr.bf16.mxu0 0
    %1924 = vmatpush1.bf16.msra.mxu0 0
    %1925 = vmatprep.subr.bf16.mxu0 0
    %1926 = vmatpush1.bf16.msra.mxu0 0
    %1927 = vmatprep.subr.bf16.mxu0 0
    %1928 = vmatpush1.bf16.msra.mxu0 0
    %1929 = vmatprep.mubr.bf16.mxu0 0
    %1930 = vmatmul.mubr.bf16.gmra.mrb[0].mxu0 %v1608
    %v1931 = vpop.f32.mrb[0].mxu0
    %v1932 = vadd.f32 %v1891, %v1931
    %v1933 = vpop.f32.mrb[0].mxu0
    %v1934 = vadd.f32 %v1893, %v1933
    %v1935 = vpop.f32.mrb[0].mxu0
    %v1936 = vpop.f32.mrb[0].mxu0
    %1937 = vdwg.mxu0
    %v1938 = vld [vmem:[%s3] sm:$0xf]
    %v1940 = vlaneseq
    %v1941 = vshrl.u32 %v1940, 7
    %v1942 = vsub.s32 0, %v1941
    %v1943 = vrot.slane %v1938, %v1942
    %v1944 = vlaneseq
    %v1945 = vshrl.u32 %v1944, 7
    %v1946 = vsub.s32 1, %v1945
    %v1947 = vrot.slane %v1938, %v1946
    %v1948 = vlaneseq
    %v1949 = vshrl.u32 %v1948, 7
    %v1950 = vsub.s32 2, %v1949
    %v1951 = vrot.slane %v1938, %v1950
    %v1952 = vlaneseq
    %v1953 = vshrl.u32 %v1952, 7
    %v1954 = vsub.s32 3, %v1953
    %v1955 = vrot.slane %v1938, %v1954
    %v1960 = vmul.f32 %v1768, %v1943
    %v1961 = vmul.f32 %v1770, %v1947
    %v1962 = vmul.f32 %v1932, %v1951
    %v1963 = vmul.f32 %v1934, %v1955
    %v1964 = vld [vmem:[#allocation2] sm:$0xf]
    %v1966 = vlaneseq
    %v1967 = vshrl.u32 %v1966, 7
    %v1968 = vsub.s32 0, %v1967
    %v1969 = vrot.slane %v1964, %v1968
    %v1970 = vlaneseq
    %v1971 = vshrl.u32 %v1970, 7
    %v1972 = vsub.s32 1, %v1971
    %v1973 = vrot.slane %v1964, %v1972
    %v1974 = vlaneseq
    %v1975 = vshrl.u32 %v1974, 7
    %v1976 = vsub.s32 2, %v1975
    %v1977 = vrot.slane %v1964, %v1976
    %v1978 = vlaneseq
    %v1979 = vshrl.u32 %v1978, 7
    %v1980 = vsub.s32 3, %v1979
    %v1981 = vrot.slane %v1964, %v1980
    %v1986 = vadd.f32 %v1960, %v1969
    %v1987 = vadd.f32 %v1961, %v1973
    %v1988 = vadd.f32 %v1962, %v1977
    %v1989 = vadd.f32 %v1963, %v1981
    %v1990 = vmax.f32 %v1986, 0.0
    %v1991 = vmax.f32 %v1987, 0.0
    %v1992 = vmax.f32 %v1988, 0.0
    %v1993 = vmax.f32 %v1989, 0.0
    %v1994 = vpack.c.bf16 %v1990, %v1990
    %v1995 = vpack.c.bf16 %v1991, %v1991
    %v1996 = vpack.c.bf16 %v1992, %v1992
    %v1997 = vpack.c.bf16 %v1993, %v1993
    %v1998 = vld [vmem:[%s5] sm:$0xff]
    %v1999 = vld [vmem:[%s5 + $0x8] sm:$0xff]
    %v2000 = vld [vmem:[%s5 + $0x10] sm:$0xff]
    %v2001 = vld [vmem:[%s5 + $0x18] sm:$0xff]
    %v2002 = vld [vmem:[%s5 + $0x20] sm:$0xff]
    %v2003 = vld [vmem:[%s5 + $0x28] sm:$0xff]
    %v2004 = vld [vmem:[%s5 + $0x30] sm:$0xff]
    %v2005 = vld [vmem:[%s5 + $0x38] sm:$0xff]
    %v2006 = vld [vmem:[%s5 + $0x40] sm:$0xff]
    %v2007 = vld [vmem:[%s5 + $0x48] sm:$0xff]
    %v2008 = vld [vmem:[%s5 + $0x50] sm:$0xff]
    %v2009 = vld [vmem:[%s5 + $0x58] sm:$0xff]
    %v2010 = vld [vmem:[%s5 + $0x60] sm:$0xff]
    %v2011 = vld [vmem:[%s5 + $0x68] sm:$0xff]
    %v2012 = vld [vmem:[%s5 + $0x70] sm:$0xff]
    %v2013 = vld [vmem:[%s5 + $0x78] sm:$0xff]
    %v2014 = vld [vmem:[%s5 + $0x80] sm:$0xff]
    %v2015 = vld [vmem:[%s5 + $0x88] sm:$0xff]
    %v2016 = vld [vmem:[%s5 + $0x90] sm:$0xff]
    %v2017 = vld [vmem:[%s5 + $0x98] sm:$0xff]
    %v2018 = vld [vmem:[%s5 + $0xa0] sm:$0xff]
    %v2019 = vld [vmem:[%s5 + $0xa8] sm:$0xff]
    %v2020 = vld [vmem:[%s5 + $0xb0] sm:$0xff]
    %v2021 = vld [vmem:[%s5 + $0xb8] sm:$0xff]
    %v2022 = vld [vmem:[%s5 + $0xc0] sm:$0xff]
    %v2023 = vld [vmem:[%s5 + $0xc8] sm:$0xff]
    %v2024 = vld [vmem:[%s5 + $0xd0] sm:$0xff]
    %v2025 = vld [vmem:[%s5 + $0xd8] sm:$0xff]
    %v2026 = vld [vmem:[%s5 + $0xe0] sm:$0xff]
    %v2027 = vld [vmem:[%s5 + $0xe8] sm:$0xff]
    %v2028 = vld [vmem:[%s5 + $0xf0] sm:$0xff]
    %v2029 = vld [vmem:[%s5 + $0xf8] sm:$0xff]
    %v2030 = vld [vmem:[%s5 + $0x100] sm:$0xff]
    %v2031 = vld [vmem:[%s5 + $0x108] sm:$0xff]
    %v2032 = vld [vmem:[%s5 + $0x110] sm:$0xff]
    %v2033 = vld [vmem:[%s5 + $0x118] sm:$0xff]
    %v2034 = vld [vmem:[%s5 + $0x120] sm:$0xff]
    %v2035 = vld [vmem:[%s5 + $0x128] sm:$0xff]
    %v2036 = vld [vmem:[%s5 + $0x130] sm:$0xff]
    %v2037 = vld [vmem:[%s5 + $0x138] sm:$0xff]
    %v2038 = vld [vmem:[%s5 + $0x140] sm:$0xff]
    %v2039 = vld [vmem:[%s5 + $0x148] sm:$0xff]
    %v2040 = vld [vmem:[%s5 + $0x150] sm:$0xff]
    %v2041 = vld [vmem:[%s5 + $0x158] sm:$0xff]
    %v2042 = vld [vmem:[%s5 + $0x160] sm:$0xff]
    %v2043 = vld [vmem:[%s5 + $0x168] sm:$0xff]
    %v2044 = vld [vmem:[%s5 + $0x170] sm:$0xff]
    %v2045 = vld [vmem:[%s5 + $0x178] sm:$0xff]
    %v2046 = vld [vmem:[%s5 + $0x180] sm:$0xff]
    %v2047 = vld [vmem:[%s5 + $0x188] sm:$0xff]
    %v2048 = vld [vmem:[%s5 + $0x190] sm:$0xff]
    %v2049 = vld [vmem:[%s5 + $0x198] sm:$0xff]
    %v2050 = vld [vmem:[%s5 + $0x1a0] sm:$0xff]
    %v2051 = vld [vmem:[%s5 + $0x1a8] sm:$0xff]
    %v2052 = vld [vmem:[%s5 + $0x1b0] sm:$0xff]
    %v2053 = vld [vmem:[%s5 + $0x1b8] sm:$0xff]
    %v2054 = vld [vmem:[%s5 + $0x1c0] sm:$0xff]
    %v2055 = vld [vmem:[%s5 + $0x1c8] sm:$0xff]
    %v2056 = vld [vmem:[%s5 + $0x1d0] sm:$0xff]
    %v2057 = vld [vmem:[%s5 + $0x1d8] sm:$0xff]
    %v2058 = vld [vmem:[%s5 + $0x1e0] sm:$0xff]
    %v2059 = vld [vmem:[%s5 + $0x1e8] sm:$0xff]
    %v2060 = vld [vmem:[%s5 + $0x1f0] sm:$0xff]
    %v2061 = vld [vmem:[%s5 + $0x1f8] sm:$0xff]
    %v2062 = vunpack.c.l.s8.bf16 %v1998
    %v2063 = vunpack.c.l.s8.bf16 %v1999
    %v2064 = vunpack.c.l.s8.bf16 %v2000
    %v2065 = vunpack.c.l.s8.bf16 %v2001
    %v2066 = vunpack.c.h.s8.bf16 %v1998
    %v2067 = vunpack.c.h.s8.bf16 %v1999
    %v2068 = vunpack.c.h.s8.bf16 %v2000
    %v2069 = vunpack.c.h.s8.bf16 %v2001
    %v2070 = vunpack.c.l.s8.bf16 %v2002
    %v2071 = vunpack.c.l.s8.bf16 %v2003
    %v2072 = vunpack.c.l.s8.bf16 %v2004
    %v2073 = vunpack.c.l.s8.bf16 %v2005
    %v2074 = vunpack.c.h.s8.bf16 %v2002
    %v2075 = vunpack.c.h.s8.bf16 %v2003
    %v2076 = vunpack.c.h.s8.bf16 %v2004
    %v2077 = vunpack.c.h.s8.bf16 %v2005
    %v2078 = vunpack.c.l.s8.bf16 %v2006
    %v2079 = vunpack.c.l.s8.bf16 %v2007
    %v2080 = vunpack.c.l.s8.bf16 %v2008
    %v2081 = vunpack.c.l.s8.bf16 %v2009
    %v2082 = vunpack.c.h.s8.bf16 %v2006
    %v2083 = vunpack.c.h.s8.bf16 %v2007
    %v2084 = vunpack.c.h.s8.bf16 %v2008
    %v2085 = vunpack.c.h.s8.bf16 %v2009
    %v2086 = vunpack.c.l.s8.bf16 %v2010
    %v2087 = vunpack.c.l.s8.bf16 %v2011
    %v2088 = vunpack.c.l.s8.bf16 %v2012
    %v2089 = vunpack.c.l.s8.bf16 %v2013
    %v2090 = vunpack.c.h.s8.bf16 %v2010
    %v2091 = vunpack.c.h.s8.bf16 %v2011
    %v2092 = vunpack.c.h.s8.bf16 %v2012
    %v2093 = vunpack.c.h.s8.bf16 %v2013
    %v2094 = vunpack.c.l.s8.bf16 %v2014
    %v2095 = vunpack.c.l.s8.bf16 %v2015
    %v2096 = vunpack.c.l.s8.bf16 %v2016
    %v2097 = vunpack.c.l.s8.bf16 %v2017
    %v2098 = vunpack.c.h.s8.bf16 %v2014
    %v2099 = vunpack.c.h.s8.bf16 %v2015
    %v2100 = vunpack.c.h.s8.bf16 %v2016
    %v2101 = vunpack.c.h.s8.bf16 %v2017
    %v2102 = vunpack.c.l.s8.bf16 %v2018
    %v2103 = vunpack.c.l.s8.bf16 %v2019
    %v2104 = vunpack.c.l.s8.bf16 %v2020
    %v2105 = vunpack.c.l.s8.bf16 %v2021
    %v2106 = vunpack.c.h.s8.bf16 %v2018
    %v2107 = vunpack.c.h.s8.bf16 %v2019
    %v2108 = vunpack.c.h.s8.bf16 %v2020
    %v2109 = vunpack.c.h.s8.bf16 %v2021
    %v2110 = vunpack.c.l.s8.bf16 %v2022
    %v2111 = vunpack.c.l.s8.bf16 %v2023
    %v2112 = vunpack.c.l.s8.bf16 %v2024
    %v2113 = vunpack.c.l.s8.bf16 %v2025
    %v2114 = vunpack.c.h.s8.bf16 %v2022
    %v2115 = vunpack.c.h.s8.bf16 %v2023
    %v2116 = vunpack.c.h.s8.bf16 %v2024
    %v2117 = vunpack.c.h.s8.bf16 %v2025
    %v2118 = vunpack.c.l.s8.bf16 %v2026
    %v2119 = vunpack.c.l.s8.bf16 %v2027
    %v2120 = vunpack.c.l.s8.bf16 %v2028
    %v2121 = vunpack.c.l.s8.bf16 %v2029
    %v2122 = vunpack.c.h.s8.bf16 %v2026
    %v2123 = vunpack.c.h.s8.bf16 %v2027
    %v2124 = vunpack.c.h.s8.bf16 %v2028
    %v2125 = vunpack.c.h.s8.bf16 %v2029
    %v2126 = vunpack.c.l.s8.bf16 %v2030
    %v2127 = vunpack.c.l.s8.bf16 %v2031
    %v2128 = vunpack.c.l.s8.bf16 %v2032
    %v2129 = vunpack.c.l.s8.bf16 %v2033
    %v2130 = vunpack.c.h.s8.bf16 %v2030
    %v2131 = vunpack.c.h.s8.bf16 %v2031
    %v2132 = vunpack.c.h.s8.bf16 %v2032
    %v2133 = vunpack.c.h.s8.bf16 %v2033
    %v2134 = vunpack.c.l.s8.bf16 %v2034
    %v2135 = vunpack.c.l.s8.bf16 %v2035
    %v2136 = vunpack.c.l.s8.bf16 %v2036
    %v2137 = vunpack.c.l.s8.bf16 %v2037
    %v2138 = vunpack.c.h.s8.bf16 %v2034
    %v2139 = vunpack.c.h.s8.bf16 %v2035
    %v2140 = vunpack.c.h.s8.bf16 %v2036
    %v2141 = vunpack.c.h.s8.bf16 %v2037
    %v2142 = vunpack.c.l.s8.bf16 %v2038
    %v2143 = vunpack.c.l.s8.bf16 %v2039
    %v2144 = vunpack.c.l.s8.bf16 %v2040
    %v2145 = vunpack.c.l.s8.bf16 %v2041
    %v2146 = vunpack.c.h.s8.bf16 %v2038
    %v2147 = vunpack.c.h.s8.bf16 %v2039
    %v2148 = vunpack.c.h.s8.bf16 %v2040
    %v2149 = vunpack.c.h.s8.bf16 %v2041
    %v2150 = vunpack.c.l.s8.bf16 %v2042
    %v2151 = vunpack.c.l.s8.bf16 %v2043
    %v2152 = vunpack.c.l.s8.bf16 %v2044
    %v2153 = vunpack.c.l.s8.bf16 %v2045
    %v2154 = vunpack.c.h.s8.bf16 %v2042
    %v2155 = vunpack.c.h.s8.bf16 %v2043
    %v2156 = vunpack.c.h.s8.bf16 %v2044
    %v2157 = vunpack.c.h.s8.bf16 %v2045
    %v2158 = vunpack.c.l.s8.bf16 %v2046
    %v2159 = vunpack.c.l.s8.bf16 %v2047
    %v2160 = vunpack.c.l.s8.bf16 %v2048
    %v2161 = vunpack.c.l.s8.bf16 %v2049
    %v2162 = vunpack.c.h.s8.bf16 %v2046
    %v2163 = vunpack.c.h.s8.bf16 %v2047
    %v2164 = vunpack.c.h.s8.bf16 %v2048
    %v2165 = vunpack.c.h.s8.bf16 %v2049
    %v2166 = vunpack.c.l.s8.bf16 %v2050
    %v2167 = vunpack.c.l.s8.bf16 %v2051
    %v2168 = vunpack.c.l.s8.bf16 %v2052
    %v2169 = vunpack.c.l.s8.bf16 %v2053
    %v2170 = vunpack.c.h.s8.bf16 %v2050
    %v2171 = vunpack.c.h.s8.bf16 %v2051
    %v2172 = vunpack.c.h.s8.bf16 %v2052
    %v2173 = vunpack.c.h.s8.bf16 %v2053
    %v2174 = vunpack.c.l.s8.bf16 %v2054
    %v2175 = vunpack.c.l.s8.bf16 %v2055
    %v2176 = vunpack.c.l.s8.bf16 %v2056
    %v2177 = vunpack.c.l.s8.bf16 %v2057
    %v2178 = vunpack.c.h.s8.bf16 %v2054
    %v2179 = vunpack.c.h.s8.bf16 %v2055
    %v2180 = vunpack.c.h.s8.bf16 %v2056
    %v2181 = vunpack.c.h.s8.bf16 %v2057
    %v2182 = vunpack.c.l.s8.bf16 %v2058
    %v2183 = vunpack.c.l.s8.bf16 %v2059
    %v2184 = vunpack.c.l.s8.bf16 %v2060
    %v2185 = vunpack.c.l.s8.bf16 %v2061
    %v2186 = vunpack.c.h.s8.bf16 %v2058
    %v2187 = vunpack.c.h.s8.bf16 %v2059
    %v2188 = vunpack.c.h.s8.bf16 %v2060
    %v2189 = vunpack.c.h.s8.bf16 %v2061
    %2190 = vmatprep.subr.bf16.mxu0 %v2063
    %2191 = vmatpush1.bf16.msra.mxu0 %v2062
    %2192 = vmatprep.subr.bf16.mxu0 %v2067
    %2193 = vmatpush1.bf16.msra.mxu0 %v2066
    %2194 = vmatprep.subr.bf16.mxu0 %v2071
    %2195 = vmatpush1.bf16.msra.mxu0 %v2070
    %2196 = vmatprep.subr.bf16.mxu0 %v2075
    %2197 = vmatpush1.bf16.msra.mxu0 %v2074
    %2198 = vmatprep.subr.bf16.mxu0 %v2079
    %2199 = vmatpush1.bf16.msra.mxu0 %v2078
    %2200 = vmatprep.subr.bf16.mxu0 %v2083
    %2201 = vmatpush1.bf16.msra.mxu0 %v2082
    %2202 = vmatprep.subr.bf16.mxu0 %v2087
    %2203 = vmatpush1.bf16.msra.mxu0 %v2086
    %2204 = vmatprep.subr.bf16.mxu0 %v2091
    %2205 = vmatpush1.bf16.msra.mxu0 %v2090
    %2206 = vmatprep.subr.bf16.mxu0 %v2095
    %2207 = vmatpush1.bf16.msra.mxu0 %v2094
    %2208 = vmatprep.subr.bf16.mxu0 %v2099
    %2209 = vmatpush1.bf16.msra.mxu0 %v2098
    %2210 = vmatprep.subr.bf16.mxu0 %v2103
    %2211 = vmatpush1.bf16.msra.mxu0 %v2102
    %2212 = vmatprep.subr.bf16.mxu0 %v2107
    %2213 = vmatpush1.bf16.msra.mxu0 %v2106
    %2214 = vmatprep.subr.bf16.mxu0 %v2111
    %2215 = vmatpush1.bf16.msra.mxu0 %v2110
    %2216 = vmatprep.subr.bf16.mxu0 %v2115
    %2217 = vmatpush1.bf16.msra.mxu0 %v2114
    %2218 = vmatprep.subr.bf16.mxu0 %v2119
    %2219 = vmatpush1.bf16.msra.mxu0 %v2118
    %2220 = vmatprep.subr.bf16.mxu0 %v2123
    %2221 = vmatpush1.bf16.msra.mxu0 %v2122
    %2222 = vmatprep.mubr.bf16.mxu0 %v1995
    %2223 = vmatmul.mubr.bf16.gmra.mrb[0].mxu0 %v1994
    %v2224 = vpop.f32.mrb[0].mxu0
    %v2225 = vadd.f32 0.0, %v2224
    %v2226 = vpop.f32.mrb[0].mxu0
    %v2227 = vadd.f32 0.0, %v2226
    %v2228 = vpop.f32.mrb[0].mxu0
    %v2229 = vpop.f32.mrb[0].mxu0
    %2230 = vdwg.mxu0
    %2231 = vmatprep.subr.bf16.mxu0 %v2127
    %2232 = vmatpush1.bf16.msra.mxu0 %v2126
    %2233 = vmatprep.subr.bf16.mxu0 %v2131
    %2234 = vmatpush1.bf16.msra.mxu0 %v2130
    %2235 = vmatprep.subr.bf16.mxu0 %v2135
    %2236 = vmatpush1.bf16.msra.mxu0 %v2134
    %2237 = vmatprep.subr.bf16.mxu0 %v2139
    %2238 = vmatpush1.bf16.msra.mxu0 %v2138
    %2239 = vmatprep.subr.bf16.mxu0 %v2143
    %2240 = vmatpush1.bf16.msra.mxu0 %v2142
    %2241 = vmatprep.subr.bf16.mxu0 %v2147
    %2242 = vmatpush1.bf16.msra.mxu0 %v2146
    %2243 = vmatprep.subr.bf16.mxu0 %v2151
    %2244 = vmatpush1.bf16.msra.mxu0 %v2150
    %2245 = vmatprep.subr.bf16.mxu0 %v2155
    %2246 = vmatpush1.bf16.msra.mxu0 %v2154
    %2247 = vmatprep.subr.bf16.mxu0 %v2159
    %2248 = vmatpush1.bf16.msra.mxu0 %v2158
    %2249 = vmatprep.subr.bf16.mxu0 %v2163
    %2250 = vmatpush1.bf16.msra.mxu0 %v2162
    %2251 = vmatprep.subr.bf16.mxu0 %v2167
    %2252 = vmatpush1.bf16.msra.mxu0 %v2166
    %2253 = vmatprep.subr.bf16.mxu0 %v2171
    %2254 = vmatpush1.bf16.msra.mxu0 %v2170
    %2255 = vmatprep.subr.bf16.mxu0 %v2175
    %2256 = vmatpush1.bf16.msra.mxu0 %v2174
    %2257 = vmatprep.subr.bf16.mxu0 %v2179
    %2258 = vmatpush1.bf16.msra.mxu0 %v2178
    %2259 = vmatprep.subr.bf16.mxu0 %v2183
    %2260 = vmatpush1.bf16.msra.mxu0 %v2182
    %2261 = vmatprep.subr.bf16.mxu0 %v2187
    %2262 = vmatpush1.bf16.msra.mxu0 %v2186
    %2263 = vmatprep.mubr.bf16.mxu0 %v1997
    %2264 = vmatmul.mubr.bf16.gmra.mrb[0].mxu0 %v1996
    %v2265 = vpop.f32.mrb[0].mxu0
    %v2266 = vadd.f32 %v2225, %v2265
    %v2267 = vpop.f32.mrb[0].mxu0
    %v2268 = vadd.f32 %v2227, %v2267
    %v2269 = vpop.f32.mrb[0].mxu0
    %v2270 = vpop.f32.mrb[0].mxu0
    %2271 = vdwg.mxu0
    %2272 = vmatprep.subr.bf16.mxu0 %v2065
    %2273 = vmatpush1.bf16.msra.mxu0 %v2064
    %2274 = vmatprep.subr.bf16.mxu0 %v2069
    %2275 = vmatpush1.bf16.msra.mxu0 %v2068
    %2276 = vmatprep.subr.bf16.mxu0 %v2073
    %2277 = vmatpush1.bf16.msra.mxu0 %v2072
    %2278 = vmatprep.subr.bf16.mxu0 %v2077
    %2279 = vmatpush1.bf16.msra.mxu0 %v2076
    %2280 = vmatprep.subr.bf16.mxu0 %v2081
    %2281 = vmatpush1.bf16.msra.mxu0 %v2080
    %2282 = vmatprep.subr.bf16.mxu0 %v2085
    %2283 = vmatpush1.bf16.msra.mxu0 %v2084
    %2284 = vmatprep.subr.bf16.mxu0 %v2089
    %2285 = vmatpush1.bf16.msra.mxu0 %v2088
    %2286 = vmatprep.subr.bf16.mxu0 %v2093
    %2287 = vmatpush1.bf16.msra.mxu0 %v2092
    %2288 = vmatprep.subr.bf16.mxu0 %v2097
    %2289 = vmatpush1.bf16.msra.mxu0 %v2096
    %2290 = vmatprep.subr.bf16.mxu0 %v2101
    %2291 = vmatpush1.bf16.msra.mxu0 %v2100
    %2292 = vmatprep.subr.bf16.mxu0 %v2105
    %2293 = vmatpush1.bf16.msra.mxu0 %v2104
    %2294 = vmatprep.subr.bf16.mxu0 %v2109
    %2295 = vmatpush1.bf16.msra.mxu0 %v2108
    %2296 = vmatprep.subr.bf16.mxu0 %v2113
    %2297 = vmatpush1.bf16.msra.mxu0 %v2112
    %2298 = vmatprep.subr.bf16.mxu0 %v2117
    %2299 = vmatpush1.bf16.msra.mxu0 %v2116
    %2300 = vmatprep.subr.bf16.mxu0 %v2121
    %2301 = vmatpush1.bf16.msra.mxu0 %v2120
    %2302 = vmatprep.subr.bf16.mxu0 %v2125
    %2303 = vmatpush1.bf16.msra.mxu0 %v2124
    %2304 = vmatprep.mubr.bf16.mxu0 %v1995
    %2305 = vmatmul.mubr.bf16.gmra.mrb[0].mxu0 %v1994
    %v2306 = vpop.f32.mrb[0].mxu0
    %v2307 = vadd.f32 0.0, %v2306
    %v2308 = vpop.f32.mrb[0].mxu0
    %v2309 = vadd.f32 0.0, %v2308
    %v2310 = vpop.f32.mrb[0].mxu0
    %v2311 = vpop.f32.mrb[0].mxu0
    %2312 = vdwg.mxu0
    %2313 = vmatprep.subr.bf16.mxu0 %v2129
    %2314 = vmatpush1.bf16.msra.mxu0 %v2128
    %2315 = vmatprep.subr.bf16.mxu0 %v2133
    %2316 = vmatpush1.bf16.msra.mxu0 %v2132
    %2317 = vmatprep.subr.bf16.mxu0 %v2137
    %2318 = vmatpush1.bf16.msra.mxu0 %v2136
    %2319 = vmatprep.subr.bf16.mxu0 %v2141
    %2320 = vmatpush1.bf16.msra.mxu0 %v2140
    %2321 = vmatprep.subr.bf16.mxu0 %v2145
    %2322 = vmatpush1.bf16.msra.mxu0 %v2144
    %2323 = vmatprep.subr.bf16.mxu0 %v2149
    %2324 = vmatpush1.bf16.msra.mxu0 %v2148
    %2325 = vmatprep.subr.bf16.mxu0 %v2153
    %2326 = vmatpush1.bf16.msra.mxu0 %v2152
    %2327 = vmatprep.subr.bf16.mxu0 %v2157
    %2328 = vmatpush1.bf16.msra.mxu0 %v2156
    %2329 = vmatprep.subr.bf16.mxu0 %v2161
    %2330 = vmatpush1.bf16.msra.mxu0 %v2160
    %2331 = vmatprep.subr.bf16.mxu0 %v2165
    %2332 = vmatpush1.bf16.msra.mxu0 %v2164
    %2333 = vmatprep.subr.bf16.mxu0 %v2169
    %2334 = vmatpush1.bf16.msra.mxu0 %v2168
    %2335 = vmatprep.subr.bf16.mxu0 %v2173
    %2336 = vmatpush1.bf16.msra.mxu0 %v2172
    %2337 = vmatprep.subr.bf16.mxu0 %v2177
    %2338 = vmatpush1.bf16.msra.mxu0 %v2176
    %2339 = vmatprep.subr.bf16.mxu0 %v2181
    %2340 = vmatpush1.bf16.msra.mxu0 %v2180
    %2341 = vmatprep.subr.bf16.mxu0 %v2185
    %2342 = vmatpush1.bf16.msra.mxu0 %v2184
    %2343 = vmatprep.subr.bf16.mxu0 %v2189
    %2344 = vmatpush1.bf16.msra.mxu0 %v2188
    %2345 = vmatprep.mubr.bf16.mxu0 %v1997
    %2346 = vmatmul.mubr.bf16.gmra.mrb[0].mxu0 %v1996
    %v2347 = vpop.f32.mrb[0].mxu0
    %v2348 = vadd.f32 %v2307, %v2347
    %v2349 = vpop.f32.mrb[0].mxu0
    %v2350 = vadd.f32 %v2309, %v2349
    %v2351 = vpop.f32.mrb[0].mxu0
    %v2352 = vpop.f32.mrb[0].mxu0
    %2353 = vdwg.mxu0
    %v2354 = vld [vmem:[#allocation5] sm:$0xf]
    %v2356 = vlaneseq
    %v2357 = vshrl.u32 %v2356, 7
    %v2358 = vsub.s32 0, %v2357
    %v2359 = vrot.slane %v2354, %v2358
    %v2360 = vlaneseq
    %v2361 = vshrl.u32 %v2360, 7
    %v2362 = vsub.s32 1, %v2361
    %v2363 = vrot.slane %v2354, %v2362
    %v2364 = vlaneseq
    %v2365 = vshrl.u32 %v2364, 7
    %v2366 = vsub.s32 2, %v2365
    %v2367 = vrot.slane %v2354, %v2366
    %v2368 = vlaneseq
    %v2369 = vshrl.u32 %v2368, 7
    %v2370 = vsub.s32 3, %v2369
    %v2371 = vrot.slane %v2354, %v2370
    %v2376 = vmul.f32 %v2266, %v2359
    %v2377 = vmul.f32 %v2268, %v2363
    %v2378 = vmul.f32 %v2348, %v2367
    %v2379 = vmul.f32 %v2350, %v2371
    %v2380 = vld [vmem:[#allocation7] sm:$0xf]
    %v2382 = vlaneseq
    %v2383 = vshrl.u32 %v2382, 7
    %v2384 = vsub.s32 0, %v2383
    %v2385 = vrot.slane %v2380, %v2384
    %v2386 = vlaneseq
    %v2387 = vshrl.u32 %v2386, 7
    %v2388 = vsub.s32 1, %v2387
    %v2389 = vrot.slane %v2380, %v2388
    %v2390 = vlaneseq
    %v2391 = vshrl.u32 %v2390, 7
    %v2392 = vsub.s32 2, %v2391
    %v2393 = vrot.slane %v2380, %v2392
    %v2394 = vlaneseq
    %v2395 = vshrl.u32 %v2394, 7
    %v2396 = vsub.s32 3, %v2395
    %v2397 = vrot.slane %v2380, %v2396
    %v2402 = vadd.f32 %v2376, %v2385
    %v2403 = vadd.f32 %v2377, %v2389
    %v2404 = vadd.f32 %v2378, %v2393
    %v2405 = vadd.f32 %v2379, %v2397
    %v2406 = vmax.f32 %v2402, 0.0
    %v2407 = vmax.f32 %v2403, 0.0
    %v2408 = vmax.f32 %v2404, 0.0
    %v2409 = vmax.f32 %v2405, 0.0
    %v2410 = vpack.c.bf16 %v2406, %v2406
    %v2411 = vpack.c.bf16 %v2407, %v2407
    %v2412 = vpack.c.bf16 %v2408, %v2408
    %v2413 = vpack.c.bf16 %v2409, %v2409
    %v2414 = vld [vmem:[#allocation8] sm:$0xff]
    %v2415 = vld [vmem:[#allocation8 + $0x8] sm:$0xff]
    %v2416 = vld [vmem:[#allocation8 + $0x10] sm:$0xff]
    %v2417 = vld [vmem:[#allocation8 + $0x18] sm:$0xff]
    %v2418 = vld [vmem:[#allocation8 + $0x20] sm:$0xff]
    %v2419 = vld [vmem:[#allocation8 + $0x28] sm:$0xff]
    %v2420 = vld [vmem:[#allocation8 + $0x30] sm:$0xff]
    %v2421 = vld [vmem:[#allocation8 + $0x38] sm:$0xff]
    %v2422 = vld [vmem:[#allocation8 + $0x40] sm:$0xff]
    %v2423 = vld [vmem:[#allocation8 + $0x48] sm:$0xff]
    %v2424 = vld [vmem:[#allocation8 + $0x50] sm:$0xff]
    %v2425 = vld [vmem:[#allocation8 + $0x58] sm:$0xff]
    %v2426 = vld [vmem:[#allocation8 + $0x60] sm:$0xff]
    %v2427 = vld [vmem:[#allocation8 + $0x68] sm:$0xff]
    %v2428 = vld [vmem:[#allocation8 + $0x70] sm:$0xff]
    %v2429 = vld [vmem:[#allocation8 + $0x78] sm:$0xff]
    %v2430 = vld [vmem:[#allocation8 + $0x80] sm:$0xff]
    %v2431 = vld [vmem:[#allocation8 + $0x88] sm:$0xff]
    %v2432 = vld [vmem:[#allocation8 + $0x90] sm:$0xff]
    %v2433 = vld [vmem:[#allocation8 + $0x98] sm:$0xff]
    %v2434 = vld [vmem:[#allocation8 + $0xa0] sm:$0xff]
    %v2435 = vld [vmem:[#allocation8 + $0xa8] sm:$0xff]
    %v2436 = vld [vmem:[#allocation8 + $0xb0] sm:$0xff]
    %v2437 = vld [vmem:[#allocation8 + $0xb8] sm:$0xff]
    %v2438 = vld [vmem:[#allocation8 + $0xc0] sm:$0xff]
    %v2439 = vld [vmem:[#allocation8 + $0xc8] sm:$0xff]
    %v2440 = vld [vmem:[#allocation8 + $0xd0] sm:$0xff]
    %v2441 = vld [vmem:[#allocation8 + $0xd8] sm:$0xff]
    %v2442 = vld [vmem:[#allocation8 + $0xe0] sm:$0xff]
    %v2443 = vld [vmem:[#allocation8 + $0xe8] sm:$0xff]
    %v2444 = vld [vmem:[#allocation8 + $0xf0] sm:$0xff]
    %v2445 = vld [vmem:[#allocation8 + $0xf8] sm:$0xff]
    %v2446 = vunpack.c.l.s8.bf16 %v2414
    %v2447 = vunpack.c.l.s8.bf16 %v2415
    %v2448 = vunpack.c.h.s8.bf16 %v2414
    %v2449 = vunpack.c.h.s8.bf16 %v2415
    %v2450 = vunpack.c.l.s8.bf16 %v2416
    %v2451 = vunpack.c.l.s8.bf16 %v2417
    %v2452 = vunpack.c.h.s8.bf16 %v2416
    %v2453 = vunpack.c.h.s8.bf16 %v2417
    %v2454 = vunpack.c.l.s8.bf16 %v2418
    %v2455 = vunpack.c.l.s8.bf16 %v2419
    %v2456 = vunpack.c.h.s8.bf16 %v2418
    %v2457 = vunpack.c.h.s8.bf16 %v2419
    %v2458 = vunpack.c.l.s8.bf16 %v2420
    %v2459 = vunpack.c.l.s8.bf16 %v2421
    %v2460 = vunpack.c.h.s8.bf16 %v2420
    %v2461 = vunpack.c.h.s8.bf16 %v2421
    %v2462 = vunpack.c.l.s8.bf16 %v2422
    %v2463 = vunpack.c.l.s8.bf16 %v2423
    %v2464 = vunpack.c.h.s8.bf16 %v2422
    %v2465 = vunpack.c.h.s8.bf16 %v2423
    %v2466 = vunpack.c.l.s8.bf16 %v2424
    %v2467 = vunpack.c.l.s8.bf16 %v2425
    %v2468 = vunpack.c.h.s8.bf16 %v2424
    %v2469 = vunpack.c.h.s8.bf16 %v2425
    %v2470 = vunpack.c.l.s8.bf16 %v2426
    %v2471 = vunpack.c.l.s8.bf16 %v2427
    %v2472 = vunpack.c.h.s8.bf16 %v2426
    %v2473 = vunpack.c.h.s8.bf16 %v2427
    %v2474 = vunpack.c.l.s8.bf16 %v2428
    %v2475 = vunpack.c.l.s8.bf16 %v2429
    %v2476 = vunpack.c.h.s8.bf16 %v2428
    %v2477 = vunpack.c.h.s8.bf16 %v2429
    %v2478 = vunpack.c.l.s8.bf16 %v2430
    %v2479 = vunpack.c.l.s8.bf16 %v2431
    %v2480 = vunpack.c.h.s8.bf16 %v2430
    %v2481 = vunpack.c.h.s8.bf16 %v2431
    %v2482 = vunpack.c.l.s8.bf16 %v2432
    %v2483 = vunpack.c.l.s8.bf16 %v2433
    %v2484 = vunpack.c.h.s8.bf16 %v2432
    %v2485 = vunpack.c.h.s8.bf16 %v2433
    %v2486 = vunpack.c.l.s8.bf16 %v2434
    %v2487 = vunpack.c.l.s8.bf16 %v2435
    %v2488 = vunpack.c.h.s8.bf16 %v2434
    %v2489 = vunpack.c.h.s8.bf16 %v2435
    %v2490 = vunpack.c.l.s8.bf16 %v2436
    %v2491 = vunpack.c.l.s8.bf16 %v2437
    %v2492 = vunpack.c.h.s8.bf16 %v2436
    %v2493 = vunpack.c.h.s8.bf16 %v2437
    %v2494 = vunpack.c.l.s8.bf16 %v2438
    %v2495 = vunpack.c.l.s8.bf16 %v2439
    %v2496 = vunpack.c.h.s8.bf16 %v2438
    %v2497 = vunpack.c.h.s8.bf16 %v2439
    %v2498 = vunpack.c.l.s8.bf16 %v2440
    %v2499 = vunpack.c.l.s8.bf16 %v2441
    %v2500 = vunpack.c.h.s8.bf16 %v2440
    %v2501 = vunpack.c.h.s8.bf16 %v2441
    %v2502 = vunpack.c.l.s8.bf16 %v2442
    %v2503 = vunpack.c.l.s8.bf16 %v2443
    %v2504 = vunpack.c.h.s8.bf16 %v2442
    %v2505 = vunpack.c.h.s8.bf16 %v2443
    %v2506 = vunpack.c.l.s8.bf16 %v2444
    %v2507 = vunpack.c.l.s8.bf16 %v2445
    %v2508 = vunpack.c.h.s8.bf16 %v2444
    %v2509 = vunpack.c.h.s8.bf16 %v2445
    %2510 = vmatprep.subr.bf16.mxu0 %v2447
    %2511 = vmatpush1.bf16.msra.mxu0 %v2446
    %2512 = vmatprep.subr.bf16.mxu0 %v2449
    %2513 = vmatpush1.bf16.msra.mxu0 %v2448
    %2514 = vmatprep.subr.bf16.mxu0 %v2451
    %2515 = vmatpush1.bf16.msra.mxu0 %v2450
    %2516 = vmatprep.subr.bf16.mxu0 %v2453
    %2517 = vmatpush1.bf16.msra.mxu0 %v2452
    %2518 = vmatprep.subr.bf16.mxu0 %v2455
    %2519 = vmatpush1.bf16.msra.mxu0 %v2454
    %2520 = vmatprep.subr.bf16.mxu0 %v2457
    %2521 = vmatpush1.bf16.msra.mxu0 %v2456
    %2522 = vmatprep.subr.bf16.mxu0 %v2459
    %2523 = vmatpush1.bf16.msra.mxu0 %v2458
    %2524 = vmatprep.subr.bf16.mxu0 %v2461
    %2525 = vmatpush1.bf16.msra.mxu0 %v2460
    %2526 = vmatprep.subr.bf16.mxu0 %v2463
    %2527 = vmatpush1.bf16.msra.mxu0 %v2462
    %2528 = vmatprep.subr.bf16.mxu0 %v2465
    %2529 = vmatpush1.bf16.msra.mxu0 %v2464
    %2530 = vmatprep.subr.bf16.mxu0 %v2467
    %2531 = vmatpush1.bf16.msra.mxu0 %v2466
    %2532 = vmatprep.subr.bf16.mxu0 %v2469
    %2533 = vmatpush1.bf16.msra.mxu0 %v2468
    %2534 = vmatprep.subr.bf16.mxu0 %v2471
    %2535 = vmatpush1.bf16.msra.mxu0 %v2470
    %2536 = vmatprep.subr.bf16.mxu0 %v2473
    %2537 = vmatpush1.bf16.msra.mxu0 %v2472
    %2538 = vmatprep.subr.bf16.mxu0 %v2475
    %2539 = vmatpush1.bf16.msra.mxu0 %v2474
    %2540 = vmatprep.subr.bf16.mxu0 %v2477
    %2541 = vmatpush1.bf16.msra.mxu0 %v2476
    %2542 = vmatprep.mubr.bf16.mxu0 %v2411
    %2543 = vmatmul.mubr.bf16.gmra.mrb[0].mxu0 %v2410
    %v2544 = vpop.f32.mrb[0].mxu0
    %v2545 = vadd.f32 0.0, %v2544
    %v2546 = vpop.f32.mrb[0].mxu0
    %v2547 = vadd.f32 0.0, %v2546
    %v2548 = vpop.f32.mrb[0].mxu0
    %v2549 = vpop.f32.mrb[0].mxu0
    %2550 = vdwg.mxu0
    %2551 = vmatprep.subr.bf16.mxu0 %v2479
    %2552 = vmatpush1.bf16.msra.mxu0 %v2478
    %2553 = vmatprep.subr.bf16.mxu0 %v2481
    %2554 = vmatpush1.bf16.msra.mxu0 %v2480
    %2555 = vmatprep.subr.bf16.mxu0 %v2483
    %2556 = vmatpush1.bf16.msra.mxu0 %v2482
    %2557 = vmatprep.subr.bf16.mxu0 %v2485
    %2558 = vmatpush1.bf16.msra.mxu0 %v2484
    %2559 = vmatprep.subr.bf16.mxu0 %v2487
    %2560 = vmatpush1.bf16.msra.mxu0 %v2486
    %2561 = vmatprep.subr.bf16.mxu0 %v2489
    %2562 = vmatpush1.bf16.msra.mxu0 %v2488
    %2563 = vmatprep.subr.bf16.mxu0 %v2491
    %2564 = vmatpush1.bf16.msra.mxu0 %v2490
    %2565 = vmatprep.subr.bf16.mxu0 %v2493
    %2566 = vmatpush1.bf16.msra.mxu0 %v2492
    %2567 = vmatprep.subr.bf16.mxu0 %v2495
    %2568 = vmatpush1.bf16.msra.mxu0 %v2494
    %2569 = vmatprep.subr.bf16.mxu0 %v2497
    %2570 = vmatpush1.bf16.msra.mxu0 %v2496
    %2571 = vmatprep.subr.bf16.mxu0 %v2499
    %2572 = vmatpush1.bf16.msra.mxu0 %v2498
    %2573 = vmatprep.subr.bf16.mxu0 %v2501
    %2574 = vmatpush1.bf16.msra.mxu0 %v2500
    %2575 = vmatprep.subr.bf16.mxu0 %v2503
    %2576 = vmatpush1.bf16.msra.mxu0 %v2502
    %2577 = vmatprep.subr.bf16.mxu0 %v2505
    %2578 = vmatpush1.bf16.msra.mxu0 %v2504
    %2579 = vmatprep.subr.bf16.mxu0 %v2507
    %2580 = vmatpush1.bf16.msra.mxu0 %v2506
    %2581 = vmatprep.subr.bf16.mxu0 %v2509
    %2582 = vmatpush1.bf16.msra.mxu0 %v2508
    %2583 = vmatprep.mubr.bf16.mxu0 %v2413
    %2584 = vmatmul.mubr.bf16.gmra.mrb[0].mxu0 %v2412
    %v2585 = vpop.f32.mrb[0].mxu0
    %v2586 = vadd.f32 %v2545, %v2585
    %v2587 = vpop.f32.mrb[0].mxu0
    %v2588 = vadd.f32 %v2547, %v2587
    %v2589 = vpop.f32.mrb[0].mxu0
    %v2590 = vpop.f32.mrb[0].mxu0
    %2591 = vdwg.mxu0
    %v2592 = vld [vmem:[#allocation10] sm:$0x3]
    %v2594 = vlaneseq
    %v2595 = vshrl.u32 %v2594, 7
    %v2596 = vsub.s32 0, %v2595
    %v2597 = vrot.slane %v2592, %v2596
    %v2598 = vlaneseq
    %v2599 = vshrl.u32 %v2598, 7
    %v2600 = vsub.s32 1, %v2599
    %v2601 = vrot.slane %v2592, %v2600
    %v2604 = vmul.f32 %v2586, %v2597
    %v2605 = vmul.f32 %v2588, %v2601
    %v2606 = vld [vmem:[#allocation11] sm:$0x3]
    %v2608 = vlaneseq
    %v2609 = vshrl.u32 %v2608, 7
    %v2610 = vsub.s32 0, %v2609
    %v2611 = vrot.slane %v2606, %v2610
    %v2612 = vlaneseq
    %v2613 = vshrl.u32 %v2612, 7
    %v2614 = vsub.s32 1, %v2613
    %v2615 = vrot.slane %v2606, %v2614
    %v2618 = vadd.f32 %v2604, %v2611
    %v2619 = vadd.f32 %v2605, %v2615
    %v2620 = vmax.f32 %v2618, 0.0
    %v2621 = vmax.f32 %v2619, 0.0
    %v2622 = vpack.c.bf16 %v2620, %v2620
    %v2623 = vpack.c.bf16 %v2621, %v2621
    %v2624 = vld [vmem:[#allocation13] sm:$0xff]
    %v2625 = vld [vmem:[#allocation13 + $0x8] sm:$0xff]
    %v2626 = vld [vmem:[#allocation13 + $0x10] sm:$0xff]
    %v2627 = vld [vmem:[#allocation13 + $0x18] sm:$0xff]
    %v2628 = vld [vmem:[#allocation13 + $0x20] sm:$0xff]
    %v2629 = vld [vmem:[#allocation13 + $0x28] sm:$0xff]
    %v2630 = vld [vmem:[#allocation13 + $0x30] sm:$0xff]
    %v2631 = vld [vmem:[#allocation13 + $0x38] sm:$0xff]
    %v2632 = vunpack.c.l.s8.bf16 %v2624
    %v2633 = vunpack.c.h.s8.bf16 %v2624
    %v2634 = vunpack.c.l.s8.bf16 %v2625
    %v2635 = vunpack.c.h.s8.bf16 %v2625
    %v2636 = vunpack.c.l.s8.bf16 %v2626
    %v2637 = vunpack.c.h.s8.bf16 %v2626
    %v2638 = vunpack.c.l.s8.bf16 %v2627
    %v2639 = vunpack.c.h.s8.bf16 %v2627
    %v2640 = vunpack.c.l.s8.bf16 %v2628
    %v2641 = vunpack.c.h.s8.bf16 %v2628
    %v2642 = vunpack.c.l.s8.bf16 %v2629
    %v2643 = vunpack.c.h.s8.bf16 %v2629
    %v2644 = vunpack.c.l.s8.bf16 %v2630
    %v2645 = vunpack.c.h.s8.bf16 %v2630
    %v2646 = vunpack.c.l.s8.bf16 %v2631
    %v2647 = vunpack.c.h.s8.bf16 %v2631
    %2648 = vmatprep.subr.bf16.mxu0 0
    %2649 = vmatpush1.bf16.msra.mxu0 %v2632
    %2650 = vmatprep.subr.bf16.mxu0 0
    %2651 = vmatpush1.bf16.msra.mxu0 %v2633
    %2652 = vmatprep.subr.bf16.mxu0 0
    %2653 = vmatpush1.bf16.msra.mxu0 %v2634
    %2654 = vmatprep.subr.bf16.mxu0 0
    %2655 = vmatpush1.bf16.msra.mxu0 %v2635
    %2656 = vmatprep.subr.bf16.mxu0 0
    %2657 = vmatpush1.bf16.msra.mxu0 %v2636
    %2658 = vmatprep.subr.bf16.mxu0 0
    %2659 = vmatpush1.bf16.msra.mxu0 %v2637
    %2660 = vmatprep.subr.bf16.mxu0 0
    %2661 = vmatpush1.bf16.msra.mxu0 %v2638
    %2662 = vmatprep.subr.bf16.mxu0 0
    %2663 = vmatpush1.bf16.msra.mxu0 %v2639
    %2664 = vmatprep.subr.bf16.mxu0 0
    %2665 = vmatpush1.bf16.msra.mxu0 %v2640
    %2666 = vmatprep.subr.bf16.mxu0 0
    %2667 = vmatpush1.bf16.msra.mxu0 %v2641
    %2668 = vmatprep.subr.bf16.mxu0 0
    %2669 = vmatpush1.bf16.msra.mxu0 %v2642
    %2670 = vmatprep.subr.bf16.mxu0 0
    %2671 = vmatpush1.bf16.msra.mxu0 %v2643
    %2672 = vmatprep.subr.bf16.mxu0 0
    %2673 = vmatpush1.bf16.msra.mxu0 %v2644
    %2674 = vmatprep.subr.bf16.mxu0 0
    %2675 = vmatpush1.bf16.msra.mxu0 %v2645
    %2676 = vmatprep.subr.bf16.mxu0 0
    %2677 = vmatpush1.bf16.msra.mxu0 %v2646
    %2678 = vmatprep.subr.bf16.mxu0 0
    %2679 = vmatpush1.bf16.msra.mxu0 %v2647
    %2680 = vmatprep.mubr.bf16.mxu0 %v2623
    %2681 = vmatmul.mubr.bf16.gmra.mrb[0].mxu0 %v2622
    %v2682 = vpop.f32.mrb[0].mxu0
    %v2683 = vadd.f32 0.0, %v2682
    %v2684 = vpop.f32.mrb[0].mxu0
    %v2685 = vpop.f32.mrb[0].mxu0
    %v2686 = vpop.f32.mrb[0].mxu0
    %2687 = vdwg.mxu0
    %v2688 = vld [vmem:[%s12] sm:$0x1]
    %v2690 = vlaneseq
    %v2691 = vshrl.u32 %v2690, 7
    %v2692 = vsub.s32 0, %v2691
    %v2693 = vrot.slane %v2688, %v2692
    %v2695 = vmul.f32 %v2683, %v2693
    %v2696 = vld [vmem:[#allocation14] sm:$0x1]
    %v2698 = vlaneseq
    %v2699 = vshrl.u32 %v2698, 7
    %v2700 = vsub.s32 0, %v2699
    %v2701 = vrot.slane %v2696, %v2700
    %v2703 = vadd.f32 %v2695, %v2701
    %vm2704 = vcmask 80896
    %2705 = vst.msk [vmem:[#allocation32] sm:$0xff] %vm2704, %v2703
    %v2706 = vlaneseq
    %v2707 = vand.u32 %v2706, 127
    %vm2708 = vcmp.lt.s32.totalorder %v2707, 10
    %v2709 = vsel %vm2708, %v2703, 0.0
    %v2710 = vld [vmem:[%s1] sm:$0xff]
    %v2711 = vadd.f32 %v2709, %v2710
    %v2712 = vpack.c.bf16 %v2711, %v2711
    %v2713 = vld [vmem:[#allocation16] sm:$0xff]
    %v2714 = vld [vmem:[#allocation16 + $0x8] sm:$0xff]
    %v2715 = vld [vmem:[#allocation16 + $0x10] sm:$0xff]
    %v2716 = vld [vmem:[#allocation16 + $0x18] sm:$0xff]
    %v2717 = vld [vmem:[#allocation16 + $0x20] sm:$0xff]
    %v2718 = vld [vmem:[#allocation16 + $0x28] sm:$0xff]
    %v2719 = vld [vmem:[#allocation16 + $0x30] sm:$0xff]
    %v2720 = vld [vmem:[#allocation16 + $0x38] sm:$0xff]
    %v2721 = vunpack.c.l.s8.bf16 %v2713
    %v2722 = vunpack.c.l.s8.bf16 %v2714
    %v2723 = vunpack.c.h.s8.bf16 %v2713
    %v2724 = vunpack.c.h.s8.bf16 %v2714
    %v2725 = vunpack.c.l.s8.bf16 %v2715
    %v2726 = vunpack.c.l.s8.bf16 %v2716
    %v2727 = vunpack.c.h.s8.bf16 %v2715
    %v2728 = vunpack.c.h.s8.bf16 %v2716
    %v2729 = vunpack.c.l.s8.bf16 %v2717
    %v2730 = vunpack.c.l.s8.bf16 %v2718
    %v2731 = vunpack.c.h.s8.bf16 %v2717
    %v2732 = vunpack.c.h.s8.bf16 %v2718
    %v2733 = vunpack.c.l.s8.bf16 %v2719
    %v2734 = vunpack.c.l.s8.bf16 %v2720
    %v2735 = vunpack.c.h.s8.bf16 %v2719
    %v2736 = vunpack.c.h.s8.bf16 %v2720
    %2737 = vmatprep.subr.bf16.mxu0 %v2722
    %2738 = vmatpush1.bf16.msra.mxu0 %v2721
    %2739 = vmatprep.subr.bf16.mxu0 %v2724
    %2740 = vmatpush1.bf16.msra.mxu0 %v2723
    %2741 = vmatprep.subr.bf16.mxu0 %v2726
    %2742 = vmatpush1.bf16.msra.mxu0 %v2725
    %2743 = vmatprep.subr.bf16.mxu0 %v2728
    %2744 = vmatpush1.bf16.msra.mxu0 %v2727
    %2745 = vmatprep.subr.bf16.mxu0 %v2730
    %2746 = vmatpush1.bf16.msra.mxu0 %v2729
    %2747 = vmatprep.subr.bf16.mxu0 %v2732
    %2748 = vmatpush1.bf16.msra.mxu0 %v2731
    %2749 = vmatprep.subr.bf16.mxu0 %v2734
    %2750 = vmatpush1.bf16.msra.mxu0 %v2733
    %2751 = vmatprep.subr.bf16.mxu0 %v2736
    %2752 = vmatpush1.bf16.msra.mxu0 %v2735
    %2753 = vmatprep.subr.bf16.mxu0 0
    %2754 = vmatpush1.bf16.msra.mxu0 0
    %2755 = vmatprep.subr.bf16.mxu0 0
    %2756 = vmatpush1.bf16.msra.mxu0 0
    %2757 = vmatprep.subr.bf16.mxu0 0
    %2758 = vmatpush1.bf16.msra.mxu0 0
    %2759 = vmatprep.subr.bf16.mxu0 0
    %2760 = vmatpush1.bf16.msra.mxu0 0
    %2761 = vmatprep.subr.bf16.mxu0 0
    %2762 = vmatpush1.bf16.msra.mxu0 0
    %2763 = vmatprep.subr.bf16.mxu0 0
    %2764 = vmatpush1.bf16.msra.mxu0 0
    %2765 = vmatprep.subr.bf16.mxu0 0
    %2766 = vmatpush1.bf16.msra.mxu0 0
    %2767 = vmatprep.subr.bf16.mxu0 0
    %2768 = vmatpush1.bf16.msra.mxu0 0
    %2769 = vmatprep.mubr.bf16.mxu0 0
    %2770 = vmatmul.mubr.bf16.gmra.mrb[0].mxu0 %v2712
    %v2771 = vpop.f32.mrb[0].mxu0
    %v2772 = vadd.f32 0.0, %v2771
    %v2773 = vpop.f32.mrb[0].mxu0
    %v2774 = vadd.f32 0.0, %v2773
    %v2775 = vpop.f32.mrb[0].mxu0
    %v2776 = vpop.f32.mrb[0].mxu0
    %2777 = vdwg.mxu0
    %v2778 = vld [vmem:[#allocation17] sm:$0x3]
    %v2780 = vlaneseq
    %v2781 = vshrl.u32 %v2780, 7
    %v2782 = vsub.s32 0, %v2781
    %v2783 = vrot.slane %v2778, %v2782
    %v2784 = vlaneseq
    %v2785 = vshrl.u32 %v2784, 7
    %v2786 = vsub.s32 1, %v2785
    %v2787 = vrot.slane %v2778, %v2786
    %v2790 = vmul.f32 %v2772, %v2783
    %v2791 = vmul.f32 %v2774, %v2787
    %v2792 = vld [vmem:[#allocation19] sm:$0x3]
    %v2794 = vlaneseq
    %v2795 = vshrl.u32 %v2794, 7
    %v2796 = vsub.s32 0, %v2795
    %v2797 = vrot.slane %v2792, %v2796
    %v2798 = vlaneseq
    %v2799 = vshrl.u32 %v2798, 7
    %v2800 = vsub.s32 1, %v2799
    %v2801 = vrot.slane %v2792, %v2800
    %v2804 = vadd.f32 %v2790, %v2797
    %v2805 = vadd.f32 %v2791, %v2801
    %v2806 = vmax.f32 %v2804, 0.0
    %v2807 = vmax.f32 %v2805, 0.0
    %v2808 = vpack.c.bf16 %v2806, %v2806
    %v2809 = vpack.c.bf16 %v2807, %v2807
    %v2810 = vld [vmem:[#allocation20] sm:$0xff]
    %v2811 = vld [vmem:[#allocation20 + $0x8] sm:$0xff]
    %v2812 = vld [vmem:[#allocation20 + $0x10] sm:$0xff]
    %v2813 = vld [vmem:[#allocation20 + $0x18] sm:$0xff]
    %v2814 = vld [vmem:[#allocation20 + $0x20] sm:$0xff]
    %v2815 = vld [vmem:[#allocation20 + $0x28] sm:$0xff]
    %v2816 = vld [vmem:[#allocation20 + $0x30] sm:$0xff]
    %v2817 = vld [vmem:[#allocation20 + $0x38] sm:$0xff]
    %v2818 = vld [vmem:[#allocation20 + $0x40] sm:$0xff]
    %v2819 = vld [vmem:[#allocation20 + $0x48] sm:$0xff]
    %v2820 = vld [vmem:[#allocation20 + $0x50] sm:$0xff]
    %v2821 = vld [vmem:[#allocation20 + $0x58] sm:$0xff]
    %v2822 = vld [vmem:[#allocation20 + $0x60] sm:$0xff]
    %v2823 = vld [vmem:[#allocation20 + $0x68] sm:$0xff]
    %v2824 = vld [vmem:[#allocation20 + $0x70] sm:$0xff]
    %v2825 = vld [vmem:[#allocation20 + $0x78] sm:$0xff]
    %v2826 = vld [vmem:[#allocation20 + $0x80] sm:$0xff]
    %v2827 = vld [vmem:[#allocation20 + $0x88] sm:$0xff]
    %v2828 = vld [vmem:[#allocation20 + $0x90] sm:$0xff]
    %v2829 = vld [vmem:[#allocation20 + $0x98] sm:$0xff]
    %v2830 = vld [vmem:[#allocation20 + $0xa0] sm:$0xff]
    %v2831 = vld [vmem:[#allocation20 + $0xa8] sm:$0xff]
    %v2832 = vld [vmem:[#allocation20 + $0xb0] sm:$0xff]
    %v2833 = vld [vmem:[#allocation20 + $0xb8] sm:$0xff]
    %v2834 = vld [vmem:[#allocation20 + $0xc0] sm:$0xff]
    %v2835 = vld [vmem:[#allocation20 + $0xc8] sm:$0xff]
    %v2836 = vld [vmem:[#allocation20 + $0xd0] sm:$0xff]
    %v2837 = vld [vmem:[#allocation20 + $0xd8] sm:$0xff]
    %v2838 = vld [vmem:[#allocation20 + $0xe0] sm:$0xff]
    %v2839 = vld [vmem:[#allocation20 + $0xe8] sm:$0xff]
    %v2840 = vld [vmem:[#allocation20 + $0xf0] sm:$0xff]
    %v2841 = vld [vmem:[#allocation20 + $0xf8] sm:$0xff]
    %v2842 = vunpack.c.l.s8.bf16 %v2810
    %v2843 = vunpack.c.l.s8.bf16 %v2811
    %v2844 = vunpack.c.l.s8.bf16 %v2812
    %v2845 = vunpack.c.l.s8.bf16 %v2813
    %v2846 = vunpack.c.h.s8.bf16 %v2810
    %v2847 = vunpack.c.h.s8.bf16 %v2811
    %v2848 = vunpack.c.h.s8.bf16 %v2812
    %v2849 = vunpack.c.h.s8.bf16 %v2813
    %v2850 = vunpack.c.l.s8.bf16 %v2814
    %v2851 = vunpack.c.l.s8.bf16 %v2815
    %v2852 = vunpack.c.l.s8.bf16 %v2816
    %v2853 = vunpack.c.l.s8.bf16 %v2817
    %v2854 = vunpack.c.h.s8.bf16 %v2814
    %v2855 = vunpack.c.h.s8.bf16 %v2815
    %v2856 = vunpack.c.h.s8.bf16 %v2816
    %v2857 = vunpack.c.h.s8.bf16 %v2817
    %v2858 = vunpack.c.l.s8.bf16 %v2818
    %v2859 = vunpack.c.l.s8.bf16 %v2819
    %v2860 = vunpack.c.l.s8.bf16 %v2820
    %v2861 = vunpack.c.l.s8.bf16 %v2821
    %v2862 = vunpack.c.h.s8.bf16 %v2818
    %v2863 = vunpack.c.h.s8.bf16 %v2819
    %v2864 = vunpack.c.h.s8.bf16 %v2820
    %v2865 = vunpack.c.h.s8.bf16 %v2821
    %v2866 = vunpack.c.l.s8.bf16 %v2822
    %v2867 = vunpack.c.l.s8.bf16 %v2823
    %v2868 = vunpack.c.l.s8.bf16 %v2824
    %v2869 = vunpack.c.l.s8.bf16 %v2825
    %v2870 = vunpack.c.h.s8.bf16 %v2822
    %v2871 = vunpack.c.h.s8.bf16 %v2823
    %v2872 = vunpack.c.h.s8.bf16 %v2824
    %v2873 = vunpack.c.h.s8.bf16 %v2825
    %v2874 = vunpack.c.l.s8.bf16 %v2826
    %v2875 = vunpack.c.l.s8.bf16 %v2827
    %v2876 = vunpack.c.l.s8.bf16 %v2828
    %v2877 = vunpack.c.l.s8.bf16 %v2829
    %v2878 = vunpack.c.h.s8.bf16 %v2826
    %v2879 = vunpack.c.h.s8.bf16 %v2827
    %v2880 = vunpack.c.h.s8.bf16 %v2828
    %v2881 = vunpack.c.h.s8.bf16 %v2829
    %v2882 = vunpack.c.l.s8.bf16 %v2830
    %v2883 = vunpack.c.l.s8.bf16 %v2831
    %v2884 = vunpack.c.l.s8.bf16 %v2832
    %v2885 = vunpack.c.l.s8.bf16 %v2833
    %v2886 = vunpack.c.h.s8.bf16 %v2830
    %v2887 = vunpack.c.h.s8.bf16 %v2831
    %v2888 = vunpack.c.h.s8.bf16 %v2832
    %v2889 = vunpack.c.h.s8.bf16 %v2833
    %v2890 = vunpack.c.l.s8.bf16 %v2834
    %v2891 = vunpack.c.l.s8.bf16 %v2835
    %v2892 = vunpack.c.l.s8.bf16 %v2836
    %v2893 = vunpack.c.l.s8.bf16 %v2837
    %v2894 = vunpack.c.h.s8.bf16 %v2834
    %v2895 = vunpack.c.h.s8.bf16 %v2835
    %v2896 = vunpack.c.h.s8.bf16 %v2836
    %v2897 = vunpack.c.h.s8.bf16 %v2837
    %v2898 = vunpack.c.l.s8.bf16 %v2838
    %v2899 = vunpack.c.l.s8.bf16 %v2839
    %v2900 = vunpack.c.l.s8.bf16 %v2840
    %v2901 = vunpack.c.l.s8.bf16 %v2841
    %v2902 = vunpack.c.h.s8.bf16 %v2838
    %v2903 = vunpack.c.h.s8.bf16 %v2839
    %v2904 = vunpack.c.h.s8.bf16 %v2840
    %v2905 = vunpack.c.h.s8.bf16 %v2841
    %2906 = vmatprep.subr.bf16.mxu0 %v2843
    %2907 = vmatpush1.bf16.msra.mxu0 %v2842
    %2908 = vmatprep.subr.bf16.mxu0 %v2847
    %2909 = vmatpush1.bf16.msra.mxu0 %v2846
    %2910 = vmatprep.subr.bf16.mxu0 %v2851
    %2911 = vmatpush1.bf16.msra.mxu0 %v2850
    %2912 = vmatprep.subr.bf16.mxu0 %v2855
    %2913 = vmatpush1.bf16.msra.mxu0 %v2854
    %2914 = vmatprep.subr.bf16.mxu0 %v2859
    %2915 = vmatpush1.bf16.msra.mxu0 %v2858
    %2916 = vmatprep.subr.bf16.mxu0 %v2863
    %2917 = vmatpush1.bf16.msra.mxu0 %v2862
    %2918 = vmatprep.subr.bf16.mxu0 %v2867
    %2919 = vmatpush1.bf16.msra.mxu0 %v2866
    %2920 = vmatprep.subr.bf16.mxu0 %v2871
    %2921 = vmatpush1.bf16.msra.mxu0 %v2870
    %2922 = vmatprep.subr.bf16.mxu0 %v2875
    %2923 = vmatpush1.bf16.msra.mxu0 %v2874
    %2924 = vmatprep.subr.bf16.mxu0 %v2879
    %2925 = vmatpush1.bf16.msra.mxu0 %v2878
    %2926 = vmatprep.subr.bf16.mxu0 %v2883
    %2927 = vmatpush1.bf16.msra.mxu0 %v2882
    %2928 = vmatprep.subr.bf16.mxu0 %v2887
    %2929 = vmatpush1.bf16.msra.mxu0 %v2886
    %2930 = vmatprep.subr.bf16.mxu0 %v2891
    %2931 = vmatpush1.bf16.msra.mxu0 %v2890
    %2932 = vmatprep.subr.bf16.mxu0 %v2895
    %2933 = vmatpush1.bf16.msra.mxu0 %v2894
    %2934 = vmatprep.subr.bf16.mxu0 %v2899
    %2935 = vmatpush1.bf16.msra.mxu0 %v2898
    %2936 = vmatprep.subr.bf16.mxu0 %v2903
    %2937 = vmatpush1.bf16.msra.mxu0 %v2902
    %2938 = vmatprep.mubr.bf16.mxu0 %v2809
    %2939 = vmatmul.mubr.bf16.gmra.mrb[0].mxu0 %v2808
    %v2940 = vpop.f32.mrb[0].mxu0
    %v2941 = vadd.f32 0.0, %v2940
    %v2942 = vpop.f32.mrb[0].mxu0
    %v2943 = vadd.f32 0.0, %v2942
    %v2944 = vpop.f32.mrb[0].mxu0
    %v2945 = vpop.f32.mrb[0].mxu0
    %2946 = vdwg.mxu0
    %2947 = vmatprep.subr.bf16.mxu0 %v2845
    %2948 = vmatpush1.bf16.msra.mxu0 %v2844
    %2949 = vmatprep.subr.bf16.mxu0 %v2849
    %2950 = vmatpush1.bf16.msra.mxu0 %v2848
    %2951 = vmatprep.subr.bf16.mxu0 %v2853
    %2952 = vmatpush1.bf16.msra.mxu0 %v2852
    %2953 = vmatprep.subr.bf16.mxu0 %v2857
    %2954 = vmatpush1.bf16.msra.mxu0 %v2856
    %2955 = vmatprep.subr.bf16.mxu0 %v2861
    %2956 = vmatpush1.bf16.msra.mxu0 %v2860
    %2957 = vmatprep.subr.bf16.mxu0 %v2865
    %2958 = vmatpush1.bf16.msra.mxu0 %v2864
    %2959 = vmatprep.subr.bf16.mxu0 %v2869
    %2960 = vmatpush1.bf16.msra.mxu0 %v2868
    %2961 = vmatprep.subr.bf16.mxu0 %v2873
    %2962 = vmatpush1.bf16.msra.mxu0 %v2872
    %2963 = vmatprep.subr.bf16.mxu0 %v2877
    %2964 = vmatpush1.bf16.msra.mxu0 %v2876
    %2965 = vmatprep.subr.bf16.mxu0 %v2881
    %2966 = vmatpush1.bf16.msra.mxu0 %v2880
    %2967 = vmatprep.subr.bf16.mxu0 %v2885
    %2968 = vmatpush1.bf16.msra.mxu0 %v2884
    %2969 = vmatprep.subr.bf16.mxu0 %v2889
    %2970 = vmatpush1.bf16.msra.mxu0 %v2888
    %2971 = vmatprep.subr.bf16.mxu0 %v2893
    %2972 = vmatpush1.bf16.msra.mxu0 %v2892
    %2973 = vmatprep.subr.bf16.mxu0 %v2897
    %2974 = vmatpush1.bf16.msra.mxu0 %v2896
    %2975 = vmatprep.subr.bf16.mxu0 %v2901
    %2976 = vmatpush1.bf16.msra.mxu0 %v2900
    %2977 = vmatprep.subr.bf16.mxu0 %v2905
    %2978 = vmatpush1.bf16.msra.mxu0 %v2904
    %2979 = vmatprep.mubr.bf16.mxu0 %v2809
    %2980 = vmatmul.mubr.bf16.gmra.mrb[0].mxu0 %v2808
    %v2981 = vpop.f32.mrb[0].mxu0
    %v2982 = vadd.f32 0.0, %v2981
    %v2983 = vpop.f32.mrb[0].mxu0
    %v2984 = vadd.f32 0.0, %v2983
    %v2985 = vpop.f32.mrb[0].mxu0
    %v2986 = vpop.f32.mrb[0].mxu0
    %2987 = vdwg.mxu0
    %v2988 = vld [vmem:[#allocation22] sm:$0xf]
    %v2990 = vlaneseq
    %v2991 = vshrl.u32 %v2990, 7
    %v2992 = vsub.s32 0, %v2991
    %v2993 = vrot.slane %v2988, %v2992
    %v2994 = vlaneseq
    %v2995 = vshrl.u32 %v2994, 7
    %v2996 = vsub.s32 1, %v2995
    %v2997 = vrot.slane %v2988, %v2996
    %v2998 = vlaneseq
    %v2999 = vshrl.u32 %v2998, 7
    %v3000 = vsub.s32 2, %v2999
    %v3001 = vrot.slane %v2988, %v3000
    %v3002 = vlaneseq
    %v3003 = vshrl.u32 %v3002, 7
    %v3004 = vsub.s32 3, %v3003
    %v3005 = vrot.slane %v2988, %v3004
    %v3010 = vmul.f32 %v2941, %v2993
    %v3011 = vmul.f32 %v2943, %v2997
    %v3012 = vmul.f32 %v2982, %v3001
    %v3013 = vmul.f32 %v2984, %v3005
    %v3014 = vld [vmem:[#allocation23] sm:$0xf]
    %v3016 = vlaneseq
    %v3017 = vshrl.u32 %v3016, 7
    %v3018 = vsub.s32 0, %v3017
    %v3019 = vrot.slane %v3014, %v3018
    %v3020 = vlaneseq
    %v3021 = vshrl.u32 %v3020, 7
    %v3022 = vsub.s32 1, %v3021
    %v3023 = vrot.slane %v3014, %v3022
    %v3024 = vlaneseq
    %v3025 = vshrl.u32 %v3024, 7
    %v3026 = vsub.s32 2, %v3025
    %v3027 = vrot.slane %v3014, %v3026
    %v3028 = vlaneseq
    %v3029 = vshrl.u32 %v3028, 7
    %v3030 = vsub.s32 3, %v3029
    %v3031 = vrot.slane %v3014, %v3030
    %v3036 = vadd.f32 %v3010, %v3019
    %v3037 = vadd.f32 %v3011, %v3023
    %v3038 = vadd.f32 %v3012, %v3027
    %v3039 = vadd.f32 %v3013, %v3031
    %v3040 = vmax.f32 %v3036, 0.0
    %v3041 = vmax.f32 %v3037, 0.0
    %v3042 = vmax.f32 %v3038, 0.0
    %v3043 = vmax.f32 %v3039, 0.0
    %v3044 = vpack.c.bf16 %v3040, %v3040
    %v3045 = vpack.c.bf16 %v3041, %v3041
    %v3046 = vpack.c.bf16 %v3042, %v3042
    %v3047 = vpack.c.bf16 %v3043, %v3043
    %v3048 = vld [vmem:[%s20] sm:$0xff]
    %v3049 = vld [vmem:[%s20 + $0x8] sm:$0xff]
    %v3050 = vld [vmem:[%s20 + $0x10] sm:$0xff]
    %v3051 = vld [vmem:[%s20 + $0x18] sm:$0xff]
    %v3052 = vld [vmem:[%s20 + $0x20] sm:$0xff]
    %v3053 = vld [vmem:[%s20 + $0x28] sm:$0xff]
    %v3054 = vld [vmem:[%s20 + $0x30] sm:$0xff]
    %v3055 = vld [vmem:[%s20 + $0x38] sm:$0xff]
    %v3056 = vld [vmem:[%s20 + $0x40] sm:$0xff]
    %v3057 = vld [vmem:[%s20 + $0x48] sm:$0xff]
    %v3058 = vld [vmem:[%s20 + $0x50] sm:$0xff]
    %v3059 = vld [vmem:[%s20 + $0x58] sm:$0xff]
    %v3060 = vld [vmem:[%s20 + $0x60] sm:$0xff]
    %v3061 = vld [vmem:[%s20 + $0x68] sm:$0xff]
    %v3062 = vld [vmem:[%s20 + $0x70] sm:$0xff]
    %v3063 = vld [vmem:[%s20 + $0x78] sm:$0xff]
    %v3064 = vld [vmem:[%s20 + $0x80] sm:$0xff]
    %v3065 = vld [vmem:[%s20 + $0x88] sm:$0xff]
    %v3066 = vld [vmem:[%s20 + $0x90] sm:$0xff]
    %v3067 = vld [vmem:[%s20 + $0x98] sm:$0xff]
    %v3068 = vld [vmem:[%s20 + $0xa0] sm:$0xff]
    %v3069 = vld [vmem:[%s20 + $0xa8] sm:$0xff]
    %v3070 = vld [vmem:[%s20 + $0xb0] sm:$0xff]
    %v3071 = vld [vmem:[%s20 + $0xb8] sm:$0xff]
    %v3072 = vld [vmem:[%s20 + $0xc0] sm:$0xff]
    %v3073 = vld [vmem:[%s20 + $0xc8] sm:$0xff]
    %v3074 = vld [vmem:[%s20 + $0xd0] sm:$0xff]
    %v3075 = vld [vmem:[%s20 + $0xd8] sm:$0xff]
    %v3076 = vld [vmem:[%s20 + $0xe0] sm:$0xff]
    %v3077 = vld [vmem:[%s20 + $0xe8] sm:$0xff]
    %v3078 = vld [vmem:[%s20 + $0xf0] sm:$0xff]
    %v3079 = vld [vmem:[%s20 + $0xf8] sm:$0xff]
    %v3080 = vld [vmem:[%s20 + $0x100] sm:$0xff]
    %v3081 = vld [vmem:[%s20 + $0x108] sm:$0xff]
    %v3082 = vld [vmem:[%s20 + $0x110] sm:$0xff]
    %v3083 = vld [vmem:[%s20 + $0x118] sm:$0xff]
    %v3084 = vld [vmem:[%s20 + $0x120] sm:$0xff]
    %v3085 = vld [vmem:[%s20 + $0x128] sm:$0xff]
    %v3086 = vld [vmem:[%s20 + $0x130] sm:$0xff]
    %v3087 = vld [vmem:[%s20 + $0x138] sm:$0xff]
    %v3088 = vld [vmem:[%s20 + $0x140] sm:$0xff]
    %v3089 = vld [vmem:[%s20 + $0x148] sm:$0xff]
    %v3090 = vld [vmem:[%s20 + $0x150] sm:$0xff]
    %v3091 = vld [vmem:[%s20 + $0x158] sm:$0xff]
    %v3092 = vld [vmem:[%s20 + $0x160] sm:$0xff]
    %v3093 = vld [vmem:[%s20 + $0x168] sm:$0xff]
    %v3094 = vld [vmem:[%s20 + $0x170] sm:$0xff]
    %v3095 = vld [vmem:[%s20 + $0x178] sm:$0xff]
    %v3096 = vld [vmem:[%s20 + $0x180] sm:$0xff]
    %v3097 = vld [vmem:[%s20 + $0x188] sm:$0xff]
    %v3098 = vld [vmem:[%s20 + $0x190] sm:$0xff]
    %v3099 = vld [vmem:[%s20 + $0x198] sm:$0xff]
    %v3100 = vld [vmem:[%s20 + $0x1a0] sm:$0xff]
    %v3101 = vld [vmem:[%s20 + $0x1a8] sm:$0xff]
    %v3102 = vld [vmem:[%s20 + $0x1b0] sm:$0xff]
    %v3103 = vld [vmem:[%s20 + $0x1b8] sm:$0xff]
    %v3104 = vld [vmem:[%s20 + $0x1c0] sm:$0xff]
    %v3105 = vld [vmem:[%s20 + $0x1c8] sm:$0xff]
    %v3106 = vld [vmem:[%s20 + $0x1d0] sm:$0xff]
    %v3107 = vld [vmem:[%s20 + $0x1d8] sm:$0xff]
    %v3108 = vld [vmem:[%s20 + $0x1e0] sm:$0xff]
    %v3109 = vld [vmem:[%s20 + $0x1e8] sm:$0xff]
    %v3110 = vld [vmem:[%s20 + $0x1f0] sm:$0xff]
    %v3111 = vld [vmem:[%s20 + $0x1f8] sm:$0xff]
    %v3112 = vunpack.c.l.s8.bf16 %v3048
    %v3113 = vunpack.c.l.s8.bf16 %v3049
    %v3114 = vunpack.c.l.s8.bf16 %v3050
    %v3115 = vunpack.c.l.s8.bf16 %v3051
    %v3116 = vunpack.c.h.s8.bf16 %v3048
    %v3117 = vunpack.c.h.s8.bf16 %v3049
    %v3118 = vunpack.c.h.s8.bf16 %v3050
    %v3119 = vunpack.c.h.s8.bf16 %v3051
    %v3120 = vunpack.c.l.s8.bf16 %v3052
    %v3121 = vunpack.c.l.s8.bf16 %v3053
    %v3122 = vunpack.c.l.s8.bf16 %v3054
    %v3123 = vunpack.c.l.s8.bf16 %v3055
    %v3124 = vunpack.c.h.s8.bf16 %v3052
    %v3125 = vunpack.c.h.s8.bf16 %v3053
    %v3126 = vunpack.c.h.s8.bf16 %v3054
    %v3127 = vunpack.c.h.s8.bf16 %v3055
    %v3128 = vunpack.c.l.s8.bf16 %v3056
    %v3129 = vunpack.c.l.s8.bf16 %v3057
    %v3130 = vunpack.c.l.s8.bf16 %v3058
    %v3131 = vunpack.c.l.s8.bf16 %v3059
    %v3132 = vunpack.c.h.s8.bf16 %v3056
    %v3133 = vunpack.c.h.s8.bf16 %v3057
    %v3134 = vunpack.c.h.s8.bf16 %v3058
    %v3135 = vunpack.c.h.s8.bf16 %v3059
    %v3136 = vunpack.c.l.s8.bf16 %v3060
    %v3137 = vunpack.c.l.s8.bf16 %v3061
    %v3138 = vunpack.c.l.s8.bf16 %v3062
    %v3139 = vunpack.c.l.s8.bf16 %v3063
    %v3140 = vunpack.c.h.s8.bf16 %v3060
    %v3141 = vunpack.c.h.s8.bf16 %v3061
    %v3142 = vunpack.c.h.s8.bf16 %v3062
    %v3143 = vunpack.c.h.s8.bf16 %v3063
    %v3144 = vunpack.c.l.s8.bf16 %v3064
    %v3145 = vunpack.c.l.s8.bf16 %v3065
    %v3146 = vunpack.c.l.s8.bf16 %v3066
    %v3147 = vunpack.c.l.s8.bf16 %v3067
    %v3148 = vunpack.c.h.s8.bf16 %v3064
    %v3149 = vunpack.c.h.s8.bf16 %v3065
    %v3150 = vunpack.c.h.s8.bf16 %v3066
    %v3151 = vunpack.c.h.s8.bf16 %v3067
    %v3152 = vunpack.c.l.s8.bf16 %v3068
    %v3153 = vunpack.c.l.s8.bf16 %v3069
    %v3154 = vunpack.c.l.s8.bf16 %v3070
    %v3155 = vunpack.c.l.s8.bf16 %v3071
    %v3156 = vunpack.c.h.s8.bf16 %v3068
    %v3157 = vunpack.c.h.s8.bf16 %v3069
    %v3158 = vunpack.c.h.s8.bf16 %v3070
    %v3159 = vunpack.c.h.s8.bf16 %v3071
    %v3160 = vunpack.c.l.s8.bf16 %v3072
    %v3161 = vunpack.c.l.s8.bf16 %v3073
    %v3162 = vunpack.c.l.s8.bf16 %v3074
    %v3163 = vunpack.c.l.s8.bf16 %v3075
    %v3164 = vunpack.c.h.s8.bf16 %v3072
    %v3165 = vunpack.c.h.s8.bf16 %v3073
    %v3166 = vunpack.c.h.s8.bf16 %v3074
    %v3167 = vunpack.c.h.s8.bf16 %v3075
    %v3168 = vunpack.c.l.s8.bf16 %v3076
    %v3169 = vunpack.c.l.s8.bf16 %v3077
    %v3170 = vunpack.c.l.s8.bf16 %v3078
    %v3171 = vunpack.c.l.s8.bf16 %v3079
    %v3172 = vunpack.c.h.s8.bf16 %v3076
    %v3173 = vunpack.c.h.s8.bf16 %v3077
    %v3174 = vunpack.c.h.s8.bf16 %v3078
    %v3175 = vunpack.c.h.s8.bf16 %v3079
    %v3176 = vunpack.c.l.s8.bf16 %v3080
    %v3177 = vunpack.c.l.s8.bf16 %v3081
    %v3178 = vunpack.c.l.s8.bf16 %v3082
    %v3179 = vunpack.c.l.s8.bf16 %v3083
    %v3180 = vunpack.c.h.s8.bf16 %v3080
    %v3181 = vunpack.c.h.s8.bf16 %v3081
    %v3182 = vunpack.c.h.s8.bf16 %v3082
    %v3183 = vunpack.c.h.s8.bf16 %v3083
    %v3184 = vunpack.c.l.s8.bf16 %v3084
    %v3185 = vunpack.c.l.s8.bf16 %v3085
    %v3186 = vunpack.c.l.s8.bf16 %v3086
    %v3187 = vunpack.c.l.s8.bf16 %v3087
    %v3188 = vunpack.c.h.s8.bf16 %v3084
    %v3189 = vunpack.c.h.s8.bf16 %v3085
    %v3190 = vunpack.c.h.s8.bf16 %v3086
    %v3191 = vunpack.c.h.s8.bf16 %v3087
    %v3192 = vunpack.c.l.s8.bf16 %v3088
    %v3193 = vunpack.c.l.s8.bf16 %v3089
    %v3194 = vunpack.c.l.s8.bf16 %v3090
    %v3195 = vunpack.c.l.s8.bf16 %v3091
    %v3196 = vunpack.c.h.s8.bf16 %v3088
    %v3197 = vunpack.c.h.s8.bf16 %v3089
    %v3198 = vunpack.c.h.s8.bf16 %v3090
    %v3199 = vunpack.c.h.s8.bf16 %v3091
    %v3200 = vunpack.c.l.s8.bf16 %v3092
    %v3201 = vunpack.c.l.s8.bf16 %v3093
    %v3202 = vunpack.c.l.s8.bf16 %v3094
    %v3203 = vunpack.c.l.s8.bf16 %v3095
    %v3204 = vunpack.c.h.s8.bf16 %v3092
    %v3205 = vunpack.c.h.s8.bf16 %v3093
    %v3206 = vunpack.c.h.s8.bf16 %v3094
    %v3207 = vunpack.c.h.s8.bf16 %v3095
    %v3208 = vunpack.c.l.s8.bf16 %v3096
    %v3209 = vunpack.c.l.s8.bf16 %v3097
    %v3210 = vunpack.c.l.s8.bf16 %v3098
    %v3211 = vunpack.c.l.s8.bf16 %v3099
    %v3212 = vunpack.c.h.s8.bf16 %v3096
    %v3213 = vunpack.c.h.s8.bf16 %v3097
    %v3214 = vunpack.c.h.s8.bf16 %v3098
    %v3215 = vunpack.c.h.s8.bf16 %v3099
    %v3216 = vunpack.c.l.s8.bf16 %v3100
    %v3217 = vunpack.c.l.s8.bf16 %v3101
    %v3218 = vunpack.c.l.s8.bf16 %v3102
    %v3219 = vunpack.c.l.s8.bf16 %v3103
    %v3220 = vunpack.c.h.s8.bf16 %v3100
    %v3221 = vunpack.c.h.s8.bf16 %v3101
    %v3222 = vunpack.c.h.s8.bf16 %v3102
    %v3223 = vunpack.c.h.s8.bf16 %v3103
    %v3224 = vunpack.c.l.s8.bf16 %v3104
    %v3225 = vunpack.c.l.s8.bf16 %v3105
    %v3226 = vunpack.c.l.s8.bf16 %v3106
    %v3227 = vunpack.c.l.s8.bf16 %v3107
    %v3228 = vunpack.c.h.s8.bf16 %v3104
    %v3229 = vunpack.c.h.s8.bf16 %v3105
    %v3230 = vunpack.c.h.s8.bf16 %v3106
    %v3231 = vunpack.c.h.s8.bf16 %v3107
    %v3232 = vunpack.c.l.s8.bf16 %v3108
    %v3233 = vunpack.c.l.s8.bf16 %v3109
    %v3234 = vunpack.c.l.s8.bf16 %v3110
    %v3235 = vunpack.c.l.s8.bf16 %v3111
    %v3236 = vunpack.c.h.s8.bf16 %v3108
    %v3237 = vunpack.c.h.s8.bf16 %v3109
    %v3238 = vunpack.c.h.s8.bf16 %v3110
    %v3239 = vunpack.c.h.s8.bf16 %v3111
    %3240 = vmatprep.subr.bf16.mxu0 %v3113
    %3241 = vmatpush1.bf16.msra.mxu0 %v3112
    %3242 = vmatprep.subr.bf16.mxu0 %v3117
    %3243 = vmatpush1.bf16.msra.mxu0 %v3116
    %3244 = vmatprep.subr.bf16.mxu0 %v3121
    %3245 = vmatpush1.bf16.msra.mxu0 %v3120
    %3246 = vmatprep.subr.bf16.mxu0 %v3125
    %3247 = vmatpush1.bf16.msra.mxu0 %v3124
    %3248 = vmatprep.subr.bf16.mxu0 %v3129
    %3249 = vmatpush1.bf16.msra.mxu0 %v3128
    %3250 = vmatprep.subr.bf16.mxu0 %v3133
    %3251 = vmatpush1.bf16.msra.mxu0 %v3132
    %3252 = vmatprep.subr.bf16.mxu0 %v3137
    %3253 = vmatpush1.bf16.msra.mxu0 %v3136
    %3254 = vmatprep.subr.bf16.mxu0 %v3141
    %3255 = vmatpush1.bf16.msra.mxu0 %v3140
    %3256 = vmatprep.subr.bf16.mxu0 %v3145
    %3257 = vmatpush1.bf16.msra.mxu0 %v3144
    %3258 = vmatprep.subr.bf16.mxu0 %v3149
    %3259 = vmatpush1.bf16.msra.mxu0 %v3148
    %3260 = vmatprep.subr.bf16.mxu0 %v3153
    %3261 = vmatpush1.bf16.msra.mxu0 %v3152
    %3262 = vmatprep.subr.bf16.mxu0 %v3157
    %3263 = vmatpush1.bf16.msra.mxu0 %v3156
    %3264 = vmatprep.subr.bf16.mxu0 %v3161
    %3265 = vmatpush1.bf16.msra.mxu0 %v3160
    %3266 = vmatprep.subr.bf16.mxu0 %v3165
    %3267 = vmatpush1.bf16.msra.mxu0 %v3164
    %3268 = vmatprep.subr.bf16.mxu0 %v3169
    %3269 = vmatpush1.bf16.msra.mxu0 %v3168
    %3270 = vmatprep.subr.bf16.mxu0 %v3173
    %3271 = vmatpush1.bf16.msra.mxu0 %v3172
    %3272 = vmatprep.mubr.bf16.mxu0 %v3045
    %3273 = vmatmul.mubr.bf16.gmra.mrb[0].mxu0 %v3044
    %v3274 = vpop.f32.mrb[0].mxu0
    %v3275 = vadd.f32 0.0, %v3274
    %v3276 = vpop.f32.mrb[0].mxu0
    %v3277 = vadd.f32 0.0, %v3276
    %v3278 = vpop.f32.mrb[0].mxu0
    %v3279 = vpop.f32.mrb[0].mxu0
    %3280 = vdwg.mxu0
    %3281 = vmatprep.subr.bf16.mxu0 %v3177
    %3282 = vmatpush1.bf16.msra.mxu0 %v3176
    %3283 = vmatprep.subr.bf16.mxu0 %v3181
    %3284 = vmatpush1.bf16.msra.mxu0 %v3180
    %3285 = vmatprep.subr.bf16.mxu0 %v3185
    %3286 = vmatpush1.bf16.msra.mxu0 %v3184
    %3287 = vmatprep.subr.bf16.mxu0 %v3189
    %3288 = vmatpush1.bf16.msra.mxu0 %v3188
    %3289 = vmatprep.subr.bf16.mxu0 %v3193
    %3290 = vmatpush1.bf16.msra.mxu0 %v3192
    %3291 = vmatprep.subr.bf16.mxu0 %v3197
    %3292 = vmatpush1.bf16.msra.mxu0 %v3196
    %3293 = vmatprep.subr.bf16.mxu0 %v3201
    %3294 = vmatpush1.bf16.msra.mxu0 %v3200
    %3295 = vmatprep.subr.bf16.mxu0 %v3205
    %3296 = vmatpush1.bf16.msra.mxu0 %v3204
    %3297 = vmatprep.subr.bf16.mxu0 %v3209
    %3298 = vmatpush1.bf16.msra.mxu0 %v3208
    %3299 = vmatprep.subr.bf16.mxu0 %v3213
    %3300 = vmatpush1.bf16.msra.mxu0 %v3212
    %3301 = vmatprep.subr.bf16.mxu0 %v3217
    %3302 = vmatpush1.bf16.msra.mxu0 %v3216
    %3303 = vmatprep.subr.bf16.mxu0 %v3221
    %3304 = vmatpush1.bf16.msra.mxu0 %v3220
    %3305 = vmatprep.subr.bf16.mxu0 %v3225
    %3306 = vmatpush1.bf16.msra.mxu0 %v3224
    %3307 = vmatprep.subr.bf16.mxu0 %v3229
    %3308 = vmatpush1.bf16.msra.mxu0 %v3228
    %3309 = vmatprep.subr.bf16.mxu0 %v3233
    %3310 = vmatpush1.bf16.msra.mxu0 %v3232
    %3311 = vmatprep.subr.bf16.mxu0 %v3237
    %3312 = vmatpush1.bf16.msra.mxu0 %v3236
    %3313 = vmatprep.mubr.bf16.mxu0 %v3047
    %3314 = vmatmul.mubr.bf16.gmra.mrb[0].mxu0 %v3046
    %v3315 = vpop.f32.mrb[0].mxu0
    %v3316 = vadd.f32 %v3275, %v3315
    %v3317 = vpop.f32.mrb[0].mxu0
    %v3318 = vadd.f32 %v3277, %v3317
    %v3319 = vpop.f32.mrb[0].mxu0
    %v3320 = vpop.f32.mrb[0].mxu0
    %3321 = vdwg.mxu0
    %3322 = vmatprep.subr.bf16.mxu0 %v3115
    %3323 = vmatpush1.bf16.msra.mxu0 %v3114
    %3324 = vmatprep.subr.bf16.mxu0 %v3119
    %3325 = vmatpush1.bf16.msra.mxu0 %v3118
    %3326 = vmatprep.subr.bf16.mxu0 %v3123
    %3327 = vmatpush1.bf16.msra.mxu0 %v3122
    %3328 = vmatprep.subr.bf16.mxu0 %v3127
    %3329 = vmatpush1.bf16.msra.mxu0 %v3126
    %3330 = vmatprep.subr.bf16.mxu0 %v3131
    %3331 = vmatpush1.bf16.msra.mxu0 %v3130
    %3332 = vmatprep.subr.bf16.mxu0 %v3135
    %3333 = vmatpush1.bf16.msra.mxu0 %v3134
    %3334 = vmatprep.subr.bf16.mxu0 %v3139
    %3335 = vmatpush1.bf16.msra.mxu0 %v3138
    %3336 = vmatprep.subr.bf16.mxu0 %v3143
    %3337 = vmatpush1.bf16.msra.mxu0 %v3142
    %3338 = vmatprep.subr.bf16.mxu0 %v3147
    %3339 = vmatpush1.bf16.msra.mxu0 %v3146
    %3340 = vmatprep.subr.bf16.mxu0 %v3151
    %3341 = vmatpush1.bf16.msra.mxu0 %v3150
    %3342 = vmatprep.subr.bf16.mxu0 %v3155
    %3343 = vmatpush1.bf16.msra.mxu0 %v3154
    %3344 = vmatprep.subr.bf16.mxu0 %v3159
    %3345 = vmatpush1.bf16.msra.mxu0 %v3158
    %3346 = vmatprep.subr.bf16.mxu0 %v3163
    %3347 = vmatpush1.bf16.msra.mxu0 %v3162
    %3348 = vmatprep.subr.bf16.mxu0 %v3167
    %3349 = vmatpush1.bf16.msra.mxu0 %v3166
    %3350 = vmatprep.subr.bf16.mxu0 %v3171
    %3351 = vmatpush1.bf16.msra.mxu0 %v3170
    %3352 = vmatprep.subr.bf16.mxu0 %v3175
    %3353 = vmatpush1.bf16.msra.mxu0 %v3174
    %3354 = vmatprep.mubr.bf16.mxu0 %v3045
    %3355 = vmatmul.mubr.bf16.gmra.mrb[0].mxu0 %v3044
    %v3356 = vpop.f32.mrb[0].mxu0
    %v3357 = vadd.f32 0.0, %v3356
    %v3358 = vpop.f32.mrb[0].mxu0
    %v3359 = vadd.f32 0.0, %v3358
    %v3360 = vpop.f32.mrb[0].mxu0
    %v3361 = vpop.f32.mrb[0].mxu0
    %3362 = vdwg.mxu0
    %3363 = vmatprep.subr.bf16.mxu0 %v3179
    %3364 = vmatpush1.bf16.msra.mxu0 %v3178
    %3365 = vmatprep.subr.bf16.mxu0 %v3183
    %3366 = vmatpush1.bf16.msra.mxu0 %v3182
    %3367 = vmatprep.subr.bf16.mxu0 %v3187
    %3368 = vmatpush1.bf16.msra.mxu0 %v3186
    %3369 = vmatprep.subr.bf16.mxu0 %v3191
    %3370 = vmatpush1.bf16.msra.mxu0 %v3190
    %3371 = vmatprep.subr.bf16.mxu0 %v3195
    %3372 = vmatpush1.bf16.msra.mxu0 %v3194
    %3373 = vmatprep.subr.bf16.mxu0 %v3199
    %3374 = vmatpush1.bf16.msra.mxu0 %v3198
    %3375 = vmatprep.subr.bf16.mxu0 %v3203
    %3376 = vmatpush1.bf16.msra.mxu0 %v3202
    %3377 = vmatprep.subr.bf16.mxu0 %v3207
    %3378 = vmatpush1.bf16.msra.mxu0 %v3206
    %3379 = vmatprep.subr.bf16.mxu0 %v3211
    %3380 = vmatpush1.bf16.msra.mxu0 %v3210
    %3381 = vmatprep.subr.bf16.mxu0 %v3215
    %3382 = vmatpush1.bf16.msra.mxu0 %v3214
    %3383 = vmatprep.subr.bf16.mxu0 %v3219
    %3384 = vmatpush1.bf16.msra.mxu0 %v3218
    %3385 = vmatprep.subr.bf16.mxu0 %v3223
    %3386 = vmatpush1.bf16.msra.mxu0 %v3222
    %3387 = vmatprep.subr.bf16.mxu0 %v3227
    %3388 = vmatpush1.bf16.msra.mxu0 %v3226
    %3389 = vmatprep.subr.bf16.mxu0 %v3231
    %3390 = vmatpush1.bf16.msra.mxu0 %v3230
    %3391 = vmatprep.subr.bf16.mxu0 %v3235
    %3392 = vmatpush1.bf16.msra.mxu0 %v3234
    %3393 = vmatprep.subr.bf16.mxu0 %v3239
    %3394 = vmatpush1.bf16.msra.mxu0 %v3238
    %3395 = vmatprep.mubr.bf16.mxu0 %v3047
    %3396 = vmatmul.mubr.bf16.gmra.mrb[0].mxu0 %v3046
    %v3397 = vpop.f32.mrb[0].mxu0
    %v3398 = vadd.f32 %v3357, %v3397
    %v3399 = vpop.f32.mrb[0].mxu0
    %v3400 = vadd.f32 %v3359, %v3399
    %v3401 = vpop.f32.mrb[0].mxu0
    %v3402 = vpop.f32.mrb[0].mxu0
    %3403 = vdwg.mxu0
    %v3404 = vld [vmem:[#allocation25] sm:$0xf]
    %v3406 = vlaneseq
    %v3407 = vshrl.u32 %v3406, 7
    %v3408 = vsub.s32 0, %v3407
    %v3409 = vrot.slane %v3404, %v3408
    %v3410 = vlaneseq
    %v3411 = vshrl.u32 %v3410, 7
    %v3412 = vsub.s32 1, %v3411
    %v3413 = vrot.slane %v3404, %v3412
    %v3414 = vlaneseq
    %v3415 = vshrl.u32 %v3414, 7
    %v3416 = vsub.s32 2, %v3415
    %v3417 = vrot.slane %v3404, %v3416
    %v3418 = vlaneseq
    %v3419 = vshrl.u32 %v3418, 7
    %v3420 = vsub.s32 3, %v3419
    %v3421 = vrot.slane %v3404, %v3420
    %v3426 = vmul.f32 %v3316, %v3409
    %v3427 = vmul.f32 %v3318, %v3413
    %v3428 = vmul.f32 %v3398, %v3417
    %v3429 = vmul.f32 %v3400, %v3421
    %v3430 = vld [vmem:[#allocation26] sm:$0xf]
    %v3432 = vlaneseq
    %v3433 = vshrl.u32 %v3432, 7
    %v3434 = vsub.s32 0, %v3433
    %v3435 = vrot.slane %v3430, %v3434
    %v3436 = vlaneseq
    %v3437 = vshrl.u32 %v3436, 7
    %v3438 = vsub.s32 1, %v3437
    %v3439 = vrot.slane %v3430, %v3438
    %v3440 = vlaneseq
    %v3441 = vshrl.u32 %v3440, 7
    %v3442 = vsub.s32 2, %v3441
    %v3443 = vrot.slane %v3430, %v3442
    %v3444 = vlaneseq
    %v3445 = vshrl.u32 %v3444, 7
    %v3446 = vsub.s32 3, %v3445
    %v3447 = vrot.slane %v3430, %v3446
    %v3452 = vadd.f32 %v3426, %v3435
    %v3453 = vadd.f32 %v3427, %v3439
    %v3454 = vadd.f32 %v3428, %v3443
    %v3455 = vadd.f32 %v3429, %v3447
    %v3456 = vmax.f32 %v3452, 0.0
    %v3457 = vmax.f32 %v3453, 0.0
    %v3458 = vmax.f32 %v3454, 0.0
    %v3459 = vmax.f32 %v3455, 0.0
    %v3460 = vpack.c.bf16 %v3456, %v3456
    %v3461 = vpack.c.bf16 %v3457, %v3457
    %v3462 = vpack.c.bf16 %v3458, %v3458
    %v3463 = vpack.c.bf16 %v3459, %v3459
    %v3464 = vld [vmem:[%s23] sm:$0xff]
    %v3465 = vld [vmem:[%s23 + $0x8] sm:$0xff]
    %v3466 = vld [vmem:[%s23 + $0x10] sm:$0xff]
    %v3467 = vld [vmem:[%s23 + $0x18] sm:$0xff]
    %v3468 = vld [vmem:[%s23 + $0x20] sm:$0xff]
    %v3469 = vld [vmem:[%s23 + $0x28] sm:$0xff]
    %v3470 = vld [vmem:[%s23 + $0x30] sm:$0xff]
    %v3471 = vld [vmem:[%s23 + $0x38] sm:$0xff]
    %v3472 = vld [vmem:[%s23 + $0x40] sm:$0xff]
    %v3473 = vld [vmem:[%s23 + $0x48] sm:$0xff]
    %v3474 = vld [vmem:[%s23 + $0x50] sm:$0xff]
    %v3475 = vld [vmem:[%s23 + $0x58] sm:$0xff]
    %v3476 = vld [vmem:[%s23 + $0x60] sm:$0xff]
    %v3477 = vld [vmem:[%s23 + $0x68] sm:$0xff]
    %v3478 = vld [vmem:[%s23 + $0x70] sm:$0xff]
    %v3479 = vld [vmem:[%s23 + $0x78] sm:$0xff]
    %v3480 = vld [vmem:[%s23 + $0x80] sm:$0xff]
    %v3481 = vld [vmem:[%s23 + $0x88] sm:$0xff]
    %v3482 = vld [vmem:[%s23 + $0x90] sm:$0xff]
    %v3483 = vld [vmem:[%s23 + $0x98] sm:$0xff]
    %v3484 = vld [vmem:[%s23 + $0xa0] sm:$0xff]
    %v3485 = vld [vmem:[%s23 + $0xa8] sm:$0xff]
    %v3486 = vld [vmem:[%s23 + $0xb0] sm:$0xff]
    %v3487 = vld [vmem:[%s23 + $0xb8] sm:$0xff]
    %v3488 = vld [vmem:[%s23 + $0xc0] sm:$0xff]
    %v3489 = vld [vmem:[%s23 + $0xc8] sm:$0xff]
    %v3490 = vld [vmem:[%s23 + $0xd0] sm:$0xff]
    %v3491 = vld [vmem:[%s23 + $0xd8] sm:$0xff]
    %v3492 = vld [vmem:[%s23 + $0xe0] sm:$0xff]
    %v3493 = vld [vmem:[%s23 + $0xe8] sm:$0xff]
    %v3494 = vld [vmem:[%s23 + $0xf0] sm:$0xff]
    %v3495 = vld [vmem:[%s23 + $0xf8] sm:$0xff]
    %v3496 = vld [vmem:[%s23 + $0x100] sm:$0xff]
    %v3497 = vld [vmem:[%s23 + $0x108] sm:$0xff]
    %v3498 = vld [vmem:[%s23 + $0x110] sm:$0xff]
    %v3499 = vld [vmem:[%s23 + $0x118] sm:$0xff]
    %v3500 = vld [vmem:[%s23 + $0x120] sm:$0xff]
    %v3501 = vld [vmem:[%s23 + $0x128] sm:$0xff]
    %v3502 = vld [vmem:[%s23 + $0x130] sm:$0xff]
    %v3503 = vld [vmem:[%s23 + $0x138] sm:$0xff]
    %v3504 = vld [vmem:[%s23 + $0x140] sm:$0xff]
    %v3505 = vld [vmem:[%s23 + $0x148] sm:$0xff]
    %v3506 = vld [vmem:[%s23 + $0x150] sm:$0xff]
    %v3507 = vld [vmem:[%s23 + $0x158] sm:$0xff]
    %v3508 = vld [vmem:[%s23 + $0x160] sm:$0xff]
    %v3509 = vld [vmem:[%s23 + $0x168] sm:$0xff]
    %v3510 = vld [vmem:[%s23 + $0x170] sm:$0xff]
    %v3511 = vld [vmem:[%s23 + $0x178] sm:$0xff]
    %v3512 = vld [vmem:[%s23 + $0x180] sm:$0xff]
    %v3513 = vld [vmem:[%s23 + $0x188] sm:$0xff]
    %v3514 = vld [vmem:[%s23 + $0x190] sm:$0xff]
    %v3515 = vld [vmem:[%s23 + $0x198] sm:$0xff]
    %v3516 = vld [vmem:[%s23 + $0x1a0] sm:$0xff]
    %v3517 = vld [vmem:[%s23 + $0x1a8] sm:$0xff]
    %v3518 = vld [vmem:[%s23 + $0x1b0] sm:$0xff]
    %v3519 = vld [vmem:[%s23 + $0x1b8] sm:$0xff]
    %v3520 = vld [vmem:[%s23 + $0x1c0] sm:$0xff]
    %v3521 = vld [vmem:[%s23 + $0x1c8] sm:$0xff]
    %v3522 = vld [vmem:[%s23 + $0x1d0] sm:$0xff]
    %v3523 = vld [vmem:[%s23 + $0x1d8] sm:$0xff]
    %v3524 = vld [vmem:[%s23 + $0x1e0] sm:$0xff]
    %v3525 = vld [vmem:[%s23 + $0x1e8] sm:$0xff]
    %v3526 = vld [vmem:[%s23 + $0x1f0] sm:$0xff]
    %v3527 = vld [vmem:[%s23 + $0x1f8] sm:$0xff]
    %v3528 = vld [vmem:[%s23 + $0x200] sm:$0xff]
    %v3529 = vld [vmem:[%s23 + $0x208] sm:$0xff]
    %v3530 = vld [vmem:[%s23 + $0x210] sm:$0xff]
    %v3531 = vld [vmem:[%s23 + $0x218] sm:$0xff]
    %v3532 = vld [vmem:[%s23 + $0x220] sm:$0xff]
    %v3533 = vld [vmem:[%s23 + $0x228] sm:$0xff]
    %v3534 = vld [vmem:[%s23 + $0x230] sm:$0xff]
    %v3535 = vld [vmem:[%s23 + $0x238] sm:$0xff]
    %v3536 = vld [vmem:[%s23 + $0x240] sm:$0xff]
    %v3537 = vld [vmem:[%s23 + $0x248] sm:$0xff]
    %v3538 = vld [vmem:[%s23 + $0x250] sm:$0xff]
    %v3539 = vld [vmem:[%s23 + $0x258] sm:$0xff]
    %v3540 = vld [vmem:[%s23 + $0x260] sm:$0xff]
    %v3541 = vld [vmem:[%s23 + $0x268] sm:$0xff]
    %v3542 = vld [vmem:[%s23 + $0x270] sm:$0xff]
    %v3543 = vld [vmem:[%s23 + $0x278] sm:$0xff]
    %v3544 = vld [vmem:[%s23 + $0x280] sm:$0xff]
    %v3545 = vld [vmem:[%s23 + $0x288] sm:$0xff]
    %v3546 = vld [vmem:[%s23 + $0x290] sm:$0xff]
    %v3547 = vld [vmem:[%s23 + $0x298] sm:$0xff]
    %v3548 = vld [vmem:[%s23 + $0x2a0] sm:$0xff]
    %v3549 = vld [vmem:[%s23 + $0x2a8] sm:$0xff]
    %v3550 = vld [vmem:[%s23 + $0x2b0] sm:$0xff]
    %v3551 = vld [vmem:[%s23 + $0x2b8] sm:$0xff]
    %v3552 = vld [vmem:[%s23 + $0x2c0] sm:$0xff]
    %v3553 = vld [vmem:[%s23 + $0x2c8] sm:$0xff]
    %v3554 = vld [vmem:[%s23 + $0x2d0] sm:$0xff]
    %v3555 = vld [vmem:[%s23 + $0x2d8] sm:$0xff]
    %v3556 = vld [vmem:[%s23 + $0x2e0] sm:$0xff]
    %v3557 = vld [vmem:[%s23 + $0x2e8] sm:$0xff]
    %v3558 = vld [vmem:[%s23 + $0x2f0] sm:$0xff]
    %v3559 = vld [vmem:[%s23 + $0x2f8] sm:$0xff]
    %v3560 = vld [vmem:[%s23 + $0x300] sm:$0xff]
    %v3561 = vld [vmem:[%s23 + $0x308] sm:$0xff]
    %v3562 = vld [vmem:[%s23 + $0x310] sm:$0xff]
    %v3563 = vld [vmem:[%s23 + $0x318] sm:$0xff]
    %v3564 = vld [vmem:[%s23 + $0x320] sm:$0xff]
    %v3565 = vld [vmem:[%s23 + $0x328] sm:$0xff]
    %v3566 = vld [vmem:[%s23 + $0x330] sm:$0xff]
    %v3567 = vld [vmem:[%s23 + $0x338] sm:$0xff]
    %v3568 = vld [vmem:[%s23 + $0x340] sm:$0xff]
    %v3569 = vld [vmem:[%s23 + $0x348] sm:$0xff]
    %v3570 = vld [vmem:[%s23 + $0x350] sm:$0xff]
    %v3571 = vld [vmem:[%s23 + $0x358] sm:$0xff]
    %v3572 = vld [vmem:[%s23 + $0x360] sm:$0xff]
    %v3573 = vld [vmem:[%s23 + $0x368] sm:$0xff]
    %v3574 = vld [vmem:[%s23 + $0x370] sm:$0xff]
    %v3575 = vld [vmem:[%s23 + $0x378] sm:$0xff]
    %v3576 = vunpack.c.l.s8.bf16 %v3464
    %v3577 = vunpack.c.l.s8.bf16 %v3465
    %v3578 = vunpack.c.l.s8.bf16 %v3466
    %v3579 = vunpack.c.l.s8.bf16 %v3467
    %v3580 = vunpack.c.l.s8.bf16 %v3468
    %v3581 = vunpack.c.l.s8.bf16 %v3469
    %v3582 = vunpack.c.l.s8.bf16 %v3470
    %v3583 = vunpack.c.h.s8.bf16 %v3464
    %v3584 = vunpack.c.h.s8.bf16 %v3465
    %v3585 = vunpack.c.h.s8.bf16 %v3466
    %v3586 = vunpack.c.h.s8.bf16 %v3467
    %v3587 = vunpack.c.h.s8.bf16 %v3468
    %v3588 = vunpack.c.h.s8.bf16 %v3469
    %v3589 = vunpack.c.h.s8.bf16 %v3470
    %v3590 = vunpack.c.l.s8.bf16 %v3471
    %v3591 = vunpack.c.l.s8.bf16 %v3472
    %v3592 = vunpack.c.l.s8.bf16 %v3473
    %v3593 = vunpack.c.l.s8.bf16 %v3474
    %v3594 = vunpack.c.l.s8.bf16 %v3475
    %v3595 = vunpack.c.l.s8.bf16 %v3476
    %v3596 = vunpack.c.l.s8.bf16 %v3477
    %v3597 = vunpack.c.h.s8.bf16 %v3471
    %v3598 = vunpack.c.h.s8.bf16 %v3472
    %v3599 = vunpack.c.h.s8.bf16 %v3473
    %v3600 = vunpack.c.h.s8.bf16 %v3474
    %v3601 = vunpack.c.h.s8.bf16 %v3475
    %v3602 = vunpack.c.h.s8.bf16 %v3476
    %v3603 = vunpack.c.h.s8.bf16 %v3477
    %v3604 = vunpack.c.l.s8.bf16 %v3478
    %v3605 = vunpack.c.l.s8.bf16 %v3479
    %v3606 = vunpack.c.l.s8.bf16 %v3480
    %v3607 = vunpack.c.l.s8.bf16 %v3481
    %v3608 = vunpack.c.l.s8.bf16 %v3482
    %v3609 = vunpack.c.l.s8.bf16 %v3483
    %v3610 = vunpack.c.l.s8.bf16 %v3484
    %v3611 = vunpack.c.h.s8.bf16 %v3478
    %v3612 = vunpack.c.h.s8.bf16 %v3479
    %v3613 = vunpack.c.h.s8.bf16 %v3480
    %v3614 = vunpack.c.h.s8.bf16 %v3481
    %v3615 = vunpack.c.h.s8.bf16 %v3482
    %v3616 = vunpack.c.h.s8.bf16 %v3483
    %v3617 = vunpack.c.h.s8.bf16 %v3484
    %v3618 = vunpack.c.l.s8.bf16 %v3485
    %v3619 = vunpack.c.l.s8.bf16 %v3486
    %v3620 = vunpack.c.l.s8.bf16 %v3487
    %v3621 = vunpack.c.l.s8.bf16 %v3488
    %v3622 = vunpack.c.l.s8.bf16 %v3489
    %v3623 = vunpack.c.l.s8.bf16 %v3490
    %v3624 = vunpack.c.l.s8.bf16 %v3491
    %v3625 = vunpack.c.h.s8.bf16 %v3485
    %v3626 = vunpack.c.h.s8.bf16 %v3486
    %v3627 = vunpack.c.h.s8.bf16 %v3487
    %v3628 = vunpack.c.h.s8.bf16 %v3488
    %v3629 = vunpack.c.h.s8.bf16 %v3489
    %v3630 = vunpack.c.h.s8.bf16 %v3490
    %v3631 = vunpack.c.h.s8.bf16 %v3491
    %v3632 = vunpack.c.l.s8.bf16 %v3492
    %v3633 = vunpack.c.l.s8.bf16 %v3493
    %v3634 = vunpack.c.l.s8.bf16 %v3494
    %v3635 = vunpack.c.l.s8.bf16 %v3495
    %v3636 = vunpack.c.l.s8.bf16 %v3496
    %v3637 = vunpack.c.l.s8.bf16 %v3497
    %v3638 = vunpack.c.l.s8.bf16 %v3498
    %v3639 = vunpack.c.h.s8.bf16 %v3492
    %v3640 = vunpack.c.h.s8.bf16 %v3493
    %v3641 = vunpack.c.h.s8.bf16 %v3494
    %v3642 = vunpack.c.h.s8.bf16 %v3495
    %v3643 = vunpack.c.h.s8.bf16 %v3496
    %v3644 = vunpack.c.h.s8.bf16 %v3497
    %v3645 = vunpack.c.h.s8.bf16 %v3498
    %v3646 = vunpack.c.l.s8.bf16 %v3499
    %v3647 = vunpack.c.l.s8.bf16 %v3500
    %v3648 = vunpack.c.l.s8.bf16 %v3501
    %v3649 = vunpack.c.l.s8.bf16 %v3502
    %v3650 = vunpack.c.l.s8.bf16 %v3503
    %v3651 = vunpack.c.l.s8.bf16 %v3504
    %v3652 = vunpack.c.l.s8.bf16 %v3505
    %v3653 = vunpack.c.h.s8.bf16 %v3499
    %v3654 = vunpack.c.h.s8.bf16 %v3500
    %v3655 = vunpack.c.h.s8.bf16 %v3501
    %v3656 = vunpack.c.h.s8.bf16 %v3502
    %v3657 = vunpack.c.h.s8.bf16 %v3503
    %v3658 = vunpack.c.h.s8.bf16 %v3504
    %v3659 = vunpack.c.h.s8.bf16 %v3505
    %v3660 = vunpack.c.l.s8.bf16 %v3506
    %v3661 = vunpack.c.l.s8.bf16 %v3507
    %v3662 = vunpack.c.l.s8.bf16 %v3508
    %v3663 = vunpack.c.l.s8.bf16 %v3509
    %v3664 = vunpack.c.l.s8.bf16 %v3510
    %v3665 = vunpack.c.l.s8.bf16 %v3511
    %v3666 = vunpack.c.l.s8.bf16 %v3512
    %v3667 = vunpack.c.h.s8.bf16 %v3506
    %v3668 = vunpack.c.h.s8.bf16 %v3507
    %v3669 = vunpack.c.h.s8.bf16 %v3508
    %v3670 = vunpack.c.h.s8.bf16 %v3509
    %v3671 = vunpack.c.h.s8.bf16 %v3510
    %v3672 = vunpack.c.h.s8.bf16 %v3511
    %v3673 = vunpack.c.h.s8.bf16 %v3512
    %v3674 = vunpack.c.l.s8.bf16 %v3513
    %v3675 = vunpack.c.l.s8.bf16 %v3514
    %v3676 = vunpack.c.l.s8.bf16 %v3515
    %v3677 = vunpack.c.l.s8.bf16 %v3516
    %v3678 = vunpack.c.l.s8.bf16 %v3517
    %v3679 = vunpack.c.l.s8.bf16 %v3518
    %v3680 = vunpack.c.l.s8.bf16 %v3519
    %v3681 = vunpack.c.h.s8.bf16 %v3513
    %v3682 = vunpack.c.h.s8.bf16 %v3514
    %v3683 = vunpack.c.h.s8.bf16 %v3515
    %v3684 = vunpack.c.h.s8.bf16 %v3516
    %v3685 = vunpack.c.h.s8.bf16 %v3517
    %v3686 = vunpack.c.h.s8.bf16 %v3518
    %v3687 = vunpack.c.h.s8.bf16 %v3519
    %v3688 = vunpack.c.l.s8.bf16 %v3520
    %v3689 = vunpack.c.l.s8.bf16 %v3521
    %v3690 = vunpack.c.l.s8.bf16 %v3522
    %v3691 = vunpack.c.l.s8.bf16 %v3523
    %v3692 = vunpack.c.l.s8.bf16 %v3524
    %v3693 = vunpack.c.l.s8.bf16 %v3525
    %v3694 = vunpack.c.l.s8.bf16 %v3526
    %v3695 = vunpack.c.h.s8.bf16 %v3520
    %v3696 = vunpack.c.h.s8.bf16 %v3521
    %v3697 = vunpack.c.h.s8.bf16 %v3522
    %v3698 = vunpack.c.h.s8.bf16 %v3523
    %v3699 = vunpack.c.h.s8.bf16 %v3524
    %v3700 = vunpack.c.h.s8.bf16 %v3525
    %v3701 = vunpack.c.h.s8.bf16 %v3526
    %v3702 = vunpack.c.l.s8.bf16 %v3527
    %v3703 = vunpack.c.l.s8.bf16 %v3528
    %v3704 = vunpack.c.l.s8.bf16 %v3529
    %v3705 = vunpack.c.l.s8.bf16 %v3530
    %v3706 = vunpack.c.l.s8.bf16 %v3531
    %v3707 = vunpack.c.l.s8.bf16 %v3532
    %v3708 = vunpack.c.l.s8.bf16 %v3533
    %v3709 = vunpack.c.h.s8.bf16 %v3527
    %v3710 = vunpack.c.h.s8.bf16 %v3528
    %v3711 = vunpack.c.h.s8.bf16 %v3529
    %v3712 = vunpack.c.h.s8.bf16 %v3530
    %v3713 = vunpack.c.h.s8.bf16 %v3531
    %v3714 = vunpack.c.h.s8.bf16 %v3532
    %v3715 = vunpack.c.h.s8.bf16 %v3533
    %v3716 = vunpack.c.l.s8.bf16 %v3534
    %v3717 = vunpack.c.l.s8.bf16 %v3535
    %v3718 = vunpack.c.l.s8.bf16 %v3536
    %v3719 = vunpack.c.l.s8.bf16 %v3537
    %v3720 = vunpack.c.l.s8.bf16 %v3538
    %v3721 = vunpack.c.l.s8.bf16 %v3539
    %v3722 = vunpack.c.l.s8.bf16 %v3540
    %v3723 = vunpack.c.h.s8.bf16 %v3534
    %v3724 = vunpack.c.h.s8.bf16 %v3535
    %v3725 = vunpack.c.h.s8.bf16 %v3536
    %v3726 = vunpack.c.h.s8.bf16 %v3537
    %v3727 = vunpack.c.h.s8.bf16 %v3538
    %v3728 = vunpack.c.h.s8.bf16 %v3539
    %v3729 = vunpack.c.h.s8.bf16 %v3540
    %v3730 = vunpack.c.l.s8.bf16 %v3541
    %v3731 = vunpack.c.l.s8.bf16 %v3542
    %v3732 = vunpack.c.l.s8.bf16 %v3543
    %v3733 = vunpack.c.l.s8.bf16 %v3544
    %v3734 = vunpack.c.l.s8.bf16 %v3545
    %v3735 = vunpack.c.l.s8.bf16 %v3546
    %v3736 = vunpack.c.l.s8.bf16 %v3547
    %v3737 = vunpack.c.h.s8.bf16 %v3541
    %v3738 = vunpack.c.h.s8.bf16 %v3542
    %v3739 = vunpack.c.h.s8.bf16 %v3543
    %v3740 = vunpack.c.h.s8.bf16 %v3544
    %v3741 = vunpack.c.h.s8.bf16 %v3545
    %v3742 = vunpack.c.h.s8.bf16 %v3546
    %v3743 = vunpack.c.h.s8.bf16 %v3547
    %v3744 = vunpack.c.l.s8.bf16 %v3548
    %v3745 = vunpack.c.l.s8.bf16 %v3549
    %v3746 = vunpack.c.l.s8.bf16 %v3550
    %v3747 = vunpack.c.l.s8.bf16 %v3551
    %v3748 = vunpack.c.l.s8.bf16 %v3552
    %v3749 = vunpack.c.l.s8.bf16 %v3553
    %v3750 = vunpack.c.l.s8.bf16 %v3554
    %v3751 = vunpack.c.h.s8.bf16 %v3548
    %v3752 = vunpack.c.h.s8.bf16 %v3549
    %v3753 = vunpack.c.h.s8.bf16 %v3550
    %v3754 = vunpack.c.h.s8.bf16 %v3551
    %v3755 = vunpack.c.h.s8.bf16 %v3552
    %v3756 = vunpack.c.h.s8.bf16 %v3553
    %v3757 = vunpack.c.h.s8.bf16 %v3554
    %v3758 = vunpack.c.l.s8.bf16 %v3555
    %v3759 = vunpack.c.l.s8.bf16 %v3556
    %v3760 = vunpack.c.l.s8.bf16 %v3557
    %v3761 = vunpack.c.l.s8.bf16 %v3558
    %v3762 = vunpack.c.l.s8.bf16 %v3559
    %v3763 = vunpack.c.l.s8.bf16 %v3560
    %v3764 = vunpack.c.l.s8.bf16 %v3561
    %v3765 = vunpack.c.h.s8.bf16 %v3555
    %v3766 = vunpack.c.h.s8.bf16 %v3556
    %v3767 = vunpack.c.h.s8.bf16 %v3557
    %v3768 = vunpack.c.h.s8.bf16 %v3558
    %v3769 = vunpack.c.h.s8.bf16 %v3559
    %v3770 = vunpack.c.h.s8.bf16 %v3560
    %v3771 = vunpack.c.h.s8.bf16 %v3561
    %v3772 = vunpack.c.l.s8.bf16 %v3562
    %v3773 = vunpack.c.l.s8.bf16 %v3563
    %v3774 = vunpack.c.l.s8.bf16 %v3564
    %v3775 = vunpack.c.l.s8.bf16 %v3565
    %v3776 = vunpack.c.l.s8.bf16 %v3566
    %v3777 = vunpack.c.l.s8.bf16 %v3567
    %v3778 = vunpack.c.l.s8.bf16 %v3568
    %v3779 = vunpack.c.h.s8.bf16 %v3562
    %v3780 = vunpack.c.h.s8.bf16 %v3563
    %v3781 = vunpack.c.h.s8.bf16 %v3564
    %v3782 = vunpack.c.h.s8.bf16 %v3565
    %v3783 = vunpack.c.h.s8.bf16 %v3566
    %v3784 = vunpack.c.h.s8.bf16 %v3567
    %v3785 = vunpack.c.h.s8.bf16 %v3568
    %v3786 = vunpack.c.l.s8.bf16 %v3569
    %v3787 = vunpack.c.l.s8.bf16 %v3570
    %v3788 = vunpack.c.l.s8.bf16 %v3571
    %v3789 = vunpack.c.l.s8.bf16 %v3572
    %v3790 = vunpack.c.l.s8.bf16 %v3573
    %v3791 = vunpack.c.l.s8.bf16 %v3574
    %v3792 = vunpack.c.l.s8.bf16 %v3575
    %v3793 = vunpack.c.h.s8.bf16 %v3569
    %v3794 = vunpack.c.h.s8.bf16 %v3570
    %v3795 = vunpack.c.h.s8.bf16 %v3571
    %v3796 = vunpack.c.h.s8.bf16 %v3572
    %v3797 = vunpack.c.h.s8.bf16 %v3573
    %v3798 = vunpack.c.h.s8.bf16 %v3574
    %v3799 = vunpack.c.h.s8.bf16 %v3575
    %3800 = vmatprep.subr.bf16.mxu0 %v3577
    %3801 = vmatpush1.bf16.msra.mxu0 %v3576
    %3802 = vmatprep.subr.bf16.mxu0 %v3584
    %3803 = vmatpush1.bf16.msra.mxu0 %v3583
    %3804 = vmatprep.subr.bf16.mxu0 %v3591
    %3805 = vmatpush1.bf16.msra.mxu0 %v3590
    %3806 = vmatprep.subr.bf16.mxu0 %v3598
    %3807 = vmatpush1.bf16.msra.mxu0 %v3597
    %3808 = vmatprep.subr.bf16.mxu0 %v3605
    %3809 = vmatpush1.bf16.msra.mxu0 %v3604
    %3810 = vmatprep.subr.bf16.mxu0 %v3612
    %3811 = vmatpush1.bf16.msra.mxu0 %v3611
    %3812 = vmatprep.subr.bf16.mxu0 %v3619
    %3813 = vmatpush1.bf16.msra.mxu0 %v3618
    %3814 = vmatprep.subr.bf16.mxu0 %v3626
    %3815 = vmatpush1.bf16.msra.mxu0 %v3625
    %3816 = vmatprep.subr.bf16.mxu0 %v3633
    %3817 = vmatpush1.bf16.msra.mxu0 %v3632
    %3818 = vmatprep.subr.bf16.mxu0 %v3640
    %3819 = vmatpush1.bf16.msra.mxu0 %v3639
    %3820 = vmatprep.subr.bf16.mxu0 %v3647
    %3821 = vmatpush1.bf16.msra.mxu0 %v3646
    %3822 = vmatprep.subr.bf16.mxu0 %v3654
    %3823 = vmatpush1.bf16.msra.mxu0 %v3653
    %3824 = vmatprep.subr.bf16.mxu0 %v3661
    %3825 = vmatpush1.bf16.msra.mxu0 %v3660
    %3826 = vmatprep.subr.bf16.mxu0 %v3668
    %3827 = vmatpush1.bf16.msra.mxu0 %v3667
    %3828 = vmatprep.subr.bf16.mxu0 %v3675
    %3829 = vmatpush1.bf16.msra.mxu0 %v3674
    %3830 = vmatprep.subr.bf16.mxu0 %v3682
    %3831 = vmatpush1.bf16.msra.mxu0 %v3681
    %3832 = vmatprep.mubr.bf16.mxu0 %v3461
    %3833 = vmatmul.mubr.bf16.gmra.mrb[0].mxu0 %v3460
    %v3834 = vpop.f32.mrb[0].mxu0
    %v3835 = vadd.f32 0.0, %v3834
    %v3836 = vpop.f32.mrb[0].mxu0
    %v3837 = vadd.f32 0.0, %v3836
    %v3838 = vpop.f32.mrb[0].mxu0
    %v3839 = vpop.f32.mrb[0].mxu0
    %3840 = vdwg.mxu0
    %3841 = vmatprep.subr.bf16.mxu0 %v3689
    %3842 = vmatpush1.bf16.msra.mxu0 %v3688
    %3843 = vmatprep.subr.bf16.mxu0 %v3696
    %3844 = vmatpush1.bf16.msra.mxu0 %v3695
    %3845 = vmatprep.subr.bf16.mxu0 %v3703
    %3846 = vmatpush1.bf16.msra.mxu0 %v3702
    %3847 = vmatprep.subr.bf16.mxu0 %v3710
    %3848 = vmatpush1.bf16.msra.mxu0 %v3709
    %3849 = vmatprep.subr.bf16.mxu0 %v3717
    %3850 = vmatpush1.bf16.msra.mxu0 %v3716
    %3851 = vmatprep.subr.bf16.mxu0 %v3724
    %3852 = vmatpush1.bf16.msra.mxu0 %v3723
    %3853 = vmatprep.subr.bf16.mxu0 %v3731
    %3854 = vmatpush1.bf16.msra.mxu0 %v3730
    %3855 = vmatprep.subr.bf16.mxu0 %v3738
    %3856 = vmatpush1.bf16.msra.mxu0 %v3737
    %3857 = vmatprep.subr.bf16.mxu0 %v3745
    %3858 = vmatpush1.bf16.msra.mxu0 %v3744
    %3859 = vmatprep.subr.bf16.mxu0 %v3752
    %3860 = vmatpush1.bf16.msra.mxu0 %v3751
    %3861 = vmatprep.subr.bf16.mxu0 %v3759
    %3862 = vmatpush1.bf16.msra.mxu0 %v3758
    %3863 = vmatprep.subr.bf16.mxu0 %v3766
    %3864 = vmatpush1.bf16.msra.mxu0 %v3765
    %3865 = vmatprep.subr.bf16.mxu0 %v3773
    %3866 = vmatpush1.bf16.msra.mxu0 %v3772
    %3867 = vmatprep.subr.bf16.mxu0 %v3780
    %3868 = vmatpush1.bf16.msra.mxu0 %v3779
    %3869 = vmatprep.subr.bf16.mxu0 %v3787
    %3870 = vmatpush1.bf16.msra.mxu0 %v3786
    %3871 = vmatprep.subr.bf16.mxu0 %v3794
    %3872 = vmatpush1.bf16.msra.mxu0 %v3793
    %3873 = vmatprep.mubr.bf16.mxu0 %v3463
    %3874 = vmatmul.mubr.bf16.gmra.mrb[0].mxu0 %v3462
    %v3875 = vpop.f32.mrb[0].mxu0
    %v3876 = vadd.f32 %v3835, %v3875
    %v3877 = vpop.f32.mrb[0].mxu0
    %v3878 = vadd.f32 %v3837, %v3877
    %v3879 = vpop.f32.mrb[0].mxu0
    %v3880 = vpop.f32.mrb[0].mxu0
    %3881 = vdwg.mxu0
    %3882 = vmatprep.subr.bf16.mxu0 %v3579
    %3883 = vmatpush1.bf16.msra.mxu0 %v3578
    %3884 = vmatprep.subr.bf16.mxu0 %v3586
    %3885 = vmatpush1.bf16.msra.mxu0 %v3585
    %3886 = vmatprep.subr.bf16.mxu0 %v3593
    %3887 = vmatpush1.bf16.msra.mxu0 %v3592
    %3888 = vmatprep.subr.bf16.mxu0 %v3600
    %3889 = vmatpush1.bf16.msra.mxu0 %v3599
    %3890 = vmatprep.subr.bf16.mxu0 %v3607
    %3891 = vmatpush1.bf16.msra.mxu0 %v3606
    %3892 = vmatprep.subr.bf16.mxu0 %v3614
    %3893 = vmatpush1.bf16.msra.mxu0 %v3613
    %3894 = vmatprep.subr.bf16.mxu0 %v3621
    %3895 = vmatpush1.bf16.msra.mxu0 %v3620
    %3896 = vmatprep.subr.bf16.mxu0 %v3628
    %3897 = vmatpush1.bf16.msra.mxu0 %v3627
    %3898 = vmatprep.subr.bf16.mxu0 %v3635
    %3899 = vmatpush1.bf16.msra.mxu0 %v3634
    %3900 = vmatprep.subr.bf16.mxu0 %v3642
    %3901 = vmatpush1.bf16.msra.mxu0 %v3641
    %3902 = vmatprep.subr.bf16.mxu0 %v3649
    %3903 = vmatpush1.bf16.msra.mxu0 %v3648
    %3904 = vmatprep.subr.bf16.mxu0 %v3656
    %3905 = vmatpush1.bf16.msra.mxu0 %v3655
    %3906 = vmatprep.subr.bf16.mxu0 %v3663
    %3907 = vmatpush1.bf16.msra.mxu0 %v3662
    %3908 = vmatprep.subr.bf16.mxu0 %v3670
    %3909 = vmatpush1.bf16.msra.mxu0 %v3669
    %3910 = vmatprep.subr.bf16.mxu0 %v3677
    %3911 = vmatpush1.bf16.msra.mxu0 %v3676
    %3912 = vmatprep.subr.bf16.mxu0 %v3684
    %3913 = vmatpush1.bf16.msra.mxu0 %v3683
    %3914 = vmatprep.mubr.bf16.mxu0 %v3461
    %3915 = vmatmul.mubr.bf16.gmra.mrb[0].mxu0 %v3460
    %v3916 = vpop.f32.mrb[0].mxu0
    %v3917 = vadd.f32 0.0, %v3916
    %v3918 = vpop.f32.mrb[0].mxu0
    %v3919 = vadd.f32 0.0, %v3918
    %v3920 = vpop.f32.mrb[0].mxu0
    %v3921 = vpop.f32.mrb[0].mxu0
    %3922 = vdwg.mxu0
    %3923 = vmatprep.subr.bf16.mxu0 %v3691
    %3924 = vmatpush1.bf16.msra.mxu0 %v3690
    %3925 = vmatprep.subr.bf16.mxu0 %v3698
    %3926 = vmatpush1.bf16.msra.mxu0 %v3697
    %3927 = vmatprep.subr.bf16.mxu0 %v3705
    %3928 = vmatpush1.bf16.msra.mxu0 %v3704
    %3929 = vmatprep.subr.bf16.mxu0 %v3712
    %3930 = vmatpush1.bf16.msra.mxu0 %v3711
    %3931 = vmatprep.subr.bf16.mxu0 %v3719
    %3932 = vmatpush1.bf16.msra.mxu0 %v3718
    %3933 = vmatprep.subr.bf16.mxu0 %v3726
    %3934 = vmatpush1.bf16.msra.mxu0 %v3725
    %3935 = vmatprep.subr.bf16.mxu0 %v3733
    %3936 = vmatpush1.bf16.msra.mxu0 %v3732
    %3937 = vmatprep.subr.bf16.mxu0 %v3740
    %3938 = vmatpush1.bf16.msra.mxu0 %v3739
    %3939 = vmatprep.subr.bf16.mxu0 %v3747
    %3940 = vmatpush1.bf16.msra.mxu0 %v3746
    %3941 = vmatprep.subr.bf16.mxu0 %v3754
    %3942 = vmatpush1.bf16.msra.mxu0 %v3753
    %3943 = vmatprep.subr.bf16.mxu0 %v3761
    %3944 = vmatpush1.bf16.msra.mxu0 %v3760
    %3945 = vmatprep.subr.bf16.mxu0 %v3768
    %3946 = vmatpush1.bf16.msra.mxu0 %v3767
    %3947 = vmatprep.subr.bf16.mxu0 %v3775
    %3948 = vmatpush1.bf16.msra.mxu0 %v3774
    %3949 = vmatprep.subr.bf16.mxu0 %v3782
    %3950 = vmatpush1.bf16.msra.mxu0 %v3781
    %3951 = vmatprep.subr.bf16.mxu0 %v3789
    %3952 = vmatpush1.bf16.msra.mxu0 %v3788
    %3953 = vmatprep.subr.bf16.mxu0 %v3796
    %3954 = vmatpush1.bf16.msra.mxu0 %v3795
    %3955 = vmatprep.mubr.bf16.mxu0 %v3463
    %3956 = vmatmul.mubr.bf16.gmra.mrb[0].mxu0 %v3462
    %v3957 = vpop.f32.mrb[0].mxu0
    %v3958 = vadd.f32 %v3917, %v3957
    %v3959 = vpop.f32.mrb[0].mxu0
    %v3960 = vadd.f32 %v3919, %v3959
    %v3961 = vpop.f32.mrb[0].mxu0
    %v3962 = vpop.f32.mrb[0].mxu0
    %3963 = vdwg.mxu0
    %3964 = vmatprep.subr.bf16.mxu0 %v3581
    %3965 = vmatpush1.bf16.msra.mxu0 %v3580
    %3966 = vmatprep.subr.bf16.mxu0 %v3588
    %3967 = vmatpush1.bf16.msra.mxu0 %v3587
    %3968 = vmatprep.subr.bf16.mxu0 %v3595
    %3969 = vmatpush1.bf16.msra.mxu0 %v3594
    %3970 = vmatprep.subr.bf16.mxu0 %v3602
    %3971 = vmatpush1.bf16.msra.mxu0 %v3601
    %3972 = vmatprep.subr.bf16.mxu0 %v3609
    %3973 = vmatpush1.bf16.msra.mxu0 %v3608
    %3974 = vmatprep.subr.bf16.mxu0 %v3616
    %3975 = vmatpush1.bf16.msra.mxu0 %v3615
    %3976 = vmatprep.subr.bf16.mxu0 %v3623
    %3977 = vmatpush1.bf16.msra.mxu0 %v3622
    %3978 = vmatprep.subr.bf16.mxu0 %v3630
    %3979 = vmatpush1.bf16.msra.mxu0 %v3629
    %3980 = vmatprep.subr.bf16.mxu0 %v3637
    %3981 = vmatpush1.bf16.msra.mxu0 %v3636
    %3982 = vmatprep.subr.bf16.mxu0 %v3644
    %3983 = vmatpush1.bf16.msra.mxu0 %v3643
    %3984 = vmatprep.subr.bf16.mxu0 %v3651
    %3985 = vmatpush1.bf16.msra.mxu0 %v3650
    %3986 = vmatprep.subr.bf16.mxu0 %v3658
    %3987 = vmatpush1.bf16.msra.mxu0 %v3657
    %3988 = vmatprep.subr.bf16.mxu0 %v3665
    %3989 = vmatpush1.bf16.msra.mxu0 %v3664
    %3990 = vmatprep.subr.bf16.mxu0 %v3672
    %3991 = vmatpush1.bf16.msra.mxu0 %v3671
    %3992 = vmatprep.subr.bf16.mxu0 %v3679
    %3993 = vmatpush1.bf16.msra.mxu0 %v3678
    %3994 = vmatprep.subr.bf16.mxu0 %v3686
    %3995 = vmatpush1.bf16.msra.mxu0 %v3685
    %3996 = vmatprep.mubr.bf16.mxu0 %v3461
    %3997 = vmatmul.mubr.bf16.gmra.mrb[0].mxu0 %v3460
    %v3998 = vpop.f32.mrb[0].mxu0
    %v3999 = vadd.f32 0.0, %v3998
    %v4000 = vpop.f32.mrb[0].mxu0
    %v4001 = vadd.f32 0.0, %v4000
    %v4002 = vpop.f32.mrb[0].mxu0
    %v4003 = vpop.f32.mrb[0].mxu0
    %4004 = vdwg.mxu0
    %4005 = vmatprep.subr.bf16.mxu0 %v3693
    %4006 = vmatpush1.bf16.msra.mxu0 %v3692
    %4007 = vmatprep.subr.bf16.mxu0 %v3700
    %4008 = vmatpush1.bf16.msra.mxu0 %v3699
    %4009 = vmatprep.subr.bf16.mxu0 %v3707
    %4010 = vmatpush1.bf16.msra.mxu0 %v3706
    %4011 = vmatprep.subr.bf16.mxu0 %v3714
    %4012 = vmatpush1.bf16.msra.mxu0 %v3713
    %4013 = vmatprep.subr.bf16.mxu0 %v3721
    %4014 = vmatpush1.bf16.msra.mxu0 %v3720
    %4015 = vmatprep.subr.bf16.mxu0 %v3728
    %4016 = vmatpush1.bf16.msra.mxu0 %v3727
    %4017 = vmatprep.subr.bf16.mxu0 %v3735
    %4018 = vmatpush1.bf16.msra.mxu0 %v3734
    %4019 = vmatprep.subr.bf16.mxu0 %v3742
    %4020 = vmatpush1.bf16.msra.mxu0 %v3741
    %4021 = vmatprep.subr.bf16.mxu0 %v3749
    %4022 = vmatpush1.bf16.msra.mxu0 %v3748
    %4023 = vmatprep.subr.bf16.mxu0 %v3756
    %4024 = vmatpush1.bf16.msra.mxu0 %v3755
    %4025 = vmatprep.subr.bf16.mxu0 %v3763
    %4026 = vmatpush1.bf16.msra.mxu0 %v3762
    %4027 = vmatprep.subr.bf16.mxu0 %v3770
    %4028 = vmatpush1.bf16.msra.mxu0 %v3769
    %4029 = vmatprep.subr.bf16.mxu0 %v3777
    %4030 = vmatpush1.bf16.msra.mxu0 %v3776
    %4031 = vmatprep.subr.bf16.mxu0 %v3784
    %4032 = vmatpush1.bf16.msra.mxu0 %v3783
    %4033 = vmatprep.subr.bf16.mxu0 %v3791
    %4034 = vmatpush1.bf16.msra.mxu0 %v3790
    %4035 = vmatprep.subr.bf16.mxu0 %v3798
    %4036 = vmatpush1.bf16.msra.mxu0 %v3797
    %4037 = vmatprep.mubr.bf16.mxu0 %v3463
    %4038 = vmatmul.mubr.bf16.gmra.mrb[0].mxu0 %v3462
    %v4039 = vpop.f32.mrb[0].mxu0
    %v4040 = vadd.f32 %v3999, %v4039
    %v4041 = vpop.f32.mrb[0].mxu0
    %v4042 = vadd.f32 %v4001, %v4041
    %v4043 = vpop.f32.mrb[0].mxu0
    %v4044 = vpop.f32.mrb[0].mxu0
    %4045 = vdwg.mxu0
    %4046 = vmatprep.subr.bf16.mxu0 0
    %4047 = vmatpush1.bf16.msra.mxu0 %v3582
    %4048 = vmatprep.subr.bf16.mxu0 0
    %4049 = vmatpush1.bf16.msra.mxu0 %v3589
    %4050 = vmatprep.subr.bf16.mxu0 0
    %4051 = vmatpush1.bf16.msra.mxu0 %v3596
    %4052 = vmatprep.subr.bf16.mxu0 0
    %4053 = vmatpush1.bf16.msra.mxu0 %v3603
    %4054 = vmatprep.subr.bf16.mxu0 0
    %4055 = vmatpush1.bf16.msra.mxu0 %v3610
    %4056 = vmatprep.subr.bf16.mxu0 0
    %4057 = vmatpush1.bf16.msra.mxu0 %v3617
    %4058 = vmatprep.subr.bf16.mxu0 0
    %4059 = vmatpush1.bf16.msra.mxu0 %v3624
    %4060 = vmatprep.subr.bf16.mxu0 0
    %4061 = vmatpush1.bf16.msra.mxu0 %v3631
    %4062 = vmatprep.subr.bf16.mxu0 0
    %4063 = vmatpush1.bf16.msra.mxu0 %v3638
    %4064 = vmatprep.subr.bf16.mxu0 0
    %4065 = vmatpush1.bf16.msra.mxu0 %v3645
    %4066 = vmatprep.subr.bf16.mxu0 0
    %4067 = vmatpush1.bf16.msra.mxu0 %v3652
    %4068 = vmatprep.subr.bf16.mxu0 0
    %4069 = vmatpush1.bf16.msra.mxu0 %v3659
    %4070 = vmatprep.subr.bf16.mxu0 0
    %4071 = vmatpush1.bf16.msra.mxu0 %v3666
    %4072 = vmatprep.subr.bf16.mxu0 0
    %4073 = vmatpush1.bf16.msra.mxu0 %v3673
    %4074 = vmatprep.subr.bf16.mxu0 0
    %4075 = vmatpush1.bf16.msra.mxu0 %v3680
    %4076 = vmatprep.subr.bf16.mxu0 0
    %4077 = vmatpush1.bf16.msra.mxu0 %v3687
    %4078 = vmatprep.mubr.bf16.mxu0 %v3461
    %4079 = vmatmul.mubr.bf16.gmra.mrb[0].mxu0 %v3460
    %v4080 = vpop.f32.mrb[0].mxu0
    %v4081 = vadd.f32 0.0, %v4080
    %v4082 = vpop.f32.mrb[0].mxu0
    %v4083 = vpop.f32.mrb[0].mxu0
    %v4084 = vpop.f32.mrb[0].mxu0
    %4085 = vdwg.mxu0
    %4086 = vmatprep.subr.bf16.mxu0 0
    %4087 = vmatpush1.bf16.msra.mxu0 %v3694
    %4088 = vmatprep.subr.bf16.mxu0 0
    %4089 = vmatpush1.bf16.msra.mxu0 %v3701
    %4090 = vmatprep.subr.bf16.mxu0 0
    %4091 = vmatpush1.bf16.msra.mxu0 %v3708
    %4092 = vmatprep.subr.bf16.mxu0 0
    %4093 = vmatpush1.bf16.msra.mxu0 %v3715
    %4094 = vmatprep.subr.bf16.mxu0 0
    %4095 = vmatpush1.bf16.msra.mxu0 %v3722
    %4096 = vmatprep.subr.bf16.mxu0 0
    %4097 = vmatpush1.bf16.msra.mxu0 %v3729
    %4098 = vmatprep.subr.bf16.mxu0 0
    %4099 = vmatpush1.bf16.msra.mxu0 %v3736
    %4100 = vmatprep.subr.bf16.mxu0 0
    %4101 = vmatpush1.bf16.msra.mxu0 %v3743
    %4102 = vmatprep.subr.bf16.mxu0 0
    %4103 = vmatpush1.bf16.msra.mxu0 %v3750
    %4104 = vmatprep.subr.bf16.mxu0 0
    %4105 = vmatpush1.bf16.msra.mxu0 %v3757
    %4106 = vmatprep.subr.bf16.mxu0 0
    %4107 = vmatpush1.bf16.msra.mxu0 %v3764
    %4108 = vmatprep.subr.bf16.mxu0 0
    %4109 = vmatpush1.bf16.msra.mxu0 %v3771
    %4110 = vmatprep.subr.bf16.mxu0 0
    %4111 = vmatpush1.bf16.msra.mxu0 %v3778
    %4112 = vmatprep.subr.bf16.mxu0 0
    %4113 = vmatpush1.bf16.msra.mxu0 %v3785
    %4114 = vmatprep.subr.bf16.mxu0 0
    %4115 = vmatpush1.bf16.msra.mxu0 %v3792
    %4116 = vmatprep.subr.bf16.mxu0 0
    %4117 = vmatpush1.bf16.msra.mxu0 %v3799
    %4118 = vmatprep.mubr.bf16.mxu0 %v3463
    %4119 = vmatmul.mubr.bf16.gmra.mrb[0].mxu0 %v3462
    %v4120 = vpop.f32.mrb[0].mxu0
    %v4121 = vadd.f32 %v4081, %v4120
    %v4122 = vpop.f32.mrb[0].mxu0
    %v4123 = vpop.f32.mrb[0].mxu0
    %v4124 = vpop.f32.mrb[0].mxu0
    %4125 = vdwg.mxu0
    %v4126 = vld [vmem:[#allocation28] sm:$0x7f]
    %v4128 = vlaneseq
    %v4129 = vshrl.u32 %v4128, 7
    %v4130 = vsub.s32 0, %v4129
    %v4131 = vrot.slane %v4126, %v4130
    %v4132 = vlaneseq
    %v4133 = vshrl.u32 %v4132, 7
    %v4134 = vsub.s32 1, %v4133
    %v4135 = vrot.slane %v4126, %v4134
    %v4136 = vlaneseq
    %v4137 = vshrl.u32 %v4136, 7
    %v4138 = vsub.s32 2, %v4137
    %v4139 = vrot.slane %v4126, %v4138
    %v4140 = vlaneseq
    %v4141 = vshrl.u32 %v4140, 7
    %v4142 = vsub.s32 3, %v4141
    %v4143 = vrot.slane %v4126, %v4142
    %v4144 = vlaneseq
    %v4145 = vshrl.u32 %v4144, 7
    %v4146 = vsub.s32 4, %v4145
    %v4147 = vrot.slane %v4126, %v4146
    %v4148 = vlaneseq
    %v4149 = vshrl.u32 %v4148, 7
    %v4150 = vsub.s32 5, %v4149
    %v4151 = vrot.slane %v4126, %v4150
    %v4152 = vlaneseq
    %v4153 = vshrl.u32 %v4152, 7
    %v4154 = vsub.s32 6, %v4153
    %v4155 = vrot.slane %v4126, %v4154
    %v4163 = vmul.f32 %v3876, %v4131
    %v4164 = vmul.f32 %v3878, %v4135
    %v4165 = vmul.f32 %v3958, %v4139
    %v4166 = vmul.f32 %v3960, %v4143
    %v4167 = vmul.f32 %v4040, %v4147
    %v4168 = vmul.f32 %v4042, %v4151
    %v4169 = vmul.f32 %v4121, %v4155
    %v4170 = vld [vmem:[#allocation29] sm:$0x7f]
    %v4172 = vlaneseq
    %v4173 = vshrl.u32 %v4172, 7
    %v4174 = vsub.s32 0, %v4173
    %v4175 = vrot.slane %v4170, %v4174
    %v4176 = vlaneseq
    %v4177 = vshrl.u32 %v4176, 7
    %v4178 = vsub.s32 1, %v4177
    %v4179 = vrot.slane %v4170, %v4178
    %v4180 = vlaneseq
    %v4181 = vshrl.u32 %v4180, 7
    %v4182 = vsub.s32 2, %v4181
    %v4183 = vrot.slane %v4170, %v4182
    %v4184 = vlaneseq
    %v4185 = vshrl.u32 %v4184, 7
    %v4186 = vsub.s32 3, %v4185
    %v4187 = vrot.slane %v4170, %v4186
    %v4188 = vlaneseq
    %v4189 = vshrl.u32 %v4188, 7
    %v4190 = vsub.s32 4, %v4189
    %v4191 = vrot.slane %v4170, %v4190
    %v4192 = vlaneseq
    %v4193 = vshrl.u32 %v4192, 7
    %v4194 = vsub.s32 5, %v4193
    %v4195 = vrot.slane %v4170, %v4194
    %v4196 = vlaneseq
    %v4197 = vshrl.u32 %v4196, 7
    %v4198 = vsub.s32 6, %v4197
    %v4199 = vrot.slane %v4170, %v4198
    %v4207 = vadd.f32 %v4163, %v4175
    %v4208 = vadd.f32 %v4164, %v4179
    %v4209 = vadd.f32 %v4165, %v4183
    %v4210 = vadd.f32 %v4166, %v4187
    %v4211 = vadd.f32 %v4167, %v4191
    %v4212 = vadd.f32 %v4168, %v4195
    %v4213 = vadd.f32 %v4169, %v4199
    %v4214 = vxor.u32 %v4207, 2147483648
    %v4215 = vxor.u32 %v4208, 2147483648
    %v4216 = vxor.u32 %v4209, 2147483648
    %v4217 = vxor.u32 %v4210, 2147483648
    %v4218 = vxor.u32 %v4211, 2147483648
    %v4219 = vxor.u32 %v4212, 2147483648
    %v4220 = vxor.u32 %v4213, 2147483648
    %v4221 = vmul.f32 %v4214, 1.442695
    %v4222 = vpow.pop %v4221
    %v4223 = vmul.f32 %v4215, 1.442695
    %v4224 = vpow.pop %v4223
    %v4225 = vmul.f32 %v4216, 1.442695
    %v4226 = vpow.pop %v4225
    %v4227 = vmul.f32 %v4217, 1.442695
    %v4228 = vpow.pop %v4227
    %v4229 = vmul.f32 %v4218, 1.442695
    %v4230 = vpow.pop %v4229
    %v4231 = vmul.f32 %v4219, 1.442695
    %v4232 = vpow.pop %v4231
    %v4233 = vmul.f32 %v4220, 1.442695
    %v4234 = vpow.pop %v4233
    %v4235 = vadd.f32 %v4222, 1.0
    %v4236 = vadd.f32 %v4224, 1.0
    %v4237 = vadd.f32 %v4226, 1.0
    %v4238 = vadd.f32 %v4228, 1.0
    %v4239 = vadd.f32 %v4230, 1.0
    %v4240 = vadd.f32 %v4232, 1.0
    %v4241 = vadd.f32 %v4234, 1.0
    %v4242 = vrcp.pop %v4235
    %v4243 = vmul.f32 1.0, %v4242
    %v4244 = vrcp.pop %v4236
    %v4245 = vmul.f32 1.0, %v4244
    %v4246 = vrcp.pop %v4237
    %v4247 = vmul.f32 1.0, %v4246
    %v4248 = vrcp.pop %v4238
    %v4249 = vmul.f32 1.0, %v4248
    %v4250 = vrcp.pop %v4239
    %v4251 = vmul.f32 1.0, %v4250
    %v4252 = vrcp.pop %v4240
    %v4253 = vmul.f32 1.0, %v4252
    %v4254 = vrcp.pop %v4241
    %v4255 = vmul.f32 1.0, %v4254
    %4256 = vst [vmem:[#allocation31] sm:$0xff] %v4243
    %4257 = vst [vmem:[#allocation31 + $0x8] sm:$0xff] %v4245
    %4258 = vst [vmem:[#allocation31 + $0x10] sm:$0xff] %v4247
    %4259 = vst [vmem:[#allocation31 + $0x18] sm:$0xff] %v4249
    %4260 = vst [vmem:[#allocation31 + $0x20] sm:$0xff] %v4251
    %4261 = vst [vmem:[#allocation31 + $0x28] sm:$0xff] %v4253
    %4262 = vst.msk [vmem:[#allocation31 + $0x30] sm:$0xff] %vm1606, %v4255
    // Predicated region
    $region178: #{ae_forward.1} parent=1 // pred_check
      _
    $region179: #{ae_forward.1} parent=1 // pred_check_branch
      %4264 = sbr.rel (0) target = $region181
    $region180: #{ae_forward.1} parent=1 // pred_region
      %s4266 = ssub.s32 896, 896
      %4267 = vsyncadd [#allocation4], %s4266
      %s4269 = sshll.u32 [#allocation31], 4
      %s4270 = int_to_ptr.vmem [resolvable:$true] %s4269
      %4272 = dma.vmem_to_hbm [thread:$0]  %s4270, 896, %s26, [#allocation4]
    $region181: #{ae_forward.1} parent=1 // pred_fallthru
      _
    // Predicated region
    $region182: #{ae_forward.1} parent=1 // pred_check
      _
    $region183: #{ae_forward.1} parent=1 // pred_check_branch
      %4274 = sbr.rel (0) target = $region185
    $region184: #{ae_forward.1} parent=1 // pred_region
      %s4276 = ssub.s32 128, 128
      %4277 = vsyncadd [#allocation33], %s4276
      %s4279 = sshll.u32 [#allocation32], 4
      %s4280 = int_to_ptr.vmem [resolvable:$true] %s4279
      %4282 = dma.vmem_to_hbm [thread:$0]  %s4280, 128, %s27, [#allocation33]
    $region185: #{ae_forward.1} parent=1 // pred_fallthru
      _
    // Predicated region
    $region186: #{ae_forward.1} parent=1 // pred_check
      _
    $region187: #{ae_forward.1} parent=1 // pred_check_branch
      %4284 = sbr.rel (0) target = $region189
    $region188: #{ae_forward.1} parent=1 // pred_region
      %4285 = dma.done [#allocation4], 896
    $region189: #{ae_forward.1} parent=1 // pred_fallthru
      _
    // Predicated region
    $region190: #{ae_forward.1} parent=1 // pred_check
      _
    $region191: #{ae_forward.1} parent=1 // pred_check_branch
      %4287 = sbr.rel (0) target = $region193
    $region192: #{ae_forward.1} parent=1 // pred_region
      %4288 = dma.done [#allocation33], 128
    $region193: #{ae_forward.1} parent=1 // pred_fallthru
      _
    %4289 = vsyncpa [#allocation3], 1
    %4290 = vsyncpa [#allocation6], 1
    %4291 = vsyncpa [#allocation9], 1
    %4292 = vsyncpa [#allocation12], 1
    %4293 = vsyncpa [#allocation15], 1
    %4294 = vsyncpa [#allocation18], 1
    %4295 = vsyncpa [#allocation21], 1
    %4296 = vsyncpa [#allocation24], 1
    %4297 = vsyncpa [#allocation27], 1
    %4298 = vsyncpa [#allocation30], 1
    %4299 = vsyncpa [#allocation4], 1
    %4300 = vsyncpa [#allocation33], 1

</llo_original>
